<compile_context>
chip_gen: v7x
topology: tpu7x:2x2x1
jax: 0.10.0
libtpu: 0.0.40
codegen_flags: <defaults>
</compile_context>

<pallas_src>
import functools

import jax
import jax.numpy as jnp
import numpy as np
from jax.experimental import pallas as pl
from jax.experimental.pallas import tpu as pltpu


_PAD = 32  # left/right margin in the row-padding scratch (>= W+1 at every level)


# ---------------------------------------------------------------------------
# In-kernel building blocks (operate on (C, H*W) f32 values)
# ---------------------------------------------------------------------------
def _conv3x3_flat(pad_ref, xf, wmat, bias, H, W):
    """3x3 SAME conv + ReLU on a channel-major, spatially flattened activation.

    xf   : (Cin, H*W) f32 value, channels on sublanes, spatial on lanes.
    wmat : (Cout, 9*Cin) f32, tap-major / channel-minor (matches `col` below).
    bias : (Cout, 1) f32.
    pad_ref: VMEM scratch used to materialise the zero padding for the nine
             spatially shifted taps (cheap VMEM traffic, no HBM round trip).
    """
    Cin, S = xf.shape
    width = pad_ref.shape[1]
    pad_ref[0:Cin, :] = jnp.zeros((Cin, width), jnp.float32)
    pad_ref[0:Cin, _PAD:_PAD + S] = xf
    # x coordinate of each flattened lane (W is a power of two at every level).
    lane_x = jax.lax.broadcasted_iota(jnp.int32, (1, S), 1) & (W - 1)
    cols = []
    for dy in (-1, 0, 1):
        for dx in (-1, 0, 1):
            off = _PAD + dy * W + dx
            sh = pad_ref[0:Cin, off:off + S]
            # zero lanes where the x shift wrapped across an image row
            if dx == -1:
                sh = jnp.where(lane_x == 0, 0.0, sh)
            elif dx == 1:
                sh = jnp.where(lane_x == W - 1, 0.0, sh)
            cols.append(sh)
    col = jnp.concatenate(cols, axis=0)                        # (9*Cin, S)
    out = jnp.dot(wmat, col, preferred_element_type=jnp.float32) + bias
    return jnp.maximum(out, 0.0)


def _maxpool2_flat(xf, pool_mat, s_out):
    """2x2 / stride-2 max pool: one selection matmul gathers the four window
    phases side by side; the max is a cheap VPU op on data already in vregs."""
    r = jnp.dot(xf, pool_mat, preferred_element_type=jnp.float32)  # (C, 4*s_out)
    return jnp.maximum(
        jnp.maximum(r[:, 0:s_out], r[:, s_out:2 * s_out]),
        jnp.maximum(r[:, 2 * s_out:3 * s_out], r[:, 3 * s_out:4 * s_out]),
    )


def _unet_kernel(
    x_ref,
    w_e1a, b_e1a, w_e1b, b_e1b,
    w_e2a, b_e2a, w_e2b, b_e2b,
    w_e3a, b_e3a, w_e3b, b_e3b,
    w_d2a, b_d2a, w_d2b, b_d2b,
    w_d1a, b_d1a, w_d1b, b_d1b,
    w_out, b_out,
    pool1_ref, pool2_ref, up32_ref, up21_ref,
    e1_ref, e2_ref, e3_ref, dec_ref,
    pad_ref,
    *, H, W,
):
    H2, W2, H4, W4 = H // 2, W // 2, H // 4, W // 4
    S2, S3 = H2 * W2, H4 * W4
    conv = functools.partial(_conv3x3_flat, pad_ref)

    x = x_ref[...].astype(jnp.float32)                         # (Cin_pad, H*W)

    # ---------------- Encoder ----------------
    t = conv(x, w_e1a[...], b_e1a[...], H, W)
    e1 = conv(t, w_e1b[...], b_e1b[...], H, W)
    e1_ref[...] = e1.astype(e1_ref.dtype)

    d1 = _maxpool2_flat(e1, pool1_ref[...], S2)
    t = conv(d1, w_e2a[...], b_e2a[...], H2, W2)
    e2 = conv(t, w_e2b[...], b_e2b[...], H2, W2)
    e2_ref[...] = e2.astype(e2_ref.dtype)

    d2 = _maxpool2_flat(e2, pool2_ref[...], S3)
    t = conv(d2, w_e3a[...], b_e3a[...], H4, W4)
    e3 = conv(t, w_e3b[...], b_e3b[...], H4, W4)
    e3_ref[...] = e3.astype(e3_ref.dtype)

    # ---------------- Decoder ----------------
    # nearest 2x upsample = selection matmul; skip concat stays in VMEM.
    u2 = jnp.concatenate(
        [jnp.dot(e3, up32_ref[...], preferred_element_type=jnp.float32), e2], axis=0)
    t = conv(u2, w_d2a[...], b_d2a[...], H2, W2)
    d = conv(t, w_d2b[...], b_d2b[...], H2, W2)

    u1 = jnp.concatenate(
        [jnp.dot(d, up21_ref[...], preferred_element_type=jnp.float32), e1], axis=0)
    t = conv(u1, w_d1a[...], b_d1a[...], H, W)
    d = conv(t, w_d1b[...], b_d1b[...], H, W)

    out = jnp.dot(w_out[...], d, preferred_element_type=jnp.float32) + b_out[...]
    dec_ref[...] = out.astype(dec_ref.dtype)


# ---------------------------------------------------------------------------
# Host-side constant operators and weight preparation
# ---------------------------------------------------------------------------
def _pool_selection_matrix(H, W):
    """(H*W, 4*(H/2)*(W/2)) 0/1 matrix gathering the four 2x2 window phases."""
    Ho, Wo = H // 2, W // 2
    So = Ho * Wo
    P = np.zeros((H * W, 4 * So), np.float32)
    for p, (dy, dx) in enumerate(((0, 0), (0, 1), (1, 0), (1, 1))):
        for i in range(Ho):
            for j in range(Wo):
                P[(2 * i + dy) * W + (2 * j + dx), p * So + i * Wo + j] = 1.0
    return jnp.asarray(P)


def _upsample_selection_matrix(H, W):
    """(H*W, 4*H*W) 0/1 matrix implementing nearest-neighbour 2x upsampling."""
    H2, W2 = 2 * H, 2 * W
    U = np.zeros((H * W, H2 * W2), np.float32)
    for y in range(H2):
        for x in range(W2):
            U[(y // 2) * W + (x // 2), y * W2 + x] = 1.0
    return jnp.asarray(U)


def _fold_conv_weight(w_hwio, b, cin_pad=None):
    """(kh,kw,Cin,Cout) HWIO + (Cout,) -> ((Cout, kh*kw*Cin), (Cout, 1)),
    tap-major / channel-minor column ordering (matches the in-kernel im2col)."""
    kh, kw, cin, cout = w_hwio.shape
    if cin_pad is not None and cin_pad != cin:
        w_hwio = jnp.pad(w_hwio, ((0, 0), (0, 0), (0, cin_pad - cin), (0, 0)))
        cin = cin_pad
    wmat = jnp.transpose(w_hwio, (3, 0, 1, 2)).reshape(cout, kh * kw * cin)
    return wmat, b.reshape(cout, 1)


# ---------------------------------------------------------------------------
# Parameters (deterministic, synthetic)
# ---------------------------------------------------------------------------
def init_params(key, in_ch=4, base=8, out_ch=4):
    shapes = {
        "enc1a": (3, 3, in_ch, base),
        "enc1b": (3, 3, base, base),
        "enc2a": (3, 3, base, 2 * base),
        "enc2b": (3, 3, 2 * base, 2 * base),
        "enc3a": (3, 3, 2 * base, 4 * base),
        "enc3b": (3, 3, 4 * base, 4 * base),
        "dec2a": (3, 3, 4 * base + 2 * base, 2 * base),
        "dec2b": (3, 3, 2 * base, 2 * base),
        "dec1a": (3, 3, 2 * base + base, base),
        "dec1b": (3, 3, base, base),
        "out": (1, 1, base, out_ch),
    }
    params = {}
    for i, (name, shp) in enumerate(shapes.items()):
        kw_, kb_ = jax.random.split(jax.random.fold_in(key, i))
        fan_in = shp[0] * shp[1] * shp[2]
        scale = jnp.sqrt(2.0 / fan_in)
        params[name + "_w"] = (scale * jax.random.normal(kw_, shp)).astype(jnp.float32)
        params[name + "_b"] = (0.01 * jax.random.normal(kb_, (shp[3],))).astype(
            jnp.float32)
    return params


# ---------------------------------------------------------------------------
# UNet forward (NCHW in / NCHW out, like PyTorch) -- one fused pallas_call
# ---------------------------------------------------------------------------
@jax.jit
def unet_forward(x_nchw, params):
    N, Cin, H, W = x_nchw.shape
    assert H % 4 == 0 and W % 4 == 0
    assert W + 1 <= _PAD
    for w_ in (W, W // 2, W // 4):
        assert w_ > 0 and (w_ & (w_ - 1)) == 0  # lane-coordinate masks need 2^k W
    S1 = H * W
    S2 = (H // 2) * (W // 2)
    S3 = (H // 4) * (W // 4)

    names = ["enc1a", "enc1b", "enc2a", "enc2b", "enc3a", "enc3b",
             "dec2a", "dec2b", "dec1a", "dec1b", "out"]
    cin_pad = -(-Cin // 8) * 8  # keep im2col sublane blocks 8-aligned
    folded = []
    for i, nm in enumerate(names):
        pad_to = cin_pad if i == 0 else None
        folded.append(_fold_conv_weight(params[nm + "_w"], params[nm + "_b"], pad_to))
    wb_args = [a for pair in folded for a in pair]

    c_e1 = params["enc1b_w"].shape[3]
    c_e2 = params["enc2b_w"].shape[3]
    c_e3 = params["enc3b_w"].shape[3]
    c_out = params["out_w"].shape[3]

    pool1 = _pool_selection_matrix(H, W)
    pool2 = _pool_selection_matrix(H // 2, W // 2)
    up32 = _upsample_selection_matrix(H // 4, W // 4)
    up21 = _upsample_selection_matrix(H // 2, W // 2)

    # NCHW -> channel-major flattened (N, C, H*W); pad channels to a sublane multiple.
    xf = x_nchw.reshape(N, Cin, S1)
    if cin_pad != Cin:
        xf = jnp.concatenate(
            [xf, jnp.zeros((N, cin_pad - Cin, S1), xf.dtype)], axis=1)

    # Scratch sized for the widest conv input and the level-1 spatial extent.
    c_scr = max([cin_pad] + [int(params[nm + "_w"].shape[2]) for nm in names[1:-1]])
    c_scr = -(-c_scr // 8) * 8

    full2d = lambda a: pl.BlockSpec(a.shape, lambda n: (0, 0))
    in_specs = [pl.BlockSpec((None, cin_pad, S1), lambda n: (n, 0, 0))]
    in_specs += [full2d(a) for a in wb_args]
    in_specs += [full2d(pool1), full2d(pool2), full2d(up32), full2d(up21)]

    out_shape = (
        jax.ShapeDtypeStruct((N, c_e1, S1), x_nchw.dtype),
        jax.ShapeDtypeStruct((N, c_e2, S2), x_nchw.dtype),
        jax.ShapeDtypeStruct((N, c_e3, S3), x_nchw.dtype),
        jax.ShapeDtypeStruct((N, c_out, S1), x_nchw.dtype),
    )
    out_specs = (
        pl.BlockSpec((None, c_e1, S1), lambda n: (n, 0, 0)),
        pl.BlockSpec((None, c_e2, S2), lambda n: (n, 0, 0)),
        pl.BlockSpec((None, c_e3, S3), lambda n: (n, 0, 0)),
        pl.BlockSpec((None, c_out, S1), lambda n: (n, 0, 0)),
    )

    kernel = functools.partial(_unet_kernel, H=H, W=W)
    e1f, e2f, e3f, decf = pl.pallas_call(
        kernel,
        out_shape=out_shape,
        grid=(N,),
        in_specs=in_specs,
        out_specs=out_specs,
        scratch_shapes=[pltpu.VMEM((c_scr, S1 + 2 * _PAD), jnp.float32)],
        compiler_params=pltpu.CompilerParams(dimension_semantics=("parallel",)),
    )(xf, *wb_args, pool1, pool2, up32, up21)

    e1 = e1f.reshape(N, c_e1, H, W)
    e2 = e2f.reshape(N, c_e2, H // 2, W // 2)
    e3 = e3f.reshape(N, c_e3, H // 4, W // 4)
    dec = decf.reshape(N, c_out, H, W)
    return [e1, e2, e3], dec


# ---------------------------------------------------------------------------
# Pure-JAX reference (for numerical verification of the Pallas kernel)
# ---------------------------------------------------------------------------
def _conv_ref(x, w, b, relu=True):
    out = jax.lax.conv_general_dilated(
        x, w, (1, 1), "SAME",
        dimension_numbers=("NHWC", "HWIO", "NHWC"),
        precision=jax.lax.Precision.HIGHEST,
    ) + b
    return jnp.maximum(out, 0.0) if relu else out


def _maxpool_ref(x):
    return jax.lax.reduce_window(
        x, -jnp.inf, jax.lax.max, (1, 2, 2, 1), (1, 2, 2, 1), "VALID")


def _upsample_ref(x):
    return jnp.repeat(jnp.repeat(x, 2, axis=1), 2, axis=2)


def unet_forward_ref(x_nchw, p):
    x = jnp.transpose(x_nchw, (0, 2, 3, 1))
    e1 = _conv_ref(_conv_ref(x, p["enc1a_w"], p["enc1a_b"]), p["enc1b_w"], p["enc1b_b"])
    e2 = _conv_ref(_conv_ref(_maxpool_ref(e1), p["enc2a_w"], p["enc2a_b"]),
                   p["enc2b_w"], p["enc2b_b"])
    e3 = _conv_ref(_conv_ref(_maxpool_ref(e2), p["enc3a_w"], p["enc3a_b"]),
                   p["enc3b_w"], p["enc3b_b"])
    u2 = jnp.concatenate([_upsample_ref(e3), e2], axis=-1)
    d = _conv_ref(_conv_ref(u2, p["dec2a_w"], p["dec2a_b"]), p["dec2b_w"], p["dec2b_b"])
    u1 = jnp.concatenate([_upsample_ref(d), e1], axis=-1)
    d = _conv_ref(_conv_ref(u1, p["dec1a_w"], p["dec1a_b"]), p["dec1b_w"], p["dec1b_b"])
    decoded = _conv_ref(d, p["out_w"], p["out_b"], relu=False)
    to_nchw = lambda t: jnp.transpose(t, (0, 3, 1, 2))
    return [to_nchw(a) for a in (e1, e2, e3)], to_nchw(decoded)


# ---------------------------------------------------------------------------
if __name__ == "__main__":
    key = jax.random.PRNGKey(0)
    k_x, k_p = jax.random.split(key)

    N, C, H, W = 2, 4, 16, 16
    x = jax.random.normal(k_x, (N, C, H, W), dtype=jnp.float32)
    params = init_params(k_p, in_ch=C, base=8, out_ch=C)

    acts, decoded = unet_forward(x, params)
    jax.block_until_ready(decoded)
    for a in acts:
        jax.block_until_ready(a)

    # Sanity check against the pure-JAX reference (small slack covers MXU
    # multi-pass f32 matmul rounding vs the XLA convolution).
    acts_ref, decoded_ref = unet_forward_ref(x, params)
    for a, ar in zip(acts, acts_ref):
        np.testing.assert_allclose(np.asarray(a), np.asarray(ar), rtol=2e-3, atol=2e-3)
    np.testing.assert_allclose(
        np.asarray(decoded), np.asarray(decoded_ref), rtol=2e-3, atol=2e-3)

    print("KERNEL_OK")
</pallas_src>

<mosaic_0001>
module attributes {stable_mosaic.version = 11 : i64} {
  func.func @_unet_kernel(%arg0: i32, %arg1: memref<1x8x256xf32, #tpu.memory_space<vmem>>, %arg2: memref<8x72xf32, #tpu.memory_space<vmem>>, %arg3: memref<8x1xf32, #tpu.memory_space<vmem>>, %arg4: memref<8x72xf32, #tpu.memory_space<vmem>>, %arg5: memref<8x1xf32, #tpu.memory_space<vmem>>, %arg6: memref<16x72xf32, #tpu.memory_space<vmem>>, %arg7: memref<16x1xf32, #tpu.memory_space<vmem>>, %arg8: memref<16x144xf32, #tpu.memory_space<vmem>>, %arg9: memref<16x1xf32, #tpu.memory_space<vmem>>, %arg10: memref<32x144xf32, #tpu.memory_space<vmem>>, %arg11: memref<32x1xf32, #tpu.memory_space<vmem>>, %arg12: memref<32x288xf32, #tpu.memory_space<vmem>>, %arg13: memref<32x1xf32, #tpu.memory_space<vmem>>, %arg14: memref<16x432xf32, #tpu.memory_space<vmem>>, %arg15: memref<16x1xf32, #tpu.memory_space<vmem>>, %arg16: memref<16x144xf32, #tpu.memory_space<vmem>>, %arg17: memref<16x1xf32, #tpu.memory_space<vmem>>, %arg18: memref<8x216xf32, #tpu.memory_space<vmem>>, %arg19: memref<8x1xf32, #tpu.memory_space<vmem>>, %arg20: memref<8x72xf32, #tpu.memory_space<vmem>>, %arg21: memref<8x1xf32, #tpu.memory_space<vmem>>, %arg22: memref<4x8xf32, #tpu.memory_space<vmem>>, %arg23: memref<4x1xf32, #tpu.memory_space<vmem>>, %arg24: memref<256x256xf32, #tpu.memory_space<vmem>>, %arg25: memref<64x64xf32, #tpu.memory_space<vmem>>, %arg26: memref<16x64xf32, #tpu.memory_space<vmem>>, %arg27: memref<64x256xf32, #tpu.memory_space<vmem>>, %arg28: memref<1x8x256xf32, #tpu.memory_space<vmem>>, %arg29: memref<1x16x64xf32, #tpu.memory_space<vmem>>, %arg30: memref<1x32x16xf32, #tpu.memory_space<vmem>>, %arg31: memref<1x4x256xf32, #tpu.memory_space<vmem>>, %arg32: memref<48x320xf32, #tpu.memory_space<vmem>>) attributes {dimension_semantics = [#tpu.dimension_semantics<parallel>], iteration_bounds = array<i64: 2>, scalar_prefetch = 0 : i64, scratch_operands = 1 : i64, tpu.core_type = #tpu.core_type<tc>, window_params = [{transform_indices = @transform_0, window_bounds = array<i64: 1, 8, 256>}, {pipeline_mode = #tpu.pipeline_mode<synchronous>, transform_indices = @transform_1, window_bounds = array<i64: 8, 72>}, {pipeline_mode = #tpu.pipeline_mode<synchronous>, transform_indices = @transform_2, window_bounds = array<i64: 8, 1>}, {pipeline_mode = #tpu.pipeline_mode<synchronous>, transform_indices = @transform_3, window_bounds = array<i64: 8, 72>}, {pipeline_mode = #tpu.pipeline_mode<synchronous>, transform_indices = @transform_4, window_bounds = array<i64: 8, 1>}, {pipeline_mode = #tpu.pipeline_mode<synchronous>, transform_indices = @transform_5, window_bounds = array<i64: 16, 72>}, {pipeline_mode = #tpu.pipeline_mode<synchronous>, transform_indices = @transform_6, window_bounds = array<i64: 16, 1>}, {pipeline_mode = #tpu.pipeline_mode<synchronous>, transform_indices = @transform_7, window_bounds = array<i64: 16, 144>}, {pipeline_mode = #tpu.pipeline_mode<synchronous>, transform_indices = @transform_8, window_bounds = array<i64: 16, 1>}, {pipeline_mode = #tpu.pipeline_mode<synchronous>, transform_indices = @transform_9, window_bounds = array<i64: 32, 144>}, {pipeline_mode = #tpu.pipeline_mode<synchronous>, transform_indices = @transform_10, window_bounds = array<i64: 32, 1>}, {pipeline_mode = #tpu.pipeline_mode<synchronous>, transform_indices = @transform_11, window_bounds = array<i64: 32, 288>}, {pipeline_mode = #tpu.pipeline_mode<synchronous>, transform_indices = @transform_12, window_bounds = array<i64: 32, 1>}, {pipeline_mode = #tpu.pipeline_mode<synchronous>, transform_indices = @transform_13, window_bounds = array<i64: 16, 432>}, {pipeline_mode = #tpu.pipeline_mode<synchronous>, transform_indices = @transform_14, window_bounds = array<i64: 16, 1>}, {pipeline_mode = #tpu.pipeline_mode<synchronous>, transform_indices = @transform_15, window_bounds = array<i64: 16, 144>}, {pipeline_mode = #tpu.pipeline_mode<synchronous>, transform_indices = @transform_16, window_bounds = array<i64: 16, 1>}, {pipeline_mode = #tpu.pipeline_mode<synchronous>, transform_indices = @transform_17, window_bounds = array<i64: 8, 216>}, {pipeline_mode = #tpu.pipeline_mode<synchronous>, transform_indices = @transform_18, window_bounds = array<i64: 8, 1>}, {pipeline_mode = #tpu.pipeline_mode<synchronous>, transform_indices = @transform_19, window_bounds = array<i64: 8, 72>}, {pipeline_mode = #tpu.pipeline_mode<synchronous>, transform_indices = @transform_20, window_bounds = array<i64: 8, 1>}, {pipeline_mode = #tpu.pipeline_mode<synchronous>, transform_indices = @transform_21, window_bounds = array<i64: 4, 8>}, {pipeline_mode = #tpu.pipeline_mode<synchronous>, transform_indices = @transform_22, window_bounds = array<i64: 4, 1>}, {pipeline_mode = #tpu.pipeline_mode<synchronous>, transform_indices = @transform_23, window_bounds = array<i64: 256, 256>}, {pipeline_mode = #tpu.pipeline_mode<synchronous>, transform_indices = @transform_24, window_bounds = array<i64: 64, 64>}, {pipeline_mode = #tpu.pipeline_mode<synchronous>, transform_indices = @transform_25, window_bounds = array<i64: 16, 64>}, {pipeline_mode = #tpu.pipeline_mode<synchronous>, transform_indices = @transform_26, window_bounds = array<i64: 64, 256>}, {transform_indices = @transform_27, window_bounds = array<i64: 1, 8, 256>}, {transform_indices = @transform_28, window_bounds = array<i64: 1, 16, 64>}, {transform_indices = @transform_29, window_bounds = array<i64: 1, 32, 16>}, {transform_indices = @transform_30, window_bounds = array<i64: 1, 4, 256>}]} {
    %c0 = arith.constant 0 : index
    %c0_0 = arith.constant 0 : index
    %c0_1 = arith.constant 0 : index
    %0 = vector.load %arg1[%c0, %c0_0, %c0_1] : memref<1x8x256xf32, #tpu.memory_space<vmem>>, vector<1x8x256xf32>
    %1 = vector.shape_cast %0 : vector<1x8x256xf32> to vector<8x256xf32>
    %c0_2 = arith.constant 0 : index
    %c0_3 = arith.constant 0 : index
    %2 = vector.load %arg2[%c0_2, %c0_3] : memref<8x72xf32, #tpu.memory_space<vmem>>, vector<8x72xf32>
    %c0_4 = arith.constant 0 : index
    %c0_5 = arith.constant 0 : index
    %3 = vector.load %arg3[%c0_4, %c0_5] : memref<8x1xf32, #tpu.memory_space<vmem>>, vector<8x1xf32>
    %cst = arith.constant 0.000000e+00 : f32
    %4 = vector.broadcast %cst : f32 to vector<8x320xf32>
    %c0_6 = arith.constant 0 : index
    %c0_7 = arith.constant 0 : index
    %5 = vector.load %arg32[%c0_6, %c0_7] : memref<48x320xf32, #tpu.memory_space<vmem>>, vector<8x320xf32>
    tpu.vector_store %arg32[%c0_6, %c0_7], %4 {strides = array<i32>} : memref<48x320xf32, #tpu.memory_space<vmem>>, vector<8x320xf32>,
    %c0_8 = arith.constant 0 : index
    %c32 = arith.constant 32 : index
    %6 = vector.load %arg32[%c0_8, %c32] : memref<48x320xf32, #tpu.memory_space<vmem>>, vector<8x256xf32>
    tpu.vector_store %arg32[%c0_8, %c32], %1 {strides = array<i32>} : memref<48x320xf32, #tpu.memory_space<vmem>>, vector<8x256xf32>,
    %7 = tpu.iota {dimensions = array<i32: 1>} : vector<1x256xi32>
    %c15_i32 = arith.constant 15 : i32
    %8 = vector.broadcast %c15_i32 : i32 to vector<1x256xi32>
    %9 = arith.andi %7, %8 : vector<1x256xi32>
    %c0_9 = arith.constant 0 : index
    %c15 = arith.constant 15 : index
    %10 = vector.load %arg32[%c0_9, %c15] : memref<48x320xf32, #tpu.memory_space<vmem>>, vector<8x256xf32>
    %c0_i32 = arith.constant 0 : i32
    %11 = vector.broadcast %c0_i32 : i32 to vector<1x256xi32>
    %12 = arith.cmpi eq, %9, %11 : vector<1x256xi32>
    %cst_10 = arith.constant 0.000000e+00 : f32
    %13 = vector.shape_cast %12 : vector<1x256xi1> to vector<1x256xi1>
    %14 = vector.broadcast %13 : vector<1x256xi1> to vector<8x256xi1>
    %15 = vector.broadcast %cst_10 : f32 to vector<8x256xf32>
    %16 = arith.select %14, %15, %10 : vector<8x256xi1>, vector<8x256xf32>
    %c0_11 = arith.constant 0 : index
    %c16 = arith.constant 16 : index
    %17 = vector.load %arg32[%c0_11, %c16] : memref<48x320xf32, #tpu.memory_space<vmem>>, vector<8x256xf32>
    %c0_12 = arith.constant 0 : index
    %c17 = arith.constant 17 : index
    %18 = vector.load %arg32[%c0_12, %c17] : memref<48x320xf32, #tpu.memory_space<vmem>>, vector<8x256xf32>
    %c15_i32_13 = arith.constant 15 : i32
    %19 = vector.broadcast %c15_i32_13 : i32 to vector<1x256xi32>
    %20 = arith.cmpi eq, %9, %19 : vector<1x256xi32>
    %cst_14 = arith.constant 0.000000e+00 : f32
    %21 = vector.shape_cast %20 : vector<1x256xi1> to vector<1x256xi1>
    %22 = vector.broadcast %21 : vector<1x256xi1> to vector<8x256xi1>
    %23 = vector.broadcast %cst_14 : f32 to vector<8x256xf32>
    %24 = arith.select %22, %23, %18 : vector<8x256xi1>, vector<8x256xf32>
    %c0_15 = arith.constant 0 : index
    %c31 = arith.constant 31 : index
    %25 = vector.load %arg32[%c0_15, %c31] : memref<48x320xf32, #tpu.memory_space<vmem>>, vector<8x256xf32>
    %c0_i32_16 = arith.constant 0 : i32
    %26 = vector.broadcast %c0_i32_16 : i32 to vector<1x256xi32>
    %27 = arith.cmpi eq, %9, %26 : vector<1x256xi32>
    %cst_17 = arith.constant 0.000000e+00 : f32
    %28 = vector.shape_cast %27 : vector<1x256xi1> to vector<1x256xi1>
    %29 = vector.broadcast %28 : vector<1x256xi1> to vector<8x256xi1>
    %30 = vector.broadcast %cst_17 : f32 to vector<8x256xf32>
    %31 = arith.select %29, %30, %25 : vector<8x256xi1>, vector<8x256xf32>
    %c0_18 = arith.constant 0 : index
    %c32_19 = arith.constant 32 : index
    %32 = vector.load %arg32[%c0_18, %c32_19] : memref<48x320xf32, #tpu.memory_space<vmem>>, vector<8x256xf32>
    %c0_20 = arith.constant 0 : index
    %c33 = arith.constant 33 : index
    %33 = vector.load %arg32[%c0_20, %c33] : memref<48x320xf32, #tpu.memory_space<vmem>>, vector<8x256xf32>
    %c15_i32_21 = arith.constant 15 : i32
    %34 = vector.broadcast %c15_i32_21 : i32 to vector<1x256xi32>
    %35 = arith.cmpi eq, %9, %34 : vector<1x256xi32>
    %cst_22 = arith.constant 0.000000e+00 : f32
    %36 = vector.shape_cast %35 : vector<1x256xi1> to vector<1x256xi1>
    %37 = vector.broadcast %36 : vector<1x256xi1> to vector<8x256xi1>
    %38 = vector.broadcast %cst_22 : f32 to vector<8x256xf32>
    %39 = arith.select %37, %38, %33 : vector<8x256xi1>, vector<8x256xf32>
    %c0_23 = arith.constant 0 : index
    %c47 = arith.constant 47 : index
    %40 = vector.load %arg32[%c0_23, %c47] : memref<48x320xf32, #tpu.memory_space<vmem>>, vector<8x256xf32>
    %c0_i32_24 = arith.constant 0 : i32
    %41 = vector.broadcast %c0_i32_24 : i32 to vector<1x256xi32>
    %42 = arith.cmpi eq, %9, %41 : vector<1x256xi32>
    %cst_25 = arith.constant 0.000000e+00 : f32
    %43 = vector.shape_cast %42 : vector<1x256xi1> to vector<1x256xi1>
    %44 = vector.broadcast %43 : vector<1x256xi1> to vector<8x256xi1>
    %45 = vector.broadcast %cst_25 : f32 to vector<8x256xf32>
    %46 = arith.select %44, %45, %40 : vector<8x256xi1>, vector<8x256xf32>
    %c0_26 = arith.constant 0 : index
    %c48 = arith.constant 48 : index
    %47 = vector.load %arg32[%c0_26, %c48] : memref<48x320xf32, #tpu.memory_space<vmem>>, vector<8x256xf32>
    %c0_27 = arith.constant 0 : index
    %c49 = arith.constant 49 : index
    %48 = vector.load %arg32[%c0_27, %c49] : memref<48x320xf32, #tpu.memory_space<vmem>>, vector<8x256xf32>
    %c15_i32_28 = arith.constant 15 : i32
    %49 = vector.broadcast %c15_i32_28 : i32 to vector<1x256xi32>
    %50 = arith.cmpi eq, %9, %49 : vector<1x256xi32>
    %cst_29 = arith.constant 0.000000e+00 : f32
    %51 = vector.shape_cast %50 : vector<1x256xi1> to vector<1x256xi1>
    %52 = vector.broadcast %51 : vector<1x256xi1> to vector<8x256xi1>
    %53 = vector.broadcast %cst_29 : f32 to vector<8x256xf32>
    %54 = arith.select %52, %53, %48 : vector<8x256xi1>, vector<8x256xf32>
    %55 = tpu.concatenate %16, %17, %24, %31, %32, %39, %46, %47, %54 in 0 : vector<8x256xf32>, vector<8x256xf32>, vector<8x256xf32>, vector<8x256xf32>, vector<8x256xf32>, vector<8x256xf32>, vector<8x256xf32>, vector<8x256xf32>, vector<8x256xf32> -> vector<72x256xf32>
    %cst_30 = arith.constant dense<0.000000e+00> : vector<8x256xf32>
    %56 = tpu.matmul %2, %55, %cst_30 {dimension_numbers = #tpu.dot_dimension_numbers<[1], [0], [0], [1], [0, 0, 1, 1], [], []>} : vector<8x72xf32>, vector<72x256xf32>, vector<8x256xf32> -> vector<8x256xf32>
    %57 = vector.broadcast %3 : vector<8x1xf32> to vector<8x256xf32>
    %58 = arith.addf %56, %57 : vector<8x256xf32>
    %cst_31 = arith.constant 0.000000e+00 : f32
    %59 = vector.broadcast %cst_31 : f32 to vector<8x256xf32>
    %60 = arith.maximumf %58, %59 : vector<8x256xf32>
    %c0_32 = arith.constant 0 : index
    %c0_33 = arith.constant 0 : index
    %61 = vector.load %arg4[%c0_32, %c0_33] : memref<8x72xf32, #tpu.memory_space<vmem>>, vector<8x72xf32>
    %c0_34 = arith.constant 0 : index
    %c0_35 = arith.constant 0 : index
    %62 = vector.load %arg5[%c0_34, %c0_35] : memref<8x1xf32, #tpu.memory_space<vmem>>, vector<8x1xf32>
    %cst_36 = arith.constant 0.000000e+00 : f32
    %63 = vector.broadcast %cst_36 : f32 to vector<8x320xf32>
    %c0_37 = arith.constant 0 : index
    %c0_38 = arith.constant 0 : index
    %64 = vector.load %arg32[%c0_37, %c0_38] : memref<48x320xf32, #tpu.memory_space<vmem>>, vector<8x320xf32>
    tpu.vector_store %arg32[%c0_37, %c0_38], %63 {strides = array<i32>} : memref<48x320xf32, #tpu.memory_space<vmem>>, vector<8x320xf32>,
    %c0_39 = arith.constant 0 : index
    %c32_40 = arith.constant 32 : index
    %65 = vector.load %arg32[%c0_39, %c32_40] : memref<48x320xf32, #tpu.memory_space<vmem>>, vector<8x256xf32>
    tpu.vector_store %arg32[%c0_39, %c32_40], %60 {strides = array<i32>} : memref<48x320xf32, #tpu.memory_space<vmem>>, vector<8x256xf32>,
    %66 = tpu.iota {dimensions = array<i32: 1>} : vector<1x256xi32>
    %c15_i32_41 = arith.constant 15 : i32
    %67 = vector.broadcast %c15_i32_41 : i32 to vector<1x256xi32>
    %68 = arith.andi %66, %67 : vector<1x256xi32>
    %c0_42 = arith.constant 0 : index
    %c15_43 = arith.constant 15 : index
    %69 = vector.load %arg32[%c0_42, %c15_43] : memref<48x320xf32, #tpu.memory_space<vmem>>, vector<8x256xf32>
    %c0_i32_44 = arith.constant 0 : i32
    %70 = vector.broadcast %c0_i32_44 : i32 to vector<1x256xi32>
    %71 = arith.cmpi eq, %68, %70 : vector<1x256xi32>
    %cst_45 = arith.constant 0.000000e+00 : f32
    %72 = vector.shape_cast %71 : vector<1x256xi1> to vector<1x256xi1>
    %73 = vector.broadcast %72 : vector<1x256xi1> to vector<8x256xi1>
    %74 = vector.broadcast %cst_45 : f32 to vector<8x256xf32>
    %75 = arith.select %73, %74, %69 : vector<8x256xi1>, vector<8x256xf32>
    %c0_46 = arith.constant 0 : index
    %c16_47 = arith.constant 16 : index
    %76 = vector.load %arg32[%c0_46, %c16_47] : memref<48x320xf32, #tpu.memory_space<vmem>>, vector<8x256xf32>
    %c0_48 = arith.constant 0 : index
    %c17_49 = arith.constant 17 : index
    %77 = vector.load %arg32[%c0_48, %c17_49] : memref<48x320xf32, #tpu.memory_space<vmem>>, vector<8x256xf32>
    %c15_i32_50 = arith.constant 15 : i32
    %78 = vector.broadcast %c15_i32_50 : i32 to vector<1x256xi32>
    %79 = arith.cmpi eq, %68, %78 : vector<1x256xi32>
    %cst_51 = arith.constant 0.000000e+00 : f32
    %80 = vector.shape_cast %79 : vector<1x256xi1> to vector<1x256xi1>
    %81 = vector.broadcast %80 : vector<1x256xi1> to vector<8x256xi1>
    %82 = vector.broadcast %cst_51 : f32 to vector<8x256xf32>
    %83 = arith.select %81, %82, %77 : vector<8x256xi1>, vector<8x256xf32>
    %c0_52 = arith.constant 0 : index
    %c31_53 = arith.constant 31 : index
    %84 = vector.load %arg32[%c0_52, %c31_53] : memref<48x320xf32, #tpu.memory_space<vmem>>, vector<8x256xf32>
    %c0_i32_54 = arith.constant 0 : i32
    %85 = vector.broadcast %c0_i32_54 : i32 to vector<1x256xi32>
    %86 = arith.cmpi eq, %68, %85 : vector<1x256xi32>
    %cst_55 = arith.constant 0.000000e+00 : f32
    %87 = vector.shape_cast %86 : vector<1x256xi1> to vector<1x256xi1>
    %88 = vector.broadcast %87 : vector<1x256xi1> to vector<8x256xi1>
    %89 = vector.broadcast %cst_55 : f32 to vector<8x256xf32>
    %90 = arith.select %88, %89, %84 : vector<8x256xi1>, vector<8x256xf32>
    %c0_56 = arith.constant 0 : index
    %c32_57 = arith.constant 32 : index
    %91 = vector.load %arg32[%c0_56, %c32_57] : memref<48x320xf32, #tpu.memory_space<vmem>>, vector<8x256xf32>
    %c0_58 = arith.constant 0 : index
    %c33_59 = arith.constant 33 : index
    %92 = vector.load %arg32[%c0_58, %c33_59] : memref<48x320xf32, #tpu.memory_space<vmem>>, vector<8x256xf32>
    %c15_i32_60 = arith.constant 15 : i32
    %93 = vector.broadcast %c15_i32_60 : i32 to vector<1x256xi32>
    %94 = arith.cmpi eq, %68, %93 : vector<1x256xi32>
    %cst_61 = arith.constant 0.000000e+00 : f32
    %95 = vector.shape_cast %94 : vector<1x256xi1> to vector<1x256xi1>
    %96 = vector.broadcast %95 : vector<1x256xi1> to vector<8x256xi1>
    %97 = vector.broadcast %cst_61 : f32 to vector<8x256xf32>
    %98 = arith.select %96, %97, %92 : vector<8x256xi1>, vector<8x256xf32>
    %c0_62 = arith.constant 0 : index
    %c47_63 = arith.constant 47 : index
    %99 = vector.load %arg32[%c0_62, %c47_63] : memref<48x320xf32, #tpu.memory_space<vmem>>, vector<8x256xf32>
    %c0_i32_64 = arith.constant 0 : i32
    %100 = vector.broadcast %c0_i32_64 : i32 to vector<1x256xi32>
    %101 = arith.cmpi eq, %68, %100 : vector<1x256xi32>
    %cst_65 = arith.constant 0.000000e+00 : f32
    %102 = vector.shape_cast %101 : vector<1x256xi1> to vector<1x256xi1>
    %103 = vector.broadcast %102 : vector<1x256xi1> to vector<8x256xi1>
    %104 = vector.broadcast %cst_65 : f32 to vector<8x256xf32>
    %105 = arith.select %103, %104, %99 : vector<8x256xi1>, vector<8x256xf32>
    %c0_66 = arith.constant 0 : index
    %c48_67 = arith.constant 48 : index
    %106 = vector.load %arg32[%c0_66, %c48_67] : memref<48x320xf32, #tpu.memory_space<vmem>>, vector<8x256xf32>
    %c0_68 = arith.constant 0 : index
    %c49_69 = arith.constant 49 : index
    %107 = vector.load %arg32[%c0_68, %c49_69] : memref<48x320xf32, #tpu.memory_space<vmem>>, vector<8x256xf32>
    %c15_i32_70 = arith.constant 15 : i32
    %108 = vector.broadcast %c15_i32_70 : i32 to vector<1x256xi32>
    %109 = arith.cmpi eq, %68, %108 : vector<1x256xi32>
    %cst_71 = arith.constant 0.000000e+00 : f32
    %110 = vector.shape_cast %109 : vector<1x256xi1> to vector<1x256xi1>
    %111 = vector.broadcast %110 : vector<1x256xi1> to vector<8x256xi1>
    %112 = vector.broadcast %cst_71 : f32 to vector<8x256xf32>
    %113 = arith.select %111, %112, %107 : vector<8x256xi1>, vector<8x256xf32>
    %114 = tpu.concatenate %75, %76, %83, %90, %91, %98, %105, %106, %113 in 0 : vector<8x256xf32>, vector<8x256xf32>, vector<8x256xf32>, vector<8x256xf32>, vector<8x256xf32>, vector<8x256xf32>, vector<8x256xf32>, vector<8x256xf32>, vector<8x256xf32> -> vector<72x256xf32>
    %cst_72 = arith.constant dense<0.000000e+00> : vector<8x256xf32>
    %115 = tpu.matmul %61, %114, %cst_72 {dimension_numbers = #tpu.dot_dimension_numbers<[1], [0], [0], [1], [0, 0, 1, 1], [], []>} : vector<8x72xf32>, vector<72x256xf32>, vector<8x256xf32> -> vector<8x256xf32>
    %116 = vector.broadcast %62 : vector<8x1xf32> to vector<8x256xf32>
    %117 = arith.addf %115, %116 : vector<8x256xf32>
    %cst_73 = arith.constant 0.000000e+00 : f32
    %118 = vector.broadcast %cst_73 : f32 to vector<8x256xf32>
    %119 = arith.maximumf %117, %118 : vector<8x256xf32>
    %c0_74 = arith.constant 0 : index
    %c0_75 = arith.constant 0 : index
    %c0_76 = arith.constant 0 : index
    %120 = vector.load %arg28[%c0_74, %c0_75, %c0_76] : memref<1x8x256xf32, #tpu.memory_space<vmem>>, vector<1x8x256xf32>
    %121 = vector.shape_cast %120 : vector<1x8x256xf32> to vector<8x256xf32>
    %122 = vector.shape_cast %119 : vector<8x256xf32> to vector<1x8x256xf32>
    tpu.vector_store %arg28[%c0_74, %c0_75, %c0_76], %122 {strides = array<i32>} : memref<1x8x256xf32, #tpu.memory_space<vmem>>, vector<1x8x256xf32>,
    %c0_77 = arith.constant 0 : index
    %c0_78 = arith.constant 0 : index
    %123 = vector.load %arg24[%c0_77, %c0_78] : memref<256x256xf32, #tpu.memory_space<vmem>>, vector<256x256xf32>
    %cst_79 = arith.constant dense<0.000000e+00> : vector<8x256xf32>
    %124 = tpu.matmul %119, %123, %cst_79 {dimension_numbers = #tpu.dot_dimension_numbers<[1], [0], [0], [1], [0, 0, 1, 1], [], []>} : vector<8x256xf32>, vector<256x256xf32>, vector<8x256xf32> -> vector<8x256xf32>
    %125 = vector.extract_strided_slice %124 {offsets = [0, 0], sizes = [8, 64], strides = [1, 1]} : vector<8x256xf32> to vector<8x64xf32>
    %126 = vector.extract_strided_slice %124 {offsets = [0, 64], sizes = [8, 64], strides = [1, 1]} : vector<8x256xf32> to vector<8x64xf32>
    %127 = arith.maximumf %125, %126 : vector<8x64xf32>
    %128 = vector.extract_strided_slice %124 {offsets = [0, 128], sizes = [8, 64], strides = [1, 1]} : vector<8x256xf32> to vector<8x64xf32>
    %129 = vector.extract_strided_slice %124 {offsets = [0, 192], sizes = [8, 64], strides = [1, 1]} : vector<8x256xf32> to vector<8x64xf32>
    %130 = arith.maximumf %128, %129 : vector<8x64xf32>
    %131 = arith.maximumf %127, %130 : vector<8x64xf32>
    %c0_80 = arith.constant 0 : index
    %c0_81 = arith.constant 0 : index
    %132 = vector.load %arg6[%c0_80, %c0_81] : memref<16x72xf32, #tpu.memory_space<vmem>>, vector<16x72xf32>
    %c0_82 = arith.constant 0 : index
    %c0_83 = arith.constant 0 : index
    %133 = vector.load %arg7[%c0_82, %c0_83] : memref<16x1xf32, #tpu.memory_space<vmem>>, vector<16x1xf32>
    %cst_84 = arith.constant 0.000000e+00 : f32
    %134 = vector.broadcast %cst_84 : f32 to vector<8x320xf32>
    %c0_85 = arith.constant 0 : index
    %c0_86 = arith.constant 0 : index
    %135 = vector.load %arg32[%c0_85, %c0_86] : memref<48x320xf32, #tpu.memory_space<vmem>>, vector<8x320xf32>
    tpu.vector_store %arg32[%c0_85, %c0_86], %134 {strides = array<i32>} : memref<48x320xf32, #tpu.memory_space<vmem>>, vector<8x320xf32>,
    %c0_87 = arith.constant 0 : index
    %c32_88 = arith.constant 32 : index
    %136 = vector.load %arg32[%c0_87, %c32_88] : memref<48x320xf32, #tpu.memory_space<vmem>>, vector<8x64xf32>
    tpu.vector_store %arg32[%c0_87, %c32_88], %131 {strides = array<i32>} : memref<48x320xf32, #tpu.memory_space<vmem>>, vector<8x64xf32>,
    %137 = tpu.iota {dimensions = array<i32: 1>} : vector<1x64xi32>
    %c7_i32 = arith.constant 7 : i32
    %138 = vector.broadcast %c7_i32 : i32 to vector<1x64xi32>
    %139 = arith.andi %137, %138 : vector<1x64xi32>
    %c0_89 = arith.constant 0 : index
    %c23 = arith.constant 23 : index
    %140 = vector.load %arg32[%c0_89, %c23] : memref<48x320xf32, #tpu.memory_space<vmem>>, vector<8x64xf32>
    %c0_i32_90 = arith.constant 0 : i32
    %141 = vector.broadcast %c0_i32_90 : i32 to vector<1x64xi32>
    %142 = arith.cmpi eq, %139, %141 : vector<1x64xi32>
    %cst_91 = arith.constant 0.000000e+00 : f32
    %143 = vector.shape_cast %142 : vector<1x64xi1> to vector<1x64xi1>
    %144 = vector.broadcast %143 : vector<1x64xi1> to vector<8x64xi1>
    %145 = vector.broadcast %cst_91 : f32 to vector<8x64xf32>
    %146 = arith.select %144, %145, %140 : vector<8x64xi1>, vector<8x64xf32>
    %c0_92 = arith.constant 0 : index
    %c24 = arith.constant 24 : index
    %147 = vector.load %arg32[%c0_92, %c24] : memref<48x320xf32, #tpu.memory_space<vmem>>, vector<8x64xf32>
    %c0_93 = arith.constant 0 : index
    %c25 = arith.constant 25 : index
    %148 = vector.load %arg32[%c0_93, %c25] : memref<48x320xf32, #tpu.memory_space<vmem>>, vector<8x64xf32>
    %c7_i32_94 = arith.constant 7 : i32
    %149 = vector.broadcast %c7_i32_94 : i32 to vector<1x64xi32>
    %150 = arith.cmpi eq, %139, %149 : vector<1x64xi32>
    %cst_95 = arith.constant 0.000000e+00 : f32
    %151 = vector.shape_cast %150 : vector<1x64xi1> to vector<1x64xi1>
    %152 = vector.broadcast %151 : vector<1x64xi1> to vector<8x64xi1>
    %153 = vector.broadcast %cst_95 : f32 to vector<8x64xf32>
    %154 = arith.select %152, %153, %148 : vector<8x64xi1>, vector<8x64xf32>
    %c0_96 = arith.constant 0 : index
    %c31_97 = arith.constant 31 : index
    %155 = vector.load %arg32[%c0_96, %c31_97] : memref<48x320xf32, #tpu.memory_space<vmem>>, vector<8x64xf32>
    %c0_i32_98 = arith.constant 0 : i32
    %156 = vector.broadcast %c0_i32_98 : i32 to vector<1x64xi32>
    %157 = arith.cmpi eq, %139, %156 : vector<1x64xi32>
    %cst_99 = arith.constant 0.000000e+00 : f32
    %158 = vector.shape_cast %157 : vector<1x64xi1> to vector<1x64xi1>
    %159 = vector.broadcast %158 : vector<1x64xi1> to vector<8x64xi1>
    %160 = vector.broadcast %cst_99 : f32 to vector<8x64xf32>
    %161 = arith.select %159, %160, %155 : vector<8x64xi1>, vector<8x64xf32>
    %c0_100 = arith.constant 0 : index
    %c32_101 = arith.constant 32 : index
    %162 = vector.load %arg32[%c0_100, %c32_101] : memref<48x320xf32, #tpu.memory_space<vmem>>, vector<8x64xf32>
    %c0_102 = arith.constant 0 : index
    %c33_103 = arith.constant 33 : index
    %163 = vector.load %arg32[%c0_102, %c33_103] : memref<48x320xf32, #tpu.memory_space<vmem>>, vector<8x64xf32>
    %c7_i32_104 = arith.constant 7 : i32
    %164 = vector.broadcast %c7_i32_104 : i32 to vector<1x64xi32>
    %165 = arith.cmpi eq, %139, %164 : vector<1x64xi32>
    %cst_105 = arith.constant 0.000000e+00 : f32
    %166 = vector.shape_cast %165 : vector<1x64xi1> to vector<1x64xi1>
    %167 = vector.broadcast %166 : vector<1x64xi1> to vector<8x64xi1>
    %168 = vector.broadcast %cst_105 : f32 to vector<8x64xf32>
    %169 = arith.select %167, %168, %163 : vector<8x64xi1>, vector<8x64xf32>
    %c0_106 = arith.constant 0 : index
    %c39 = arith.constant 39 : index
    %170 = vector.load %arg32[%c0_106, %c39] : memref<48x320xf32, #tpu.memory_space<vmem>>, vector<8x64xf32>
    %c0_i32_107 = arith.constant 0 : i32
    %171 = vector.broadcast %c0_i32_107 : i32 to vector<1x64xi32>
    %172 = arith.cmpi eq, %139, %171 : vector<1x64xi32>
    %cst_108 = arith.constant 0.000000e+00 : f32
    %173 = vector.shape_cast %172 : vector<1x64xi1> to vector<1x64xi1>
    %174 = vector.broadcast %173 : vector<1x64xi1> to vector<8x64xi1>
    %175 = vector.broadcast %cst_108 : f32 to vector<8x64xf32>
    %176 = arith.select %174, %175, %170 : vector<8x64xi1>, vector<8x64xf32>
    %c0_109 = arith.constant 0 : index
    %c40 = arith.constant 40 : index
    %177 = vector.load %arg32[%c0_109, %c40] : memref<48x320xf32, #tpu.memory_space<vmem>>, vector<8x64xf32>
    %c0_110 = arith.constant 0 : index
    %c41 = arith.constant 41 : index
    %178 = vector.load %arg32[%c0_110, %c41] : memref<48x320xf32, #tpu.memory_space<vmem>>, vector<8x64xf32>
    %c7_i32_111 = arith.constant 7 : i32
    %179 = vector.broadcast %c7_i32_111 : i32 to vector<1x64xi32>
    %180 = arith.cmpi eq, %139, %179 : vector<1x64xi32>
    %cst_112 = arith.constant 0.000000e+00 : f32
    %181 = vector.shape_cast %180 : vector<1x64xi1> to vector<1x64xi1>
    %182 = vector.broadcast %181 : vector<1x64xi1> to vector<8x64xi1>
    %183 = vector.broadcast %cst_112 : f32 to vector<8x64xf32>
    %184 = arith.select %182, %183, %178 : vector<8x64xi1>, vector<8x64xf32>
    %185 = tpu.concatenate %146, %147, %154, %161, %162, %169, %176, %177, %184 in 0 : vector<8x64xf32>, vector<8x64xf32>, vector<8x64xf32>, vector<8x64xf32>, vector<8x64xf32>, vector<8x64xf32>, vector<8x64xf32>, vector<8x64xf32>, vector<8x64xf32> -> vector<72x64xf32>
    %cst_113 = arith.constant dense<0.000000e+00> : vector<16x64xf32>
    %186 = tpu.matmul %132, %185, %cst_113 {dimension_numbers = #tpu.dot_dimension_numbers<[1], [0], [0], [1], [0, 0, 1, 1], [], []>} : vector<16x72xf32>, vector<72x64xf32>, vector<16x64xf32> -> vector<16x64xf32>
    %187 = vector.broadcast %133 : vector<16x1xf32> to vector<16x64xf32>
    %188 = arith.addf %186, %187 : vector<16x64xf32>
    %cst_114 = arith.constant 0.000000e+00 : f32
    %189 = vector.broadcast %cst_114 : f32 to vector<16x64xf32>
    %190 = arith.maximumf %188, %189 : vector<16x64xf32>
    %c0_115 = arith.constant 0 : index
    %c0_116 = arith.constant 0 : index
    %191 = vector.load %arg8[%c0_115, %c0_116] : memref<16x144xf32, #tpu.memory_space<vmem>>, vector<16x144xf32>
    %c0_117 = arith.constant 0 : index
    %c0_118 = arith.constant 0 : index
    %192 = vector.load %arg9[%c0_117, %c0_118] : memref<16x1xf32, #tpu.memory_space<vmem>>, vector<16x1xf32>
    %cst_119 = arith.constant 0.000000e+00 : f32
    %193 = vector.broadcast %cst_119 : f32 to vector<16x320xf32>
    %c0_120 = arith.constant 0 : index
    %c0_121 = arith.constant 0 : index
    %194 = vector.load %arg32[%c0_120, %c0_121] : memref<48x320xf32, #tpu.memory_space<vmem>>, vector<16x320xf32>
    tpu.vector_store %arg32[%c0_120, %c0_121], %193 {strides = array<i32>} : memref<48x320xf32, #tpu.memory_space<vmem>>, vector<16x320xf32>,
    %c0_122 = arith.constant 0 : index
    %c32_123 = arith.constant 32 : index
    %195 = vector.load %arg32[%c0_122, %c32_123] : memref<48x320xf32, #tpu.memory_space<vmem>>, vector<16x64xf32>
    tpu.vector_store %arg32[%c0_122, %c32_123], %190 {strides = array<i32>} : memref<48x320xf32, #tpu.memory_space<vmem>>, vector<16x64xf32>,
    %196 = tpu.iota {dimensions = array<i32: 1>} : vector<1x64xi32>
    %c7_i32_124 = arith.constant 7 : i32
    %197 = vector.broadcast %c7_i32_124 : i32 to vector<1x64xi32>
    %198 = arith.andi %196, %197 : vector<1x64xi32>
    %c0_125 = arith.constant 0 : index
    %c23_126 = arith.constant 23 : index
    %199 = vector.load %arg32[%c0_125, %c23_126] : memref<48x320xf32, #tpu.memory_space<vmem>>, vector<16x64xf32>
    %c0_i32_127 = arith.constant 0 : i32
    %200 = vector.broadcast %c0_i32_127 : i32 to vector<1x64xi32>
    %201 = arith.cmpi eq, %198, %200 : vector<1x64xi32>
    %cst_128 = arith.constant 0.000000e+00 : f32
    %202 = vector.shape_cast %201 : vector<1x64xi1> to vector<1x64xi1>
    %203 = vector.broadcast %202 : vector<1x64xi1> to vector<16x64xi1>
    %204 = vector.broadcast %cst_128 : f32 to vector<16x64xf32>
    %205 = arith.select %203, %204, %199 : vector<16x64xi1>, vector<16x64xf32>
    %c0_129 = arith.constant 0 : index
    %c24_130 = arith.constant 24 : index
    %206 = vector.load %arg32[%c0_129, %c24_130] : memref<48x320xf32, #tpu.memory_space<vmem>>, vector<16x64xf32>
    %c0_131 = arith.constant 0 : index
    %c25_132 = arith.constant 25 : index
    %207 = vector.load %arg32[%c0_131, %c25_132] : memref<48x320xf32, #tpu.memory_space<vmem>>, vector<16x64xf32>
    %c7_i32_133 = arith.constant 7 : i32
    %208 = vector.broadcast %c7_i32_133 : i32 to vector<1x64xi32>
    %209 = arith.cmpi eq, %198, %208 : vector<1x64xi32>
    %cst_134 = arith.constant 0.000000e+00 : f32
    %210 = vector.shape_cast %209 : vector<1x64xi1> to vector<1x64xi1>
    %211 = vector.broadcast %210 : vector<1x64xi1> to vector<16x64xi1>
    %212 = vector.broadcast %cst_134 : f32 to vector<16x64xf32>
    %213 = arith.select %211, %212, %207 : vector<16x64xi1>, vector<16x64xf32>
    %c0_135 = arith.constant 0 : index
    %c31_136 = arith.constant 31 : index
    %214 = vector.load %arg32[%c0_135, %c31_136] : memref<48x320xf32, #tpu.memory_space<vmem>>, vector<16x64xf32>
    %c0_i32_137 = arith.constant 0 : i32
    %215 = vector.broadcast %c0_i32_137 : i32 to vector<1x64xi32>
    %216 = arith.cmpi eq, %198, %215 : vector<1x64xi32>
    %cst_138 = arith.constant 0.000000e+00 : f32
    %217 = vector.shape_cast %216 : vector<1x64xi1> to vector<1x64xi1>
    %218 = vector.broadcast %217 : vector<1x64xi1> to vector<16x64xi1>
    %219 = vector.broadcast %cst_138 : f32 to vector<16x64xf32>
    %220 = arith.select %218, %219, %214 : vector<16x64xi1>, vector<16x64xf32>
    %c0_139 = arith.constant 0 : index
    %c32_140 = arith.constant 32 : index
    %221 = vector.load %arg32[%c0_139, %c32_140] : memref<48x320xf32, #tpu.memory_space<vmem>>, vector<16x64xf32>
    %c0_141 = arith.constant 0 : index
    %c33_142 = arith.constant 33 : index
    %222 = vector.load %arg32[%c0_141, %c33_142] : memref<48x320xf32, #tpu.memory_space<vmem>>, vector<16x64xf32>
    %c7_i32_143 = arith.constant 7 : i32
    %223 = vector.broadcast %c7_i32_143 : i32 to vector<1x64xi32>
    %224 = arith.cmpi eq, %198, %223 : vector<1x64xi32>
    %cst_144 = arith.constant 0.000000e+00 : f32
    %225 = vector.shape_cast %224 : vector<1x64xi1> to vector<1x64xi1>
    %226 = vector.broadcast %225 : vector<1x64xi1> to vector<16x64xi1>
    %227 = vector.broadcast %cst_144 : f32 to vector<16x64xf32>
    %228 = arith.select %226, %227, %222 : vector<16x64xi1>, vector<16x64xf32>
    %c0_145 = arith.constant 0 : index
    %c39_146 = arith.constant 39 : index
    %229 = vector.load %arg32[%c0_145, %c39_146] : memref<48x320xf32, #tpu.memory_space<vmem>>, vector<16x64xf32>
    %c0_i32_147 = arith.constant 0 : i32
    %230 = vector.broadcast %c0_i32_147 : i32 to vector<1x64xi32>
    %231 = arith.cmpi eq, %198, %230 : vector<1x64xi32>
    %cst_148 = arith.constant 0.000000e+00 : f32
    %232 = vector.shape_cast %231 : vector<1x64xi1> to vector<1x64xi1>
    %233 = vector.broadcast %232 : vector<1x64xi1> to vector<16x64xi1>
    %234 = vector.broadcast %cst_148 : f32 to vector<16x64xf32>
    %235 = arith.select %233, %234, %229 : vector<16x64xi1>, vector<16x64xf32>
    %c0_149 = arith.constant 0 : index
    %c40_150 = arith.constant 40 : index
    %236 = vector.load %arg32[%c0_149, %c40_150] : memref<48x320xf32, #tpu.memory_space<vmem>>, vector<16x64xf32>
    %c0_151 = arith.constant 0 : index
    %c41_152 = arith.constant 41 : index
    %237 = vector.load %arg32[%c0_151, %c41_152] : memref<48x320xf32, #tpu.memory_space<vmem>>, vector<16x64xf32>
    %c7_i32_153 = arith.constant 7 : i32
    %238 = vector.broadcast %c7_i32_153 : i32 to vector<1x64xi32>
    %239 = arith.cmpi eq, %198, %238 : vector<1x64xi32>
    %cst_154 = arith.constant 0.000000e+00 : f32
    %240 = vector.shape_cast %239 : vector<1x64xi1> to vector<1x64xi1>
    %241 = vector.broadcast %240 : vector<1x64xi1> to vector<16x64xi1>
    %242 = vector.broadcast %cst_154 : f32 to vector<16x64xf32>
    %243 = arith.select %241, %242, %237 : vector<16x64xi1>, vector<16x64xf32>
    %244 = tpu.concatenate %205, %206, %213, %220, %221, %228, %235, %236, %243 in 0 : vector<16x64xf32>, vector<16x64xf32>, vector<16x64xf32>, vector<16x64xf32>, vector<16x64xf32>, vector<16x64xf32>, vector<16x64xf32>, vector<16x64xf32>, vector<16x64xf32> -> vector<144x64xf32>
    %cst_155 = arith.constant dense<0.000000e+00> : vector<16x64xf32>
    %245 = tpu.matmul %191, %244, %cst_155 {dimension_numbers = #tpu.dot_dimension_numbers<[1], [0], [0], [1], [0, 0, 1, 1], [], []>} : vector<16x144xf32>, vector<144x64xf32>, vector<16x64xf32> -> vector<16x64xf32>
    %246 = vector.broadcast %192 : vector<16x1xf32> to vector<16x64xf32>
    %247 = arith.addf %245, %246 : vector<16x64xf32>
    %cst_156 = arith.constant 0.000000e+00 : f32
    %248 = vector.broadcast %cst_156 : f32 to vector<16x64xf32>
    %249 = arith.maximumf %247, %248 : vector<16x64xf32>
    %c0_157 = arith.constant 0 : index
    %c0_158 = arith.constant 0 : index
    %c0_159 = arith.constant 0 : index
    %250 = vector.load %arg29[%c0_157, %c0_158, %c0_159] : memref<1x16x64xf32, #tpu.memory_space<vmem>>, vector<1x16x64xf32>
    %251 = vector.shape_cast %250 : vector<1x16x64xf32> to vector<16x64xf32>
    %252 = vector.shape_cast %249 : vector<16x64xf32> to vector<1x16x64xf32>
    tpu.vector_store %arg29[%c0_157, %c0_158, %c0_159], %252 {strides = array<i32>} : memref<1x16x64xf32, #tpu.memory_space<vmem>>, vector<1x16x64xf32>,
    %c0_160 = arith.constant 0 : index
    %c0_161 = arith.constant 0 : index
    %253 = vector.load %arg25[%c0_160, %c0_161] : memref<64x64xf32, #tpu.memory_space<vmem>>, vector<64x64xf32>
    %cst_162 = arith.constant dense<0.000000e+00> : vector<16x64xf32>
    %254 = tpu.matmul %249, %253, %cst_162 {dimension_numbers = #tpu.dot_dimension_numbers<[1], [0], [0], [1], [0, 0, 1, 1], [], []>} : vector<16x64xf32>, vector<64x64xf32>, vector<16x64xf32> -> vector<16x64xf32>
    %255 = vector.extract_strided_slice %254 {offsets = [0, 0], sizes = [16, 16], strides = [1, 1]} : vector<16x64xf32> to vector<16x16xf32>
    %256 = vector.extract_strided_slice %254 {offsets = [0, 16], sizes = [16, 16], strides = [1, 1]} : vector<16x64xf32> to vector<16x16xf32>
    %257 = arith.maximumf %255, %256 : vector<16x16xf32>
    %258 = vector.extract_strided_slice %254 {offsets = [0, 32], sizes = [16, 16], strides = [1, 1]} : vector<16x64xf32> to vector<16x16xf32>
    %259 = vector.extract_strided_slice %254 {offsets = [0, 48], sizes = [16, 16], strides = [1, 1]} : vector<16x64xf32> to vector<16x16xf32>
    %260 = arith.maximumf %258, %259 : vector<16x16xf32>
    %261 = arith.maximumf %257, %260 : vector<16x16xf32>
    %c0_163 = arith.constant 0 : index
    %c0_164 = arith.constant 0 : index
    %262 = vector.load %arg10[%c0_163, %c0_164] : memref<32x144xf32, #tpu.memory_space<vmem>>, vector<32x144xf32>
    %c0_165 = arith.constant 0 : index
    %c0_166 = arith.constant 0 : index
    %263 = vector.load %arg11[%c0_165, %c0_166] : memref<32x1xf32, #tpu.memory_space<vmem>>, vector<32x1xf32>
    %cst_167 = arith.constant 0.000000e+00 : f32
    %264 = vector.broadcast %cst_167 : f32 to vector<16x320xf32>
    %c0_168 = arith.constant 0 : index
    %c0_169 = arith.constant 0 : index
    %265 = vector.load %arg32[%c0_168, %c0_169] : memref<48x320xf32, #tpu.memory_space<vmem>>, vector<16x320xf32>
    tpu.vector_store %arg32[%c0_168, %c0_169], %264 {strides = array<i32>} : memref<48x320xf32, #tpu.memory_space<vmem>>, vector<16x320xf32>,
    %c0_170 = arith.constant 0 : index
    %c32_171 = arith.constant 32 : index
    %266 = vector.load %arg32[%c0_170, %c32_171] : memref<48x320xf32, #tpu.memory_space<vmem>>, vector<16x16xf32>
    tpu.vector_store %arg32[%c0_170, %c32_171], %261 {strides = array<i32>} : memref<48x320xf32, #tpu.memory_space<vmem>>, vector<16x16xf32>,
    %267 = tpu.iota {dimensions = array<i32: 1>} : vector<1x16xi32>
    %c3_i32 = arith.constant 3 : i32
    %268 = vector.broadcast %c3_i32 : i32 to vector<1x16xi32>
    %269 = arith.andi %267, %268 : vector<1x16xi32>
    %c0_172 = arith.constant 0 : index
    %c27 = arith.constant 27 : index
    %270 = vector.load %arg32[%c0_172, %c27] : memref<48x320xf32, #tpu.memory_space<vmem>>, vector<16x16xf32>
    %c0_i32_173 = arith.constant 0 : i32
    %271 = vector.broadcast %c0_i32_173 : i32 to vector<1x16xi32>
    %272 = arith.cmpi eq, %269, %271 : vector<1x16xi32>
    %cst_174 = arith.constant 0.000000e+00 : f32
    %273 = vector.shape_cast %272 : vector<1x16xi1> to vector<1x16xi1>
    %274 = vector.broadcast %273 : vector<1x16xi1> to vector<16x16xi1>
    %275 = vector.broadcast %cst_174 : f32 to vector<16x16xf32>
    %276 = arith.select %274, %275, %270 : vector<16x16xi1>, vector<16x16xf32>
    %c0_175 = arith.constant 0 : index
    %c28 = arith.constant 28 : index
    %277 = vector.load %arg32[%c0_175, %c28] : memref<48x320xf32, #tpu.memory_space<vmem>>, vector<16x16xf32>
    %c0_176 = arith.constant 0 : index
    %c29 = arith.constant 29 : index
    %278 = vector.load %arg32[%c0_176, %c29] : memref<48x320xf32, #tpu.memory_space<vmem>>, vector<16x16xf32>
    %c3_i32_177 = arith.constant 3 : i32
    %279 = vector.broadcast %c3_i32_177 : i32 to vector<1x16xi32>
    %280 = arith.cmpi eq, %269, %279 : vector<1x16xi32>
    %cst_178 = arith.constant 0.000000e+00 : f32
    %281 = vector.shape_cast %280 : vector<1x16xi1> to vector<1x16xi1>
    %282 = vector.broadcast %281 : vector<1x16xi1> to vector<16x16xi1>
    %283 = vector.broadcast %cst_178 : f32 to vector<16x16xf32>
    %284 = arith.select %282, %283, %278 : vector<16x16xi1>, vector<16x16xf32>
    %c0_179 = arith.constant 0 : index
    %c31_180 = arith.constant 31 : index
    %285 = vector.load %arg32[%c0_179, %c31_180] : memref<48x320xf32, #tpu.memory_space<vmem>>, vector<16x16xf32>
    %c0_i32_181 = arith.constant 0 : i32
    %286 = vector.broadcast %c0_i32_181 : i32 to vector<1x16xi32>
    %287 = arith.cmpi eq, %269, %286 : vector<1x16xi32>
    %cst_182 = arith.constant 0.000000e+00 : f32
    %288 = vector.shape_cast %287 : vector<1x16xi1> to vector<1x16xi1>
    %289 = vector.broadcast %288 : vector<1x16xi1> to vector<16x16xi1>
    %290 = vector.broadcast %cst_182 : f32 to vector<16x16xf32>
    %291 = arith.select %289, %290, %285 : vector<16x16xi1>, vector<16x16xf32>
    %c0_183 = arith.constant 0 : index
    %c32_184 = arith.constant 32 : index
    %292 = vector.load %arg32[%c0_183, %c32_184] : memref<48x320xf32, #tpu.memory_space<vmem>>, vector<16x16xf32>
    %c0_185 = arith.constant 0 : index
    %c33_186 = arith.constant 33 : index
    %293 = vector.load %arg32[%c0_185, %c33_186] : memref<48x320xf32, #tpu.memory_space<vmem>>, vector<16x16xf32>
    %c3_i32_187 = arith.constant 3 : i32
    %294 = vector.broadcast %c3_i32_187 : i32 to vector<1x16xi32>
    %295 = arith.cmpi eq, %269, %294 : vector<1x16xi32>
    %cst_188 = arith.constant 0.000000e+00 : f32
    %296 = vector.shape_cast %295 : vector<1x16xi1> to vector<1x16xi1>
    %297 = vector.broadcast %296 : vector<1x16xi1> to vector<16x16xi1>
    %298 = vector.broadcast %cst_188 : f32 to vector<16x16xf32>
    %299 = arith.select %297, %298, %293 : vector<16x16xi1>, vector<16x16xf32>
    %c0_189 = arith.constant 0 : index
    %c35 = arith.constant 35 : index
    %300 = vector.load %arg32[%c0_189, %c35] : memref<48x320xf32, #tpu.memory_space<vmem>>, vector<16x16xf32>
    %c0_i32_190 = arith.constant 0 : i32
    %301 = vector.broadcast %c0_i32_190 : i32 to vector<1x16xi32>
    %302 = arith.cmpi eq, %269, %301 : vector<1x16xi32>
    %cst_191 = arith.constant 0.000000e+00 : f32
    %303 = vector.shape_cast %302 : vector<1x16xi1> to vector<1x16xi1>
    %304 = vector.broadcast %303 : vector<1x16xi1> to vector<16x16xi1>
    %305 = vector.broadcast %cst_191 : f32 to vector<16x16xf32>
    %306 = arith.select %304, %305, %300 : vector<16x16xi1>, vector<16x16xf32>
    %c0_192 = arith.constant 0 : index
    %c36 = arith.constant 36 : index
    %307 = vector.load %arg32[%c0_192, %c36] : memref<48x320xf32, #tpu.memory_space<vmem>>, vector<16x16xf32>
    %c0_193 = arith.constant 0 : index
    %c37 = arith.constant 37 : index
    %308 = vector.load %arg32[%c0_193, %c37] : memref<48x320xf32, #tpu.memory_space<vmem>>, vector<16x16xf32>
    %c3_i32_194 = arith.constant 3 : i32
    %309 = vector.broadcast %c3_i32_194 : i32 to vector<1x16xi32>
    %310 = arith.cmpi eq, %269, %309 : vector<1x16xi32>
    %cst_195 = arith.constant 0.000000e+00 : f32
    %311 = vector.shape_cast %310 : vector<1x16xi1> to vector<1x16xi1>
    %312 = vector.broadcast %311 : vector<1x16xi1> to vector<16x16xi1>
    %313 = vector.broadcast %cst_195 : f32 to vector<16x16xf32>
    %314 = arith.select %312, %313, %308 : vector<16x16xi1>, vector<16x16xf32>
    %315 = tpu.concatenate %276, %277, %284, %291, %292, %299, %306, %307, %314 in 0 : vector<16x16xf32>, vector<16x16xf32>, vector<16x16xf32>, vector<16x16xf32>, vector<16x16xf32>, vector<16x16xf32>, vector<16x16xf32>, vector<16x16xf32>, vector<16x16xf32> -> vector<144x16xf32>
    %cst_196 = arith.constant dense<0.000000e+00> : vector<32x16xf32>
    %316 = tpu.matmul %262, %315, %cst_196 {dimension_numbers = #tpu.dot_dimension_numbers<[1], [0], [0], [1], [0, 0, 1, 1], [], []>} : vector<32x144xf32>, vector<144x16xf32>, vector<32x16xf32> -> vector<32x16xf32>
    %317 = vector.broadcast %263 : vector<32x1xf32> to vector<32x16xf32>
    %318 = arith.addf %316, %317 : vector<32x16xf32>
    %cst_197 = arith.constant 0.000000e+00 : f32
    %319 = vector.broadcast %cst_197 : f32 to vector<32x16xf32>
    %320 = arith.maximumf %318, %319 : vector<32x16xf32>
    %c0_198 = arith.constant 0 : index
    %c0_199 = arith.constant 0 : index
    %321 = vector.load %arg12[%c0_198, %c0_199] : memref<32x288xf32, #tpu.memory_space<vmem>>, vector<32x288xf32>
    %c0_200 = arith.constant 0 : index
    %c0_201 = arith.constant 0 : index
    %322 = vector.load %arg13[%c0_200, %c0_201] : memref<32x1xf32, #tpu.memory_space<vmem>>, vector<32x1xf32>
    %cst_202 = arith.constant 0.000000e+00 : f32
    %323 = vector.broadcast %cst_202 : f32 to vector<32x320xf32>
    %c0_203 = arith.constant 0 : index
    %c0_204 = arith.constant 0 : index
    %324 = vector.load %arg32[%c0_203, %c0_204] : memref<48x320xf32, #tpu.memory_space<vmem>>, vector<32x320xf32>
    tpu.vector_store %arg32[%c0_203, %c0_204], %323 {strides = array<i32>} : memref<48x320xf32, #tpu.memory_space<vmem>>, vector<32x320xf32>,
    %c0_205 = arith.constant 0 : index
    %c32_206 = arith.constant 32 : index
    %325 = vector.load %arg32[%c0_205, %c32_206] : memref<48x320xf32, #tpu.memory_space<vmem>>, vector<32x16xf32>
    tpu.vector_store %arg32[%c0_205, %c32_206], %320 {strides = array<i32>} : memref<48x320xf32, #tpu.memory_space<vmem>>, vector<32x16xf32>,
    %326 = tpu.iota {dimensions = array<i32: 1>} : vector<1x16xi32>
    %c3_i32_207 = arith.constant 3 : i32
    %327 = vector.broadcast %c3_i32_207 : i32 to vector<1x16xi32>
    %328 = arith.andi %326, %327 : vector<1x16xi32>
    %c0_208 = arith.constant 0 : index
    %c27_209 = arith.constant 27 : index
    %329 = vector.load %arg32[%c0_208, %c27_209] : memref<48x320xf32, #tpu.memory_space<vmem>>, vector<32x16xf32>
    %c0_i32_210 = arith.constant 0 : i32
    %330 = vector.broadcast %c0_i32_210 : i32 to vector<1x16xi32>
    %331 = arith.cmpi eq, %328, %330 : vector<1x16xi32>
    %cst_211 = arith.constant 0.000000e+00 : f32
    %332 = vector.shape_cast %331 : vector<1x16xi1> to vector<1x16xi1>
    %333 = vector.broadcast %332 : vector<1x16xi1> to vector<32x16xi1>
    %334 = vector.broadcast %cst_211 : f32 to vector<32x16xf32>
    %335 = arith.select %333, %334, %329 : vector<32x16xi1>, vector<32x16xf32>
    %c0_212 = arith.constant 0 : index
    %c28_213 = arith.constant 28 : index
    %336 = vector.load %arg32[%c0_212, %c28_213] : memref<48x320xf32, #tpu.memory_space<vmem>>, vector<32x16xf32>
    %c0_214 = arith.constant 0 : index
    %c29_215 = arith.constant 29 : index
    %337 = vector.load %arg32[%c0_214, %c29_215] : memref<48x320xf32, #tpu.memory_space<vmem>>, vector<32x16xf32>
    %c3_i32_216 = arith.constant 3 : i32
    %338 = vector.broadcast %c3_i32_216 : i32 to vector<1x16xi32>
    %339 = arith.cmpi eq, %328, %338 : vector<1x16xi32>
    %cst_217 = arith.constant 0.000000e+00 : f32
    %340 = vector.shape_cast %339 : vector<1x16xi1> to vector<1x16xi1>
    %341 = vector.broadcast %340 : vector<1x16xi1> to vector<32x16xi1>
    %342 = vector.broadcast %cst_217 : f32 to vector<32x16xf32>
    %343 = arith.select %341, %342, %337 : vector<32x16xi1>, vector<32x16xf32>
    %c0_218 = arith.constant 0 : index
    %c31_219 = arith.constant 31 : index
    %344 = vector.load %arg32[%c0_218, %c31_219] : memref<48x320xf32, #tpu.memory_space<vmem>>, vector<32x16xf32>
    %c0_i32_220 = arith.constant 0 : i32
    %345 = vector.broadcast %c0_i32_220 : i32 to vector<1x16xi32>
    %346 = arith.cmpi eq, %328, %345 : vector<1x16xi32>
    %cst_221 = arith.constant 0.000000e+00 : f32
    %347 = vector.shape_cast %346 : vector<1x16xi1> to vector<1x16xi1>
    %348 = vector.broadcast %347 : vector<1x16xi1> to vector<32x16xi1>
    %349 = vector.broadcast %cst_221 : f32 to vector<32x16xf32>
    %350 = arith.select %348, %349, %344 : vector<32x16xi1>, vector<32x16xf32>
    %c0_222 = arith.constant 0 : index
    %c32_223 = arith.constant 32 : index
    %351 = vector.load %arg32[%c0_222, %c32_223] : memref<48x320xf32, #tpu.memory_space<vmem>>, vector<32x16xf32>
    %c0_224 = arith.constant 0 : index
    %c33_225 = arith.constant 33 : index
    %352 = vector.load %arg32[%c0_224, %c33_225] : memref<48x320xf32, #tpu.memory_space<vmem>>, vector<32x16xf32>
    %c3_i32_226 = arith.constant 3 : i32
    %353 = vector.broadcast %c3_i32_226 : i32 to vector<1x16xi32>
    %354 = arith.cmpi eq, %328, %353 : vector<1x16xi32>
    %cst_227 = arith.constant 0.000000e+00 : f32
    %355 = vector.shape_cast %354 : vector<1x16xi1> to vector<1x16xi1>
    %356 = vector.broadcast %355 : vector<1x16xi1> to vector<32x16xi1>
    %357 = vector.broadcast %cst_227 : f32 to vector<32x16xf32>
    %358 = arith.select %356, %357, %352 : vector<32x16xi1>, vector<32x16xf32>
    %c0_228 = arith.constant 0 : index
    %c35_229 = arith.constant 35 : index
    %359 = vector.load %arg32[%c0_228, %c35_229] : memref<48x320xf32, #tpu.memory_space<vmem>>, vector<32x16xf32>
    %c0_i32_230 = arith.constant 0 : i32
    %360 = vector.broadcast %c0_i32_230 : i32 to vector<1x16xi32>
    %361 = arith.cmpi eq, %328, %360 : vector<1x16xi32>
    %cst_231 = arith.constant 0.000000e+00 : f32
    %362 = vector.shape_cast %361 : vector<1x16xi1> to vector<1x16xi1>
    %363 = vector.broadcast %362 : vector<1x16xi1> to vector<32x16xi1>
    %364 = vector.broadcast %cst_231 : f32 to vector<32x16xf32>
    %365 = arith.select %363, %364, %359 : vector<32x16xi1>, vector<32x16xf32>
    %c0_232 = arith.constant 0 : index
    %c36_233 = arith.constant 36 : index
    %366 = vector.load %arg32[%c0_232, %c36_233] : memref<48x320xf32, #tpu.memory_space<vmem>>, vector<32x16xf32>
    %c0_234 = arith.constant 0 : index
    %c37_235 = arith.constant 37 : index
    %367 = vector.load %arg32[%c0_234, %c37_235] : memref<48x320xf32, #tpu.memory_space<vmem>>, vector<32x16xf32>
    %c3_i32_236 = arith.constant 3 : i32
    %368 = vector.broadcast %c3_i32_236 : i32 to vector<1x16xi32>
    %369 = arith.cmpi eq, %328, %368 : vector<1x16xi32>
    %cst_237 = arith.constant 0.000000e+00 : f32
    %370 = vector.shape_cast %369 : vector<1x16xi1> to vector<1x16xi1>
    %371 = vector.broadcast %370 : vector<1x16xi1> to vector<32x16xi1>
    %372 = vector.broadcast %cst_237 : f32 to vector<32x16xf32>
    %373 = arith.select %371, %372, %367 : vector<32x16xi1>, vector<32x16xf32>
    %374 = tpu.concatenate %335, %336, %343, %350, %351, %358, %365, %366, %373 in 0 : vector<32x16xf32>, vector<32x16xf32>, vector<32x16xf32>, vector<32x16xf32>, vector<32x16xf32>, vector<32x16xf32>, vector<32x16xf32>, vector<32x16xf32>, vector<32x16xf32> -> vector<288x16xf32>
    %cst_238 = arith.constant dense<0.000000e+00> : vector<32x16xf32>
    %375 = tpu.matmul %321, %374, %cst_238 {dimension_numbers = #tpu.dot_dimension_numbers<[1], [0], [0], [1], [0, 0, 1, 1], [], []>} : vector<32x288xf32>, vector<288x16xf32>, vector<32x16xf32> -> vector<32x16xf32>
    %376 = vector.broadcast %322 : vector<32x1xf32> to vector<32x16xf32>
    %377 = arith.addf %375, %376 : vector<32x16xf32>
    %cst_239 = arith.constant 0.000000e+00 : f32
    %378 = vector.broadcast %cst_239 : f32 to vector<32x16xf32>
    %379 = arith.maximumf %377, %378 : vector<32x16xf32>
    %c0_240 = arith.constant 0 : index
    %c0_241 = arith.constant 0 : index
    %c0_242 = arith.constant 0 : index
    %380 = vector.load %arg30[%c0_240, %c0_241, %c0_242] : memref<1x32x16xf32, #tpu.memory_space<vmem>>, vector<1x32x16xf32>
    %381 = vector.shape_cast %380 : vector<1x32x16xf32> to vector<32x16xf32>
    %382 = vector.shape_cast %379 : vector<32x16xf32> to vector<1x32x16xf32>
    tpu.vector_store %arg30[%c0_240, %c0_241, %c0_242], %382 {strides = array<i32>} : memref<1x32x16xf32, #tpu.memory_space<vmem>>, vector<1x32x16xf32>,
    %c0_243 = arith.constant 0 : index
    %c0_244 = arith.constant 0 : index
    %383 = vector.load %arg26[%c0_243, %c0_244] : memref<16x64xf32, #tpu.memory_space<vmem>>, vector<16x64xf32>
    %cst_245 = arith.constant dense<0.000000e+00> : vector<32x64xf32>
    %384 = tpu.matmul %379, %383, %cst_245 {dimension_numbers = #tpu.dot_dimension_numbers<[1], [0], [0], [1], [0, 0, 1, 1], [], []>} : vector<32x16xf32>, vector<16x64xf32>, vector<32x64xf32> -> vector<32x64xf32>
    %385 = tpu.concatenate %384, %249 in 0 : vector<32x64xf32>, vector<16x64xf32> -> vector<48x64xf32>
    %c0_246 = arith.constant 0 : index
    %c0_247 = arith.constant 0 : index
    %386 = vector.load %arg14[%c0_246, %c0_247] : memref<16x432xf32, #tpu.memory_space<vmem>>, vector<16x432xf32>
    %c0_248 = arith.constant 0 : index
    %c0_249 = arith.constant 0 : index
    %387 = vector.load %arg15[%c0_248, %c0_249] : memref<16x1xf32, #tpu.memory_space<vmem>>, vector<16x1xf32>
    %cst_250 = arith.constant 0.000000e+00 : f32
    %388 = vector.broadcast %cst_250 : f32 to vector<48x320xf32>
    %c0_251 = arith.constant 0 : index
    %c0_252 = arith.constant 0 : index
    %389 = vector.load %arg32[%c0_251, %c0_252] : memref<48x320xf32, #tpu.memory_space<vmem>>, vector<48x320xf32>
    tpu.vector_store %arg32[%c0_251, %c0_252], %388 {strides = array<i32>} : memref<48x320xf32, #tpu.memory_space<vmem>>, vector<48x320xf32>,
    %c0_253 = arith.constant 0 : index
    %c32_254 = arith.constant 32 : index
    %390 = vector.load %arg32[%c0_253, %c32_254] : memref<48x320xf32, #tpu.memory_space<vmem>>, vector<48x64xf32>
    tpu.vector_store %arg32[%c0_253, %c32_254], %385 {strides = array<i32>} : memref<48x320xf32, #tpu.memory_space<vmem>>, vector<48x64xf32>,
    %391 = tpu.iota {dimensions = array<i32: 1>} : vector<1x64xi32>
    %c7_i32_255 = arith.constant 7 : i32
    %392 = vector.broadcast %c7_i32_255 : i32 to vector<1x64xi32>
    %393 = arith.andi %391, %392 : vector<1x64xi32>
    %c0_256 = arith.constant 0 : index
    %c23_257 = arith.constant 23 : index
    %394 = vector.load %arg32[%c0_256, %c23_257] : memref<48x320xf32, #tpu.memory_space<vmem>>, vector<48x64xf32>
    %c0_i32_258 = arith.constant 0 : i32
    %395 = vector.broadcast %c0_i32_258 : i32 to vector<1x64xi32>
    %396 = arith.cmpi eq, %393, %395 : vector<1x64xi32>
    %cst_259 = arith.constant 0.000000e+00 : f32
    %397 = vector.shape_cast %396 : vector<1x64xi1> to vector<1x64xi1>
    %398 = vector.broadcast %397 : vector<1x64xi1> to vector<48x64xi1>
    %399 = vector.broadcast %cst_259 : f32 to vector<48x64xf32>
    %400 = arith.select %398, %399, %394 : vector<48x64xi1>, vector<48x64xf32>
    %c0_260 = arith.constant 0 : index
    %c24_261 = arith.constant 24 : index
    %401 = vector.load %arg32[%c0_260, %c24_261] : memref<48x320xf32, #tpu.memory_space<vmem>>, vector<48x64xf32>
    %c0_262 = arith.constant 0 : index
    %c25_263 = arith.constant 25 : index
    %402 = vector.load %arg32[%c0_262, %c25_263] : memref<48x320xf32, #tpu.memory_space<vmem>>, vector<48x64xf32>
    %c7_i32_264 = arith.constant 7 : i32
    %403 = vector.broadcast %c7_i32_264 : i32 to vector<1x64xi32>
    %404 = arith.cmpi eq, %393, %403 : vector<1x64xi32>
    %cst_265 = arith.constant 0.000000e+00 : f32
    %405 = vector.shape_cast %404 : vector<1x64xi1> to vector<1x64xi1>
    %406 = vector.broadcast %405 : vector<1x64xi1> to vector<48x64xi1>
    %407 = vector.broadcast %cst_265 : f32 to vector<48x64xf32>
    %408 = arith.select %406, %407, %402 : vector<48x64xi1>, vector<48x64xf32>
    %c0_266 = arith.constant 0 : index
    %c31_267 = arith.constant 31 : index
    %409 = vector.load %arg32[%c0_266, %c31_267] : memref<48x320xf32, #tpu.memory_space<vmem>>, vector<48x64xf32>
    %c0_i32_268 = arith.constant 0 : i32
    %410 = vector.broadcast %c0_i32_268 : i32 to vector<1x64xi32>
    %411 = arith.cmpi eq, %393, %410 : vector<1x64xi32>
    %cst_269 = arith.constant 0.000000e+00 : f32
    %412 = vector.shape_cast %411 : vector<1x64xi1> to vector<1x64xi1>
    %413 = vector.broadcast %412 : vector<1x64xi1> to vector<48x64xi1>
    %414 = vector.broadcast %cst_269 : f32 to vector<48x64xf32>
    %415 = arith.select %413, %414, %409 : vector<48x64xi1>, vector<48x64xf32>
    %c0_270 = arith.constant 0 : index
    %c32_271 = arith.constant 32 : index
    %416 = vector.load %arg32[%c0_270, %c32_271] : memref<48x320xf32, #tpu.memory_space<vmem>>, vector<48x64xf32>
    %c0_272 = arith.constant 0 : index
    %c33_273 = arith.constant 33 : index
    %417 = vector.load %arg32[%c0_272, %c33_273] : memref<48x320xf32, #tpu.memory_space<vmem>>, vector<48x64xf32>
    %c7_i32_274 = arith.constant 7 : i32
    %418 = vector.broadcast %c7_i32_274 : i32 to vector<1x64xi32>
    %419 = arith.cmpi eq, %393, %418 : vector<1x64xi32>
    %cst_275 = arith.constant 0.000000e+00 : f32
    %420 = vector.shape_cast %419 : vector<1x64xi1> to vector<1x64xi1>
    %421 = vector.broadcast %420 : vector<1x64xi1> to vector<48x64xi1>
    %422 = vector.broadcast %cst_275 : f32 to vector<48x64xf32>
    %423 = arith.select %421, %422, %417 : vector<48x64xi1>, vector<48x64xf32>
    %c0_276 = arith.constant 0 : index
    %c39_277 = arith.constant 39 : index
    %424 = vector.load %arg32[%c0_276, %c39_277] : memref<48x320xf32, #tpu.memory_space<vmem>>, vector<48x64xf32>
    %c0_i32_278 = arith.constant 0 : i32
    %425 = vector.broadcast %c0_i32_278 : i32 to vector<1x64xi32>
    %426 = arith.cmpi eq, %393, %425 : vector<1x64xi32>
    %cst_279 = arith.constant 0.000000e+00 : f32
    %427 = vector.shape_cast %426 : vector<1x64xi1> to vector<1x64xi1>
    %428 = vector.broadcast %427 : vector<1x64xi1> to vector<48x64xi1>
    %429 = vector.broadcast %cst_279 : f32 to vector<48x64xf32>
    %430 = arith.select %428, %429, %424 : vector<48x64xi1>, vector<48x64xf32>
    %c0_280 = arith.constant 0 : index
    %c40_281 = arith.constant 40 : index
    %431 = vector.load %arg32[%c0_280, %c40_281] : memref<48x320xf32, #tpu.memory_space<vmem>>, vector<48x64xf32>
    %c0_282 = arith.constant 0 : index
    %c41_283 = arith.constant 41 : index
    %432 = vector.load %arg32[%c0_282, %c41_283] : memref<48x320xf32, #tpu.memory_space<vmem>>, vector<48x64xf32>
    %c7_i32_284 = arith.constant 7 : i32
    %433 = vector.broadcast %c7_i32_284 : i32 to vector<1x64xi32>
    %434 = arith.cmpi eq, %393, %433 : vector<1x64xi32>
    %cst_285 = arith.constant 0.000000e+00 : f32
    %435 = vector.shape_cast %434 : vector<1x64xi1> to vector<1x64xi1>
    %436 = vector.broadcast %435 : vector<1x64xi1> to vector<48x64xi1>
    %437 = vector.broadcast %cst_285 : f32 to vector<48x64xf32>
    %438 = arith.select %436, %437, %432 : vector<48x64xi1>, vector<48x64xf32>
    %439 = tpu.concatenate %400, %401, %408, %415, %416, %423, %430, %431, %438 in 0 : vector<48x64xf32>, vector<48x64xf32>, vector<48x64xf32>, vector<48x64xf32>, vector<48x64xf32>, vector<48x64xf32>, vector<48x64xf32>, vector<48x64xf32>, vector<48x64xf32> -> vector<432x64xf32>
    %cst_286 = arith.constant dense<0.000000e+00> : vector<16x64xf32>
    %440 = tpu.matmul %386, %439, %cst_286 {dimension_numbers = #tpu.dot_dimension_numbers<[1], [0], [0], [1], [0, 0, 1, 1], [], []>} : vector<16x432xf32>, vector<432x64xf32>, vector<16x64xf32> -> vector<16x64xf32>
    %441 = vector.broadcast %387 : vector<16x1xf32> to vector<16x64xf32>
    %442 = arith.addf %440, %441 : vector<16x64xf32>
    %cst_287 = arith.constant 0.000000e+00 : f32
    %443 = vector.broadcast %cst_287 : f32 to vector<16x64xf32>
    %444 = arith.maximumf %442, %443 : vector<16x64xf32>
    %c0_288 = arith.constant 0 : index
    %c0_289 = arith.constant 0 : index
    %445 = vector.load %arg16[%c0_288, %c0_289] : memref<16x144xf32, #tpu.memory_space<vmem>>, vector<16x144xf32>
    %c0_290 = arith.constant 0 : index
    %c0_291 = arith.constant 0 : index
    %446 = vector.load %arg17[%c0_290, %c0_291] : memref<16x1xf32, #tpu.memory_space<vmem>>, vector<16x1xf32>
    %cst_292 = arith.constant 0.000000e+00 : f32
    %447 = vector.broadcast %cst_292 : f32 to vector<16x320xf32>
    %c0_293 = arith.constant 0 : index
    %c0_294 = arith.constant 0 : index
    %448 = vector.load %arg32[%c0_293, %c0_294] : memref<48x320xf32, #tpu.memory_space<vmem>>, vector<16x320xf32>
    tpu.vector_store %arg32[%c0_293, %c0_294], %447 {strides = array<i32>} : memref<48x320xf32, #tpu.memory_space<vmem>>, vector<16x320xf32>,
    %c0_295 = arith.constant 0 : index
    %c32_296 = arith.constant 32 : index
    %449 = vector.load %arg32[%c0_295, %c32_296] : memref<48x320xf32, #tpu.memory_space<vmem>>, vector<16x64xf32>
    tpu.vector_store %arg32[%c0_295, %c32_296], %444 {strides = array<i32>} : memref<48x320xf32, #tpu.memory_space<vmem>>, vector<16x64xf32>,
    %450 = tpu.iota {dimensions = array<i32: 1>} : vector<1x64xi32>
    %c7_i32_297 = arith.constant 7 : i32
    %451 = vector.broadcast %c7_i32_297 : i32 to vector<1x64xi32>
    %452 = arith.andi %450, %451 : vector<1x64xi32>
    %c0_298 = arith.constant 0 : index
    %c23_299 = arith.constant 23 : index
    %453 = vector.load %arg32[%c0_298, %c23_299] : memref<48x320xf32, #tpu.memory_space<vmem>>, vector<16x64xf32>
    %c0_i32_300 = arith.constant 0 : i32
    %454 = vector.broadcast %c0_i32_300 : i32 to vector<1x64xi32>
    %455 = arith.cmpi eq, %452, %454 : vector<1x64xi32>
    %cst_301 = arith.constant 0.000000e+00 : f32
    %456 = vector.shape_cast %455 : vector<1x64xi1> to vector<1x64xi1>
    %457 = vector.broadcast %456 : vector<1x64xi1> to vector<16x64xi1>
    %458 = vector.broadcast %cst_301 : f32 to vector<16x64xf32>
    %459 = arith.select %457, %458, %453 : vector<16x64xi1>, vector<16x64xf32>
    %c0_302 = arith.constant 0 : index
    %c24_303 = arith.constant 24 : index
    %460 = vector.load %arg32[%c0_302, %c24_303] : memref<48x320xf32, #tpu.memory_space<vmem>>, vector<16x64xf32>
    %c0_304 = arith.constant 0 : index
    %c25_305 = arith.constant 25 : index
    %461 = vector.load %arg32[%c0_304, %c25_305] : memref<48x320xf32, #tpu.memory_space<vmem>>, vector<16x64xf32>
    %c7_i32_306 = arith.constant 7 : i32
    %462 = vector.broadcast %c7_i32_306 : i32 to vector<1x64xi32>
    %463 = arith.cmpi eq, %452, %462 : vector<1x64xi32>
    %cst_307 = arith.constant 0.000000e+00 : f32
    %464 = vector.shape_cast %463 : vector<1x64xi1> to vector<1x64xi1>
    %465 = vector.broadcast %464 : vector<1x64xi1> to vector<16x64xi1>
    %466 = vector.broadcast %cst_307 : f32 to vector<16x64xf32>
    %467 = arith.select %465, %466, %461 : vector<16x64xi1>, vector<16x64xf32>
    %c0_308 = arith.constant 0 : index
    %c31_309 = arith.constant 31 : index
    %468 = vector.load %arg32[%c0_308, %c31_309] : memref<48x320xf32, #tpu.memory_space<vmem>>, vector<16x64xf32>
    %c0_i32_310 = arith.constant 0 : i32
    %469 = vector.broadcast %c0_i32_310 : i32 to vector<1x64xi32>
    %470 = arith.cmpi eq, %452, %469 : vector<1x64xi32>
    %cst_311 = arith.constant 0.000000e+00 : f32
    %471 = vector.shape_cast %470 : vector<1x64xi1> to vector<1x64xi1>
    %472 = vector.broadcast %471 : vector<1x64xi1> to vector<16x64xi1>
    %473 = vector.broadcast %cst_311 : f32 to vector<16x64xf32>
    %474 = arith.select %472, %473, %468 : vector<16x64xi1>, vector<16x64xf32>
    %c0_312 = arith.constant 0 : index
    %c32_313 = arith.constant 32 : index
    %475 = vector.load %arg32[%c0_312, %c32_313] : memref<48x320xf32, #tpu.memory_space<vmem>>, vector<16x64xf32>
    %c0_314 = arith.constant 0 : index
    %c33_315 = arith.constant 33 : index
    %476 = vector.load %arg32[%c0_314, %c33_315] : memref<48x320xf32, #tpu.memory_space<vmem>>, vector<16x64xf32>
    %c7_i32_316 = arith.constant 7 : i32
    %477 = vector.broadcast %c7_i32_316 : i32 to vector<1x64xi32>
    %478 = arith.cmpi eq, %452, %477 : vector<1x64xi32>
    %cst_317 = arith.constant 0.000000e+00 : f32
    %479 = vector.shape_cast %478 : vector<1x64xi1> to vector<1x64xi1>
    %480 = vector.broadcast %479 : vector<1x64xi1> to vector<16x64xi1>
    %481 = vector.broadcast %cst_317 : f32 to vector<16x64xf32>
    %482 = arith.select %480, %481, %476 : vector<16x64xi1>, vector<16x64xf32>
    %c0_318 = arith.constant 0 : index
    %c39_319 = arith.constant 39 : index
    %483 = vector.load %arg32[%c0_318, %c39_319] : memref<48x320xf32, #tpu.memory_space<vmem>>, vector<16x64xf32>
    %c0_i32_320 = arith.constant 0 : i32
    %484 = vector.broadcast %c0_i32_320 : i32 to vector<1x64xi32>
    %485 = arith.cmpi eq, %452, %484 : vector<1x64xi32>
    %cst_321 = arith.constant 0.000000e+00 : f32
    %486 = vector.shape_cast %485 : vector<1x64xi1> to vector<1x64xi1>
    %487 = vector.broadcast %486 : vector<1x64xi1> to vector<16x64xi1>
    %488 = vector.broadcast %cst_321 : f32 to vector<16x64xf32>
    %489 = arith.select %487, %488, %483 : vector<16x64xi1>, vector<16x64xf32>
    %c0_322 = arith.constant 0 : index
    %c40_323 = arith.constant 40 : index
    %490 = vector.load %arg32[%c0_322, %c40_323] : memref<48x320xf32, #tpu.memory_space<vmem>>, vector<16x64xf32>
    %c0_324 = arith.constant 0 : index
    %c41_325 = arith.constant 41 : index
    %491 = vector.load %arg32[%c0_324, %c41_325] : memref<48x320xf32, #tpu.memory_space<vmem>>, vector<16x64xf32>
    %c7_i32_326 = arith.constant 7 : i32
    %492 = vector.broadcast %c7_i32_326 : i32 to vector<1x64xi32>
    %493 = arith.cmpi eq, %452, %492 : vector<1x64xi32>
    %cst_327 = arith.constant 0.000000e+00 : f32
    %494 = vector.shape_cast %493 : vector<1x64xi1> to vector<1x64xi1>
    %495 = vector.broadcast %494 : vector<1x64xi1> to vector<16x64xi1>
    %496 = vector.broadcast %cst_327 : f32 to vector<16x64xf32>
    %497 = arith.select %495, %496, %491 : vector<16x64xi1>, vector<16x64xf32>
    %498 = tpu.concatenate %459, %460, %467, %474, %475, %482, %489, %490, %497 in 0 : vector<16x64xf32>, vector<16x64xf32>, vector<16x64xf32>, vector<16x64xf32>, vector<16x64xf32>, vector<16x64xf32>, vector<16x64xf32>, vector<16x64xf32>, vector<16x64xf32> -> vector<144x64xf32>
    %cst_328 = arith.constant dense<0.000000e+00> : vector<16x64xf32>
    %499 = tpu.matmul %445, %498, %cst_328 {dimension_numbers = #tpu.dot_dimension_numbers<[1], [0], [0], [1], [0, 0, 1, 1], [], []>} : vector<16x144xf32>, vector<144x64xf32>, vector<16x64xf32> -> vector<16x64xf32>
    %500 = vector.broadcast %446 : vector<16x1xf32> to vector<16x64xf32>
    %501 = arith.addf %499, %500 : vector<16x64xf32>
    %cst_329 = arith.constant 0.000000e+00 : f32
    %502 = vector.broadcast %cst_329 : f32 to vector<16x64xf32>
    %503 = arith.maximumf %501, %502 : vector<16x64xf32>
    %c0_330 = arith.constant 0 : index
    %c0_331 = arith.constant 0 : index
    %504 = vector.load %arg27[%c0_330, %c0_331] : memref<64x256xf32, #tpu.memory_space<vmem>>, vector<64x256xf32>
    %cst_332 = arith.constant dense<0.000000e+00> : vector<16x256xf32>
    %505 = tpu.matmul %503, %504, %cst_332 {dimension_numbers = #tpu.dot_dimension_numbers<[1], [0], [0], [1], [0, 0, 1, 1], [], []>} : vector<16x64xf32>, vector<64x256xf32>, vector<16x256xf32> -> vector<16x256xf32>
    %506 = tpu.concatenate %505, %119 in 0 : vector<16x256xf32>, vector<8x256xf32> -> vector<24x256xf32>
    %c0_333 = arith.constant 0 : index
    %c0_334 = arith.constant 0 : index
    %507 = vector.load %arg18[%c0_333, %c0_334] : memref<8x216xf32, #tpu.memory_space<vmem>>, vector<8x216xf32>
    %c0_335 = arith.constant 0 : index
    %c0_336 = arith.constant 0 : index
    %508 = vector.load %arg19[%c0_335, %c0_336] : memref<8x1xf32, #tpu.memory_space<vmem>>, vector<8x1xf32>
    %cst_337 = arith.constant 0.000000e+00 : f32
    %509 = vector.broadcast %cst_337 : f32 to vector<24x320xf32>
    %c0_338 = arith.constant 0 : index
    %c0_339 = arith.constant 0 : index
    %510 = vector.load %arg32[%c0_338, %c0_339] : memref<48x320xf32, #tpu.memory_space<vmem>>, vector<24x320xf32>
    tpu.vector_store %arg32[%c0_338, %c0_339], %509 {strides = array<i32>} : memref<48x320xf32, #tpu.memory_space<vmem>>, vector<24x320xf32>,
    %c0_340 = arith.constant 0 : index
    %c32_341 = arith.constant 32 : index
    %511 = vector.load %arg32[%c0_340, %c32_341] : memref<48x320xf32, #tpu.memory_space<vmem>>, vector<24x256xf32>
    tpu.vector_store %arg32[%c0_340, %c32_341], %506 {strides = array<i32>} : memref<48x320xf32, #tpu.memory_space<vmem>>, vector<24x256xf32>,
    %512 = tpu.iota {dimensions = array<i32: 1>} : vector<1x256xi32>
    %c15_i32_342 = arith.constant 15 : i32
    %513 = vector.broadcast %c15_i32_342 : i32 to vector<1x256xi32>
    %514 = arith.andi %512, %513 : vector<1x256xi32>
    %c0_343 = arith.constant 0 : index
    %c15_344 = arith.constant 15 : index
    %515 = vector.load %arg32[%c0_343, %c15_344] : memref<48x320xf32, #tpu.memory_space<vmem>>, vector<24x256xf32>
    %c0_i32_345 = arith.constant 0 : i32
    %516 = vector.broadcast %c0_i32_345 : i32 to vector<1x256xi32>
    %517 = arith.cmpi eq, %514, %516 : vector<1x256xi32>
    %cst_346 = arith.constant 0.000000e+00 : f32
    %518 = vector.shape_cast %517 : vector<1x256xi1> to vector<1x256xi1>
    %519 = vector.broadcast %518 : vector<1x256xi1> to vector<24x256xi1>
    %520 = vector.broadcast %cst_346 : f32 to vector<24x256xf32>
    %521 = arith.select %519, %520, %515 : vector<24x256xi1>, vector<24x256xf32>
    %c0_347 = arith.constant 0 : index
    %c16_348 = arith.constant 16 : index
    %522 = vector.load %arg32[%c0_347, %c16_348] : memref<48x320xf32, #tpu.memory_space<vmem>>, vector<24x256xf32>
    %c0_349 = arith.constant 0 : index
    %c17_350 = arith.constant 17 : index
    %523 = vector.load %arg32[%c0_349, %c17_350] : memref<48x320xf32, #tpu.memory_space<vmem>>, vector<24x256xf32>
    %c15_i32_351 = arith.constant 15 : i32
    %524 = vector.broadcast %c15_i32_351 : i32 to vector<1x256xi32>
    %525 = arith.cmpi eq, %514, %524 : vector<1x256xi32>
    %cst_352 = arith.constant 0.000000e+00 : f32
    %526 = vector.shape_cast %525 : vector<1x256xi1> to vector<1x256xi1>
    %527 = vector.broadcast %526 : vector<1x256xi1> to vector<24x256xi1>
    %528 = vector.broadcast %cst_352 : f32 to vector<24x256xf32>
    %529 = arith.select %527, %528, %523 : vector<24x256xi1>, vector<24x256xf32>
    %c0_353 = arith.constant 0 : index
    %c31_354 = arith.constant 31 : index
    %530 = vector.load %arg32[%c0_353, %c31_354] : memref<48x320xf32, #tpu.memory_space<vmem>>, vector<24x256xf32>
    %c0_i32_355 = arith.constant 0 : i32
    %531 = vector.broadcast %c0_i32_355 : i32 to vector<1x256xi32>
    %532 = arith.cmpi eq, %514, %531 : vector<1x256xi32>
    %cst_356 = arith.constant 0.000000e+00 : f32
    %533 = vector.shape_cast %532 : vector<1x256xi1> to vector<1x256xi1>
    %534 = vector.broadcast %533 : vector<1x256xi1> to vector<24x256xi1>
    %535 = vector.broadcast %cst_356 : f32 to vector<24x256xf32>
    %536 = arith.select %534, %535, %530 : vector<24x256xi1>, vector<24x256xf32>
    %c0_357 = arith.constant 0 : index
    %c32_358 = arith.constant 32 : index
    %537 = vector.load %arg32[%c0_357, %c32_358] : memref<48x320xf32, #tpu.memory_space<vmem>>, vector<24x256xf32>
    %c0_359 = arith.constant 0 : index
    %c33_360 = arith.constant 33 : index
    %538 = vector.load %arg32[%c0_359, %c33_360] : memref<48x320xf32, #tpu.memory_space<vmem>>, vector<24x256xf32>
    %c15_i32_361 = arith.constant 15 : i32
    %539 = vector.broadcast %c15_i32_361 : i32 to vector<1x256xi32>
    %540 = arith.cmpi eq, %514, %539 : vector<1x256xi32>
    %cst_362 = arith.constant 0.000000e+00 : f32
    %541 = vector.shape_cast %540 : vector<1x256xi1> to vector<1x256xi1>
    %542 = vector.broadcast %541 : vector<1x256xi1> to vector<24x256xi1>
    %543 = vector.broadcast %cst_362 : f32 to vector<24x256xf32>
    %544 = arith.select %542, %543, %538 : vector<24x256xi1>, vector<24x256xf32>
    %c0_363 = arith.constant 0 : index
    %c47_364 = arith.constant 47 : index
    %545 = vector.load %arg32[%c0_363, %c47_364] : memref<48x320xf32, #tpu.memory_space<vmem>>, vector<24x256xf32>
    %c0_i32_365 = arith.constant 0 : i32
    %546 = vector.broadcast %c0_i32_365 : i32 to vector<1x256xi32>
    %547 = arith.cmpi eq, %514, %546 : vector<1x256xi32>
    %cst_366 = arith.constant 0.000000e+00 : f32
    %548 = vector.shape_cast %547 : vector<1x256xi1> to vector<1x256xi1>
    %549 = vector.broadcast %548 : vector<1x256xi1> to vector<24x256xi1>
    %550 = vector.broadcast %cst_366 : f32 to vector<24x256xf32>
    %551 = arith.select %549, %550, %545 : vector<24x256xi1>, vector<24x256xf32>
    %c0_367 = arith.constant 0 : index
    %c48_368 = arith.constant 48 : index
    %552 = vector.load %arg32[%c0_367, %c48_368] : memref<48x320xf32, #tpu.memory_space<vmem>>, vector<24x256xf32>
    %c0_369 = arith.constant 0 : index
    %c49_370 = arith.constant 49 : index
    %553 = vector.load %arg32[%c0_369, %c49_370] : memref<48x320xf32, #tpu.memory_space<vmem>>, vector<24x256xf32>
    %c15_i32_371 = arith.constant 15 : i32
    %554 = vector.broadcast %c15_i32_371 : i32 to vector<1x256xi32>
    %555 = arith.cmpi eq, %514, %554 : vector<1x256xi32>
    %cst_372 = arith.constant 0.000000e+00 : f32
    %556 = vector.shape_cast %555 : vector<1x256xi1> to vector<1x256xi1>
    %557 = vector.broadcast %556 : vector<1x256xi1> to vector<24x256xi1>
    %558 = vector.broadcast %cst_372 : f32 to vector<24x256xf32>
    %559 = arith.select %557, %558, %553 : vector<24x256xi1>, vector<24x256xf32>
    %560 = tpu.concatenate %521, %522, %529, %536, %537, %544, %551, %552, %559 in 0 : vector<24x256xf32>, vector<24x256xf32>, vector<24x256xf32>, vector<24x256xf32>, vector<24x256xf32>, vector<24x256xf32>, vector<24x256xf32>, vector<24x256xf32>, vector<24x256xf32> -> vector<216x256xf32>
    %cst_373 = arith.constant dense<0.000000e+00> : vector<8x256xf32>
    %561 = tpu.matmul %507, %560, %cst_373 {dimension_numbers = #tpu.dot_dimension_numbers<[1], [0], [0], [1], [0, 0, 1, 1], [], []>} : vector<8x216xf32>, vector<216x256xf32>, vector<8x256xf32> -> vector<8x256xf32>
    %562 = vector.broadcast %508 : vector<8x1xf32> to vector<8x256xf32>
    %563 = arith.addf %561, %562 : vector<8x256xf32>
    %cst_374 = arith.constant 0.000000e+00 : f32
    %564 = vector.broadcast %cst_374 : f32 to vector<8x256xf32>
    %565 = arith.maximumf %563, %564 : vector<8x256xf32>
    %c0_375 = arith.constant 0 : index
    %c0_376 = arith.constant 0 : index
    %566 = vector.load %arg20[%c0_375, %c0_376] : memref<8x72xf32, #tpu.memory_space<vmem>>, vector<8x72xf32>
    %c0_377 = arith.constant 0 : index
    %c0_378 = arith.constant 0 : index
    %567 = vector.load %arg21[%c0_377, %c0_378] : memref<8x1xf32, #tpu.memory_space<vmem>>, vector<8x1xf32>
    %cst_379 = arith.constant 0.000000e+00 : f32
    %568 = vector.broadcast %cst_379 : f32 to vector<8x320xf32>
    %c0_380 = arith.constant 0 : index
    %c0_381 = arith.constant 0 : index
    %569 = vector.load %arg32[%c0_380, %c0_381] : memref<48x320xf32, #tpu.memory_space<vmem>>, vector<8x320xf32>
    tpu.vector_store %arg32[%c0_380, %c0_381], %568 {strides = array<i32>} : memref<48x320xf32, #tpu.memory_space<vmem>>, vector<8x320xf32>,
    %c0_382 = arith.constant 0 : index
    %c32_383 = arith.constant 32 : index
    %570 = vector.load %arg32[%c0_382, %c32_383] : memref<48x320xf32, #tpu.memory_space<vmem>>, vector<8x256xf32>
    tpu.vector_store %arg32[%c0_382, %c32_383], %565 {strides = array<i32>} : memref<48x320xf32, #tpu.memory_space<vmem>>, vector<8x256xf32>,
    %571 = tpu.iota {dimensions = array<i32: 1>} : vector<1x256xi32>
    %c15_i32_384 = arith.constant 15 : i32
    %572 = vector.broadcast %c15_i32_384 : i32 to vector<1x256xi32>
    %573 = arith.andi %571, %572 : vector<1x256xi32>
    %c0_385 = arith.constant 0 : index
    %c15_386 = arith.constant 15 : index
    %574 = vector.load %arg32[%c0_385, %c15_386] : memref<48x320xf32, #tpu.memory_space<vmem>>, vector<8x256xf32>
    %c0_i32_387 = arith.constant 0 : i32
    %575 = vector.broadcast %c0_i32_387 : i32 to vector<1x256xi32>
    %576 = arith.cmpi eq, %573, %575 : vector<1x256xi32>
    %cst_388 = arith.constant 0.000000e+00 : f32
    %577 = vector.shape_cast %576 : vector<1x256xi1> to vector<1x256xi1>
    %578 = vector.broadcast %577 : vector<1x256xi1> to vector<8x256xi1>
    %579 = vector.broadcast %cst_388 : f32 to vector<8x256xf32>
    %580 = arith.select %578, %579, %574 : vector<8x256xi1>, vector<8x256xf32>
    %c0_389 = arith.constant 0 : index
    %c16_390 = arith.constant 16 : index
    %581 = vector.load %arg32[%c0_389, %c16_390] : memref<48x320xf32, #tpu.memory_space<vmem>>, vector<8x256xf32>
    %c0_391 = arith.constant 0 : index
    %c17_392 = arith.constant 17 : index
    %582 = vector.load %arg32[%c0_391, %c17_392] : memref<48x320xf32, #tpu.memory_space<vmem>>, vector<8x256xf32>
    %c15_i32_393 = arith.constant 15 : i32
    %583 = vector.broadcast %c15_i32_393 : i32 to vector<1x256xi32>
    %584 = arith.cmpi eq, %573, %583 : vector<1x256xi32>
    %cst_394 = arith.constant 0.000000e+00 : f32
    %585 = vector.shape_cast %584 : vector<1x256xi1> to vector<1x256xi1>
    %586 = vector.broadcast %585 : vector<1x256xi1> to vector<8x256xi1>
    %587 = vector.broadcast %cst_394 : f32 to vector<8x256xf32>
    %588 = arith.select %586, %587, %582 : vector<8x256xi1>, vector<8x256xf32>
    %c0_395 = arith.constant 0 : index
    %c31_396 = arith.constant 31 : index
    %589 = vector.load %arg32[%c0_395, %c31_396] : memref<48x320xf32, #tpu.memory_space<vmem>>, vector<8x256xf32>
    %c0_i32_397 = arith.constant 0 : i32
    %590 = vector.broadcast %c0_i32_397 : i32 to vector<1x256xi32>
    %591 = arith.cmpi eq, %573, %590 : vector<1x256xi32>
    %cst_398 = arith.constant 0.000000e+00 : f32
    %592 = vector.shape_cast %591 : vector<1x256xi1> to vector<1x256xi1>
    %593 = vector.broadcast %592 : vector<1x256xi1> to vector<8x256xi1>
    %594 = vector.broadcast %cst_398 : f32 to vector<8x256xf32>
    %595 = arith.select %593, %594, %589 : vector<8x256xi1>, vector<8x256xf32>
    %c0_399 = arith.constant 0 : index
    %c32_400 = arith.constant 32 : index
    %596 = vector.load %arg32[%c0_399, %c32_400] : memref<48x320xf32, #tpu.memory_space<vmem>>, vector<8x256xf32>
    %c0_401 = arith.constant 0 : index
    %c33_402 = arith.constant 33 : index
    %597 = vector.load %arg32[%c0_401, %c33_402] : memref<48x320xf32, #tpu.memory_space<vmem>>, vector<8x256xf32>
    %c15_i32_403 = arith.constant 15 : i32
    %598 = vector.broadcast %c15_i32_403 : i32 to vector<1x256xi32>
    %599 = arith.cmpi eq, %573, %598 : vector<1x256xi32>
    %cst_404 = arith.constant 0.000000e+00 : f32
    %600 = vector.shape_cast %599 : vector<1x256xi1> to vector<1x256xi1>
    %601 = vector.broadcast %600 : vector<1x256xi1> to vector<8x256xi1>
    %602 = vector.broadcast %cst_404 : f32 to vector<8x256xf32>
    %603 = arith.select %601, %602, %597 : vector<8x256xi1>, vector<8x256xf32>
    %c0_405 = arith.constant 0 : index
    %c47_406 = arith.constant 47 : index
    %604 = vector.load %arg32[%c0_405, %c47_406] : memref<48x320xf32, #tpu.memory_space<vmem>>, vector<8x256xf32>
    %c0_i32_407 = arith.constant 0 : i32
    %605 = vector.broadcast %c0_i32_407 : i32 to vector<1x256xi32>
    %606 = arith.cmpi eq, %573, %605 : vector<1x256xi32>
    %cst_408 = arith.constant 0.000000e+00 : f32
    %607 = vector.shape_cast %606 : vector<1x256xi1> to vector<1x256xi1>
    %608 = vector.broadcast %607 : vector<1x256xi1> to vector<8x256xi1>
    %609 = vector.broadcast %cst_408 : f32 to vector<8x256xf32>
    %610 = arith.select %608, %609, %604 : vector<8x256xi1>, vector<8x256xf32>
    %c0_409 = arith.constant 0 : index
    %c48_410 = arith.constant 48 : index
    %611 = vector.load %arg32[%c0_409, %c48_410] : memref<48x320xf32, #tpu.memory_space<vmem>>, vector<8x256xf32>
    %c0_411 = arith.constant 0 : index
    %c49_412 = arith.constant 49 : index
    %612 = vector.load %arg32[%c0_411, %c49_412] : memref<48x320xf32, #tpu.memory_space<vmem>>, vector<8x256xf32>
    %c15_i32_413 = arith.constant 15 : i32
    %613 = vector.broadcast %c15_i32_413 : i32 to vector<1x256xi32>
    %614 = arith.cmpi eq, %573, %613 : vector<1x256xi32>
    %cst_414 = arith.constant 0.000000e+00 : f32
    %615 = vector.shape_cast %614 : vector<1x256xi1> to vector<1x256xi1>
    %616 = vector.broadcast %615 : vector<1x256xi1> to vector<8x256xi1>
    %617 = vector.broadcast %cst_414 : f32 to vector<8x256xf32>
    %618 = arith.select %616, %617, %612 : vector<8x256xi1>, vector<8x256xf32>
    %619 = tpu.concatenate %580, %581, %588, %595, %596, %603, %610, %611, %618 in 0 : vector<8x256xf32>, vector<8x256xf32>, vector<8x256xf32>, vector<8x256xf32>, vector<8x256xf32>, vector<8x256xf32>, vector<8x256xf32>, vector<8x256xf32>, vector<8x256xf32> -> vector<72x256xf32>
    %cst_415 = arith.constant dense<0.000000e+00> : vector<8x256xf32>
    %620 = tpu.matmul %566, %619, %cst_415 {dimension_numbers = #tpu.dot_dimension_numbers<[1], [0], [0], [1], [0, 0, 1, 1], [], []>} : vector<8x72xf32>, vector<72x256xf32>, vector<8x256xf32> -> vector<8x256xf32>
    %621 = vector.broadcast %567 : vector<8x1xf32> to vector<8x256xf32>
    %622 = arith.addf %620, %621 : vector<8x256xf32>
    %cst_416 = arith.constant 0.000000e+00 : f32
    %623 = vector.broadcast %cst_416 : f32 to vector<8x256xf32>
    %624 = arith.maximumf %622, %623 : vector<8x256xf32>
    %c0_417 = arith.constant 0 : index
    %c0_418 = arith.constant 0 : index
    %625 = vector.load %arg22[%c0_417, %c0_418] : memref<4x8xf32, #tpu.memory_space<vmem>>, vector<4x8xf32>
    %cst_419 = arith.constant dense<0.000000e+00> : vector<4x256xf32>
    %626 = tpu.matmul %625, %624, %cst_419 {dimension_numbers = #tpu.dot_dimension_numbers<[1], [0], [0], [1], [0, 0, 1, 1], [], []>} : vector<4x8xf32>, vector<8x256xf32>, vector<4x256xf32> -> vector<4x256xf32>
    %c0_420 = arith.constant 0 : index
    %c0_421 = arith.constant 0 : index
    %627 = vector.load %arg23[%c0_420, %c0_421] : memref<4x1xf32, #tpu.memory_space<vmem>>, vector<4x1xf32>
    %628 = vector.broadcast %627 : vector<4x1xf32> to vector<4x256xf32>
    %629 = arith.addf %626, %628 : vector<4x256xf32>
    %c0_422 = arith.constant 0 : index
    %c0_423 = arith.constant 0 : index
    %c0_424 = arith.constant 0 : index
    %630 = vector.load %arg31[%c0_422, %c0_423, %c0_424] : memref<1x4x256xf32, #tpu.memory_space<vmem>>, vector<1x4x256xf32>
    %631 = vector.shape_cast %630 : vector<1x4x256xf32> to vector<4x256xf32>
    %632 = vector.shape_cast %629 : vector<4x256xf32> to vector<1x4x256xf32>
    tpu.vector_store %arg31[%c0_422, %c0_423, %c0_424], %632 {strides = array<i32>} : memref<1x4x256xf32, #tpu.memory_space<vmem>>, vector<1x4x256xf32>,
    return
  }
  func.func @transform_0(%arg0: i32) -> (i32, i32, i32) {
    %c0_i32 = arith.constant 0 : i32
    %c0_i32_0 = arith.constant 0 : i32
    %c0_i32_1 = arith.constant 0 : i32
    return %arg0, %c0_i32, %c0_i32_0 : i32, i32, i32
  }
  func.func @transform_1(%arg0: i32) -> (i32, i32) {
    %c0_i32 = arith.constant 0 : i32
    %c0_i32_0 = arith.constant 0 : i32
    %c0_i32_1 = arith.constant 0 : i32
    return %c0_i32, %c0_i32_0 : i32, i32
  }
  func.func @transform_2(%arg0: i32) -> (i32, i32) {
    %c0_i32 = arith.constant 0 : i32
    %c0_i32_0 = arith.constant 0 : i32
    %c0_i32_1 = arith.constant 0 : i32
    return %c0_i32, %c0_i32_0 : i32, i32
  }
  func.func @transform_3(%arg0: i32) -> (i32, i32) {
    %c0_i32 = arith.constant 0 : i32
    %c0_i32_0 = arith.constant 0 : i32
    %c0_i32_1 = arith.constant 0 : i32
    return %c0_i32, %c0_i32_0 : i32, i32
  }
  func.func @transform_4(%arg0: i32) -> (i32, i32) {
    %c0_i32 = arith.constant 0 : i32
    %c0_i32_0 = arith.constant 0 : i32
    %c0_i32_1 = arith.constant 0 : i32
    return %c0_i32, %c0_i32_0 : i32, i32
  }
  func.func @transform_5(%arg0: i32) -> (i32, i32) {
    %c0_i32 = arith.constant 0 : i32
    %c0_i32_0 = arith.constant 0 : i32
    %c0_i32_1 = arith.constant 0 : i32
    return %c0_i32, %c0_i32_0 : i32, i32
  }
  func.func @transform_6(%arg0: i32) -> (i32, i32) {
    %c0_i32 = arith.constant 0 : i32
    %c0_i32_0 = arith.constant 0 : i32
    %c0_i32_1 = arith.constant 0 : i32
    return %c0_i32, %c0_i32_0 : i32, i32
  }
  func.func @transform_7(%arg0: i32) -> (i32, i32) {
    %c0_i32 = arith.constant 0 : i32
    %c0_i32_0 = arith.constant 0 : i32
    %c0_i32_1 = arith.constant 0 : i32
    return %c0_i32, %c0_i32_0 : i32, i32
  }
  func.func @transform_8(%arg0: i32) -> (i32, i32) {
    %c0_i32 = arith.constant 0 : i32
    %c0_i32_0 = arith.constant 0 : i32
    %c0_i32_1 = arith.constant 0 : i32
    return %c0_i32, %c0_i32_0 : i32, i32
  }
  func.func @transform_9(%arg0: i32) -> (i32, i32) {
    %c0_i32 = arith.constant 0 : i32
    %c0_i32_0 = arith.constant 0 : i32
    %c0_i32_1 = arith.constant 0 : i32
    return %c0_i32, %c0_i32_0 : i32, i32
  }
  func.func @transform_10(%arg0: i32) -> (i32, i32) {
    %c0_i32 = arith.constant 0 : i32
    %c0_i32_0 = arith.constant 0 : i32
    %c0_i32_1 = arith.constant 0 : i32
    return %c0_i32, %c0_i32_0 : i32, i32
  }
  func.func @transform_11(%arg0: i32) -> (i32, i32) {
    %c0_i32 = arith.constant 0 : i32
    %c0_i32_0 = arith.constant 0 : i32
    %c0_i32_1 = arith.constant 0 : i32
    return %c0_i32, %c0_i32_0 : i32, i32
  }
  func.func @transform_12(%arg0: i32) -> (i32, i32) {
    %c0_i32 = arith.constant 0 : i32
    %c0_i32_0 = arith.constant 0 : i32
    %c0_i32_1 = arith.constant 0 : i32
    return %c0_i32, %c0_i32_0 : i32, i32
  }
  func.func @transform_13(%arg0: i32) -> (i32, i32) {
    %c0_i32 = arith.constant 0 : i32
    %c0_i32_0 = arith.constant 0 : i32
    %c0_i32_1 = arith.constant 0 : i32
    return %c0_i32, %c0_i32_0 : i32, i32
  }
  func.func @transform_14(%arg0: i32) -> (i32, i32) {
    %c0_i32 = arith.constant 0 : i32
    %c0_i32_0 = arith.constant 0 : i32
    %c0_i32_1 = arith.constant 0 : i32
    return %c0_i32, %c0_i32_0 : i32, i32
  }
  func.func @transform_15(%arg0: i32) -> (i32, i32) {
    %c0_i32 = arith.constant 0 : i32
    %c0_i32_0 = arith.constant 0 : i32
    %c0_i32_1 = arith.constant 0 : i32
    return %c0_i32, %c0_i32_0 : i32, i32
  }
  func.func @transform_16(%arg0: i32) -> (i32, i32) {
    %c0_i32 = arith.constant 0 : i32
    %c0_i32_0 = arith.constant 0 : i32
    %c0_i32_1 = arith.constant 0 : i32
    return %c0_i32, %c0_i32_0 : i32, i32
  }
  func.func @transform_17(%arg0: i32) -> (i32, i32) {
    %c0_i32 = arith.constant 0 : i32
    %c0_i32_0 = arith.constant 0 : i32
    %c0_i32_1 = arith.constant 0 : i32
    return %c0_i32, %c0_i32_0 : i32, i32
  }
  func.func @transform_18(%arg0: i32) -> (i32, i32) {
    %c0_i32 = arith.constant 0 : i32
    %c0_i32_0 = arith.constant 0 : i32
    %c0_i32_1 = arith.constant 0 : i32
    return %c0_i32, %c0_i32_0 : i32, i32
  }
  func.func @transform_19(%arg0: i32) -> (i32, i32) {
    %c0_i32 = arith.constant 0 : i32
    %c0_i32_0 = arith.constant 0 : i32
    %c0_i32_1 = arith.constant 0 : i32
    return %c0_i32, %c0_i32_0 : i32, i32
  }
  func.func @transform_20(%arg0: i32) -> (i32, i32) {
    %c0_i32 = arith.constant 0 : i32
    %c0_i32_0 = arith.constant 0 : i32
    %c0_i32_1 = arith.constant 0 : i32
    return %c0_i32, %c0_i32_0 : i32, i32
  }
  func.func @transform_21(%arg0: i32) -> (i32, i32) {
    %c0_i32 = arith.constant 0 : i32
    %c0_i32_0 = arith.constant 0 : i32
    %c0_i32_1 = arith.constant 0 : i32
    return %c0_i32, %c0_i32_0 : i32, i32
  }
  func.func @transform_22(%arg0: i32) -> (i32, i32) {
    %c0_i32 = arith.constant 0 : i32
    %c0_i32_0 = arith.constant 0 : i32
    %c0_i32_1 = arith.constant 0 : i32
    return %c0_i32, %c0_i32_0 : i32, i32
  }
  func.func @transform_23(%arg0: i32) -> (i32, i32) {
    %c0_i32 = arith.constant 0 : i32
    %c0_i32_0 = arith.constant 0 : i32
    %c0_i32_1 = arith.constant 0 : i32
    return %c0_i32, %c0_i32_0 : i32, i32
  }
  func.func @transform_24(%arg0: i32) -> (i32, i32) {
    %c0_i32 = arith.constant 0 : i32
    %c0_i32_0 = arith.constant 0 : i32
    %c0_i32_1 = arith.constant 0 : i32
    return %c0_i32, %c0_i32_0 : i32, i32
  }
  func.func @transform_25(%arg0: i32) -> (i32, i32) {
    %c0_i32 = arith.constant 0 : i32
    %c0_i32_0 = arith.constant 0 : i32
    %c0_i32_1 = arith.constant 0 : i32
    return %c0_i32, %c0_i32_0 : i32, i32
  }
  func.func @transform_26(%arg0: i32) -> (i32, i32) {
    %c0_i32 = arith.constant 0 : i32
    %c0_i32_0 = arith.constant 0 : i32
    %c0_i32_1 = arith.constant 0 : i32
    return %c0_i32, %c0_i32_0 : i32, i32
  }
  func.func @transform_27(%arg0: i32) -> (i32, i32, i32) {
    %c0_i32 = arith.constant 0 : i32
    %c0_i32_0 = arith.constant 0 : i32
    %c0_i32_1 = arith.constant 0 : i32
    return %arg0, %c0_i32, %c0_i32_0 : i32, i32, i32
  }
  func.func @transform_28(%arg0: i32) -> (i32, i32, i32) {
    %c0_i32 = arith.constant 0 : i32
    %c0_i32_0 = arith.constant 0 : i32
    %c0_i32_1 = arith.constant 0 : i32
    return %arg0, %c0_i32, %c0_i32_0 : i32, i32, i32
  }
  func.func @transform_29(%arg0: i32) -> (i32, i32, i32) {
    %c0_i32 = arith.constant 0 : i32
    %c0_i32_0 = arith.constant 0 : i32
    %c0_i32_1 = arith.constant 0 : i32
    return %arg0, %c0_i32, %c0_i32_0 : i32, i32, i32
  }
  func.func @transform_30(%arg0: i32) -> (i32, i32, i32) {
    %c0_i32 = arith.constant 0 : i32
    %c0_i32_0 = arith.constant 0 : i32
    %c0_i32_1 = arith.constant 0 : i32
    return %arg0, %c0_i32, %c0_i32_0 : i32, i32, i32
  }
}

</mosaic_0001>

<llo_original>
// kernel: unet_forward.1
$region0: #{unet_forward.1}
  #allocation0 [shape = 'u32[]', space=smem, size = 0x4, offset = 0x4, fixed_abs, tag = 'smem constant byte address 0x4 - core index']
  #allocation1 [shape = 'u32[144,128]{1,0:T(1,128)}', space=vmem, size = 0x12000, scoped, tag = 'internal scratch']
  #allocation2 [shape = 'f32[48,320]{1,0:T(8,128)}', space=vmem, size = 0x12000, scoped, tag = 'scratch operand']
  %s0 = inlined_call_operand.smem [shape: u32[31], index: -1, kind: input, shape index: {}]
  %s1 = sld [smem:[%s0]]
  %s2 = scalar_lea.smem %s0, 1
  %s3 = sld [smem:[%s2]]
  %s4 = scalar_lea.smem %s0, 2
  %s5 = sld [smem:[%s4]]
  %s6 = scalar_lea.smem %s0, 3
  %s7 = sld [smem:[%s6]]
  %s8 = scalar_lea.smem %s0, 4
  %s9 = sld [smem:[%s8]]
  %s10 = scalar_lea.smem %s0, 5
  %s11 = sld [smem:[%s10]]
  %s12 = scalar_lea.smem %s0, 6
  %s13 = sld [smem:[%s12]]
  %s14 = scalar_lea.smem %s0, 7
  %s15 = sld [smem:[%s14]]
  %s16 = scalar_lea.smem %s0, 8
  %s17 = sld [smem:[%s16]]
  %s18 = scalar_lea.smem %s0, 9
  %s19 = sld [smem:[%s18]]
  %s20 = scalar_lea.smem %s0, 10
  %s21 = sld [smem:[%s20]]
  %s22 = scalar_lea.smem %s0, 11
  %s23 = sld [smem:[%s22]]
  %s24 = scalar_lea.smem %s0, 12
  %s25 = sld [smem:[%s24]]
  %s26 = scalar_lea.smem %s0, 13
  %s27 = sld [smem:[%s26]]
  %s28 = scalar_lea.smem %s0, 14
  %s29 = sld [smem:[%s28]]
  %s30 = scalar_lea.smem %s0, 15
  %s31 = sld [smem:[%s30]]
  %s32 = scalar_lea.smem %s0, 16
  %s33 = sld [smem:[%s32]]
  %s34 = scalar_lea.smem %s0, 17
  %s35 = sld [smem:[%s34]]
  %s36 = scalar_lea.smem %s0, 18
  %s37 = sld [smem:[%s36]]
  %s38 = scalar_lea.smem %s0, 19
  %s39 = sld [smem:[%s38]]
  %s40 = scalar_lea.smem %s0, 20
  %s41 = sld [smem:[%s40]]
  %s42 = scalar_lea.smem %s0, 21
  %s43 = sld [smem:[%s42]]
  %s44 = scalar_lea.smem %s0, 22
  %s45 = sld [smem:[%s44]]
  %s46 = scalar_lea.smem %s0, 23
  %s47 = sld [smem:[%s46]]
  %s48 = scalar_lea.smem %s0, 24
  %s49 = sld [smem:[%s48]]
  %s50 = scalar_lea.smem %s0, 25
  %s51 = sld [smem:[%s50]]
  %s52 = scalar_lea.smem %s0, 26
  %s53 = sld [smem:[%s52]]
  %s54 = scalar_lea.smem %s0, 27
  %s55 = sld [smem:[%s54]]
  %s56 = scalar_lea.smem %s0, 28
  %s57 = sld [smem:[%s56]]
  %s58 = scalar_lea.smem %s0, 29
  %s59 = sld [smem:[%s58]]
  %s60 = scalar_lea.smem %s0, 30
  %s61 = sld [smem:[%s60]]
  %62 = xla_tuple %s55, %s57, %s59, %s61
  %s63 = sld [smem:[#allocation0]]
  $region165: #{unet_forward.1} parent=0
    _
  %s65 = ssub.s32 1, %s63
  %s66 = scalar_select 0, %s65, %s63
  loop: start=0, step=1, limit=4
  $region2: #{unet_forward.1} parent=0 // loop_pre_header
    _
  $region3: #{unet_forward.1} parent=0 // loop_header
    %s68 = sphi 0, %s72
    %p69 = scmp.ge.s32.totalorder %s68, 4
    %s78 = sphi 0, %s80
    %s81 = sphi 0, %s78
    %s82 = sphi 0, %s81
    %s98 = sphi 0, %s82
    %s102 = sphi 0, %s102
    %s104 = sphi 0, %s102
    %s105 = sphi 0, %s104
    %s119 = sphi 0, %s105
    %s123 = sphi 0, %s123
    %s125 = sphi 0, %s123
    %s126 = sphi 0, %s125
    %s140 = sphi 0, %s126
    %s144 = sphi 0, %s144
    %s146 = sphi 0, %s144
    %s147 = sphi 0, %s146
    %s161 = sphi 0, %s147
    %s165 = sphi 0, %s165
    %s167 = sphi 0, %s165
    %s168 = sphi 0, %s167
    %s182 = sphi 0, %s168
    %s186 = sphi 0, %s186
    %s188 = sphi 0, %s186
    %s189 = sphi 0, %s188
    %s203 = sphi 0, %s189
    %s207 = sphi 0, %s207
    %s209 = sphi 0, %s207
    %s210 = sphi 0, %s209
    %s224 = sphi 0, %s210
    %s228 = sphi 0, %s228
    %s230 = sphi 0, %s228
    %s231 = sphi 0, %s230
    %s245 = sphi 0, %s231
    %s249 = sphi 0, %s249
    %s251 = sphi 0, %s249
    %s252 = sphi 0, %s251
    %s266 = sphi 0, %s252
    %s270 = sphi 0, %s270
    %s272 = sphi 0, %s270
    %s273 = sphi 0, %s272
    %s287 = sphi 0, %s273
    %s291 = sphi 0, %s291
    %s293 = sphi 0, %s291
    %s294 = sphi 0, %s293
    %s308 = sphi 0, %s294
    %s312 = sphi 0, %s312
    %s314 = sphi 0, %s312
    %s315 = sphi 0, %s314
    %s329 = sphi 0, %s315
    %s333 = sphi 0, %s333
    %s335 = sphi 0, %s333
    %s336 = sphi 0, %s335
    %s350 = sphi 0, %s336
    %s354 = sphi 0, %s354
    %s356 = sphi 0, %s354
    %s357 = sphi 0, %s356
    %s371 = sphi 0, %s357
    %s375 = sphi 0, %s375
    %s377 = sphi 0, %s375
    %s378 = sphi 0, %s377
    %s392 = sphi 0, %s378
    %s396 = sphi 0, %s396
    %s398 = sphi 0, %s396
    %s399 = sphi 0, %s398
    %s413 = sphi 0, %s399
    %s417 = sphi 0, %s417
    %s419 = sphi 0, %s417
    %s420 = sphi 0, %s419
    %s434 = sphi 0, %s420
    %s438 = sphi 0, %s438
    %s440 = sphi 0, %s438
    %s441 = sphi 0, %s440
    %s455 = sphi 0, %s441
    %s459 = sphi 0, %s459
    %s461 = sphi 0, %s459
    %s462 = sphi 0, %s461
    %s476 = sphi 0, %s462
    %s480 = sphi 0, %s480
    %s482 = sphi 0, %s480
    %s483 = sphi 0, %s482
    %s497 = sphi 0, %s483
    %s501 = sphi 0, %s501
    %s503 = sphi 0, %s501
    %s504 = sphi 0, %s503
    %s518 = sphi 0, %s504
    %s522 = sphi 0, %s522
    %s524 = sphi 0, %s522
    %s525 = sphi 0, %s524
    %s539 = sphi 0, %s525
    %s543 = sphi 0, %s543
    %s545 = sphi 0, %s543
    %s546 = sphi 0, %s545
    %s560 = sphi 0, %s546
    %s564 = sphi 0, %s564
    %s566 = sphi 0, %s564
    %s567 = sphi 0, %s566
    %s581 = sphi 0, %s567
    %s585 = sphi 0, %s585
    %s587 = sphi 0, %s585
    %s588 = sphi 0, %s587
    %s602 = sphi 0, %s588
    %s606 = sphi 0, %s606
    %s608 = sphi 0, %s606
    %s609 = sphi 0, %s608
    %s623 = sphi 0, %s609
    %s627 = sphi 0, %s627
    %s629 = sphi 0, %s627
    %s630 = sphi 0, %s629
    %s644 = sphi 0, %s630
    %s650 = sphi 0, %s652
    %s653 = sphi 0, %s650
    %s654 = sphi 0, %s653
    %s670 = sphi 0, %s654
    %s676 = sphi 0, %s678
    %s679 = sphi 0, %s676
    %s680 = sphi 0, %s679
    %s696 = sphi 0, %s680
    %s702 = sphi 0, %s704
    %s705 = sphi 0, %s702
    %s706 = sphi 0, %s705
    %s722 = sphi 0, %s706
    %s728 = sphi 0, %s730
    %s731 = sphi 0, %s728
    %s732 = sphi 0, %s731
    %s748 = sphi 0, %s732
  $region4: #{unet_forward.1} parent=0 // loop_header_branch
    %71 = sbr.rel (%p69) target = $region8
  $region5: #{unet_forward.1} parent=0 // loop_body
    %s73 = ssub.s32 %s68, 1
    %s74 = ssub.s32 %s68, 2
    %s75 = sadd.s32 %s68, 1
    %s76 = ssub.s32 %s68, %s75
    %p77 = scmp.eq.s32.totalorder %s76, 0
    %s79 = sadd.s32 %s78, 1
    %s80 = scalar_select %p77, %s78, %s79
    %p83 = pneg %p77
    %p84 = scmp.eq.s32.totalorder %s68, 1
    %p85 = por %p83, %p84
    %p86 = scmp.ne.s32.totalorder %s78, %s81
    %p87 = scmp.eq.s32.totalorder %s68, 0
    %p88 = por %p86, %p87
    %p89 = scmp.ne.s32.totalorder %s78, %s81
    %p90 = scmp.eq.s32.totalorder %s73, 1
    %p91 = por %p89, %p90
    %p92 = scmp.ne.s32.totalorder %s81, %s82
    %p93 = scmp.eq.s32.totalorder %s73, 0
    %p94 = por %p92, %p93
    %p95 = scmp.ne.s32.totalorder %s81, %s82
    %p96 = scmp.eq.s32.totalorder %s74, 1
    %p97 = por %p95, %p96
    %p99 = scmp.ne.s32.totalorder %s82, %s98
    %p100 = scmp.eq.s32.totalorder %s74, 0
    %p101 = por %p99, %p100
    %s103 = sadd.s32 %s102, 1
    %p106 = scmp.eq.s32.totalorder %s68, 1
    %p107 = scmp.ne.s32.totalorder %s102, %s104
    %p108 = scmp.eq.s32.totalorder %s68, 0
    %p109 = por %p107, %p108
    %p110 = scmp.ne.s32.totalorder %s102, %s104
    %p111 = scmp.eq.s32.totalorder %s73, 1
    %p112 = por %p110, %p111
    %p113 = scmp.ne.s32.totalorder %s104, %s105
    %p114 = scmp.eq.s32.totalorder %s73, 0
    %p115 = por %p113, %p114
    %p116 = scmp.ne.s32.totalorder %s104, %s105
    %p117 = scmp.eq.s32.totalorder %s74, 1
    %p118 = por %p116, %p117
    %p120 = scmp.ne.s32.totalorder %s105, %s119
    %p121 = scmp.eq.s32.totalorder %s74, 0
    %p122 = por %p120, %p121
    %s124 = sadd.s32 %s123, 1
    %p127 = scmp.eq.s32.totalorder %s68, 1
    %p128 = scmp.ne.s32.totalorder %s123, %s125
    %p129 = scmp.eq.s32.totalorder %s68, 0
    %p130 = por %p128, %p129
    %p131 = scmp.ne.s32.totalorder %s123, %s125
    %p132 = scmp.eq.s32.totalorder %s73, 1
    %p133 = por %p131, %p132
    %p134 = scmp.ne.s32.totalorder %s125, %s126
    %p135 = scmp.eq.s32.totalorder %s73, 0
    %p136 = por %p134, %p135
    %p137 = scmp.ne.s32.totalorder %s125, %s126
    %p138 = scmp.eq.s32.totalorder %s74, 1
    %p139 = por %p137, %p138
    %p141 = scmp.ne.s32.totalorder %s126, %s140
    %p142 = scmp.eq.s32.totalorder %s74, 0
    %p143 = por %p141, %p142
    %s145 = sadd.s32 %s144, 1
    %p148 = scmp.eq.s32.totalorder %s68, 1
    %p149 = scmp.ne.s32.totalorder %s144, %s146
    %p150 = scmp.eq.s32.totalorder %s68, 0
    %p151 = por %p149, %p150
    %p152 = scmp.ne.s32.totalorder %s144, %s146
    %p153 = scmp.eq.s32.totalorder %s73, 1
    %p154 = por %p152, %p153
    %p155 = scmp.ne.s32.totalorder %s146, %s147
    %p156 = scmp.eq.s32.totalorder %s73, 0
    %p157 = por %p155, %p156
    %p158 = scmp.ne.s32.totalorder %s146, %s147
    %p159 = scmp.eq.s32.totalorder %s74, 1
    %p160 = por %p158, %p159
    %p162 = scmp.ne.s32.totalorder %s147, %s161
    %p163 = scmp.eq.s32.totalorder %s74, 0
    %p164 = por %p162, %p163
    %s166 = sadd.s32 %s165, 1
    %p169 = scmp.eq.s32.totalorder %s68, 1
    %p170 = scmp.ne.s32.totalorder %s165, %s167
    %p171 = scmp.eq.s32.totalorder %s68, 0
    %p172 = por %p170, %p171
    %p173 = scmp.ne.s32.totalorder %s165, %s167
    %p174 = scmp.eq.s32.totalorder %s73, 1
    %p175 = por %p173, %p174
    %p176 = scmp.ne.s32.totalorder %s167, %s168
    %p177 = scmp.eq.s32.totalorder %s73, 0
    %p178 = por %p176, %p177
    %p179 = scmp.ne.s32.totalorder %s167, %s168
    %p180 = scmp.eq.s32.totalorder %s74, 1
    %p181 = por %p179, %p180
    %p183 = scmp.ne.s32.totalorder %s168, %s182
    %p184 = scmp.eq.s32.totalorder %s74, 0
    %p185 = por %p183, %p184
    %s187 = sadd.s32 %s186, 1
    %p190 = scmp.eq.s32.totalorder %s68, 1
    %p191 = scmp.ne.s32.totalorder %s186, %s188
    %p192 = scmp.eq.s32.totalorder %s68, 0
    %p193 = por %p191, %p192
    %p194 = scmp.ne.s32.totalorder %s186, %s188
    %p195 = scmp.eq.s32.totalorder %s73, 1
    %p196 = por %p194, %p195
    %p197 = scmp.ne.s32.totalorder %s188, %s189
    %p198 = scmp.eq.s32.totalorder %s73, 0
    %p199 = por %p197, %p198
    %p200 = scmp.ne.s32.totalorder %s188, %s189
    %p201 = scmp.eq.s32.totalorder %s74, 1
    %p202 = por %p200, %p201
    %p204 = scmp.ne.s32.totalorder %s189, %s203
    %p205 = scmp.eq.s32.totalorder %s74, 0
    %p206 = por %p204, %p205
    %s208 = sadd.s32 %s207, 1
    %p211 = scmp.eq.s32.totalorder %s68, 1
    %p212 = scmp.ne.s32.totalorder %s207, %s209
    %p213 = scmp.eq.s32.totalorder %s68, 0
    %p214 = por %p212, %p213
    %p215 = scmp.ne.s32.totalorder %s207, %s209
    %p216 = scmp.eq.s32.totalorder %s73, 1
    %p217 = por %p215, %p216
    %p218 = scmp.ne.s32.totalorder %s209, %s210
    %p219 = scmp.eq.s32.totalorder %s73, 0
    %p220 = por %p218, %p219
    %p221 = scmp.ne.s32.totalorder %s209, %s210
    %p222 = scmp.eq.s32.totalorder %s74, 1
    %p223 = por %p221, %p222
    %p225 = scmp.ne.s32.totalorder %s210, %s224
    %p226 = scmp.eq.s32.totalorder %s74, 0
    %p227 = por %p225, %p226
    %s229 = sadd.s32 %s228, 1
    %p232 = scmp.eq.s32.totalorder %s68, 1
    %p233 = scmp.ne.s32.totalorder %s228, %s230
    %p234 = scmp.eq.s32.totalorder %s68, 0
    %p235 = por %p233, %p234
    %p236 = scmp.ne.s32.totalorder %s228, %s230
    %p237 = scmp.eq.s32.totalorder %s73, 1
    %p238 = por %p236, %p237
    %p239 = scmp.ne.s32.totalorder %s230, %s231
    %p240 = scmp.eq.s32.totalorder %s73, 0
    %p241 = por %p239, %p240
    %p242 = scmp.ne.s32.totalorder %s230, %s231
    %p243 = scmp.eq.s32.totalorder %s74, 1
    %p244 = por %p242, %p243
    %p246 = scmp.ne.s32.totalorder %s231, %s245
    %p247 = scmp.eq.s32.totalorder %s74, 0
    %p248 = por %p246, %p247
    %s250 = sadd.s32 %s249, 1
    %p253 = scmp.eq.s32.totalorder %s68, 1
    %p254 = scmp.ne.s32.totalorder %s249, %s251
    %p255 = scmp.eq.s32.totalorder %s68, 0
    %p256 = por %p254, %p255
    %p257 = scmp.ne.s32.totalorder %s249, %s251
    %p258 = scmp.eq.s32.totalorder %s73, 1
    %p259 = por %p257, %p258
    %p260 = scmp.ne.s32.totalorder %s251, %s252
    %p261 = scmp.eq.s32.totalorder %s73, 0
    %p262 = por %p260, %p261
    %p263 = scmp.ne.s32.totalorder %s251, %s252
    %p264 = scmp.eq.s32.totalorder %s74, 1
    %p265 = por %p263, %p264
    %p267 = scmp.ne.s32.totalorder %s252, %s266
    %p268 = scmp.eq.s32.totalorder %s74, 0
    %p269 = por %p267, %p268
    %s271 = sadd.s32 %s270, 1
    %p274 = scmp.eq.s32.totalorder %s68, 1
    %p275 = scmp.ne.s32.totalorder %s270, %s272
    %p276 = scmp.eq.s32.totalorder %s68, 0
    %p277 = por %p275, %p276
    %p278 = scmp.ne.s32.totalorder %s270, %s272
    %p279 = scmp.eq.s32.totalorder %s73, 1
    %p280 = por %p278, %p279
    %p281 = scmp.ne.s32.totalorder %s272, %s273
    %p282 = scmp.eq.s32.totalorder %s73, 0
    %p283 = por %p281, %p282
    %p284 = scmp.ne.s32.totalorder %s272, %s273
    %p285 = scmp.eq.s32.totalorder %s74, 1
    %p286 = por %p284, %p285
    %p288 = scmp.ne.s32.totalorder %s273, %s287
    %p289 = scmp.eq.s32.totalorder %s74, 0
    %p290 = por %p288, %p289
    %s292 = sadd.s32 %s291, 1
    %p295 = scmp.eq.s32.totalorder %s68, 1
    %p296 = scmp.ne.s32.totalorder %s291, %s293
    %p297 = scmp.eq.s32.totalorder %s68, 0
    %p298 = por %p296, %p297
    %p299 = scmp.ne.s32.totalorder %s291, %s293
    %p300 = scmp.eq.s32.totalorder %s73, 1
    %p301 = por %p299, %p300
    %p302 = scmp.ne.s32.totalorder %s293, %s294
    %p303 = scmp.eq.s32.totalorder %s73, 0
    %p304 = por %p302, %p303
    %p305 = scmp.ne.s32.totalorder %s293, %s294
    %p306 = scmp.eq.s32.totalorder %s74, 1
    %p307 = por %p305, %p306
    %p309 = scmp.ne.s32.totalorder %s294, %s308
    %p310 = scmp.eq.s32.totalorder %s74, 0
    %p311 = por %p309, %p310
    %s313 = sadd.s32 %s312, 1
    %p316 = scmp.eq.s32.totalorder %s68, 1
    %p317 = scmp.ne.s32.totalorder %s312, %s314
    %p318 = scmp.eq.s32.totalorder %s68, 0
    %p319 = por %p317, %p318
    %p320 = scmp.ne.s32.totalorder %s312, %s314
    %p321 = scmp.eq.s32.totalorder %s73, 1
    %p322 = por %p320, %p321
    %p323 = scmp.ne.s32.totalorder %s314, %s315
    %p324 = scmp.eq.s32.totalorder %s73, 0
    %p325 = por %p323, %p324
    %p326 = scmp.ne.s32.totalorder %s314, %s315
    %p327 = scmp.eq.s32.totalorder %s74, 1
    %p328 = por %p326, %p327
    %p330 = scmp.ne.s32.totalorder %s315, %s329
    %p331 = scmp.eq.s32.totalorder %s74, 0
    %p332 = por %p330, %p331
    %s334 = sadd.s32 %s333, 1
    %p337 = scmp.eq.s32.totalorder %s68, 1
    %p338 = scmp.ne.s32.totalorder %s333, %s335
    %p339 = scmp.eq.s32.totalorder %s68, 0
    %p340 = por %p338, %p339
    %p341 = scmp.ne.s32.totalorder %s333, %s335
    %p342 = scmp.eq.s32.totalorder %s73, 1
    %p343 = por %p341, %p342
    %p344 = scmp.ne.s32.totalorder %s335, %s336
    %p345 = scmp.eq.s32.totalorder %s73, 0
    %p346 = por %p344, %p345
    %p347 = scmp.ne.s32.totalorder %s335, %s336
    %p348 = scmp.eq.s32.totalorder %s74, 1
    %p349 = por %p347, %p348
    %p351 = scmp.ne.s32.totalorder %s336, %s350
    %p352 = scmp.eq.s32.totalorder %s74, 0
    %p353 = por %p351, %p352
    %s355 = sadd.s32 %s354, 1
    %p358 = scmp.eq.s32.totalorder %s68, 1
    %p359 = scmp.ne.s32.totalorder %s354, %s356
    %p360 = scmp.eq.s32.totalorder %s68, 0
    %p361 = por %p359, %p360
    %p362 = scmp.ne.s32.totalorder %s354, %s356
    %p363 = scmp.eq.s32.totalorder %s73, 1
    %p364 = por %p362, %p363
    %p365 = scmp.ne.s32.totalorder %s356, %s357
    %p366 = scmp.eq.s32.totalorder %s73, 0
    %p367 = por %p365, %p366
    %p368 = scmp.ne.s32.totalorder %s356, %s357
    %p369 = scmp.eq.s32.totalorder %s74, 1
    %p370 = por %p368, %p369
    %p372 = scmp.ne.s32.totalorder %s357, %s371
    %p373 = scmp.eq.s32.totalorder %s74, 0
    %p374 = por %p372, %p373
    %s376 = sadd.s32 %s375, 1
    %p379 = scmp.eq.s32.totalorder %s68, 1
    %p380 = scmp.ne.s32.totalorder %s375, %s377
    %p381 = scmp.eq.s32.totalorder %s68, 0
    %p382 = por %p380, %p381
    %p383 = scmp.ne.s32.totalorder %s375, %s377
    %p384 = scmp.eq.s32.totalorder %s73, 1
    %p385 = por %p383, %p384
    %p386 = scmp.ne.s32.totalorder %s377, %s378
    %p387 = scmp.eq.s32.totalorder %s73, 0
    %p388 = por %p386, %p387
    %p389 = scmp.ne.s32.totalorder %s377, %s378
    %p390 = scmp.eq.s32.totalorder %s74, 1
    %p391 = por %p389, %p390
    %p393 = scmp.ne.s32.totalorder %s378, %s392
    %p394 = scmp.eq.s32.totalorder %s74, 0
    %p395 = por %p393, %p394
    %s397 = sadd.s32 %s396, 1
    %p400 = scmp.eq.s32.totalorder %s68, 1
    %p401 = scmp.ne.s32.totalorder %s396, %s398
    %p402 = scmp.eq.s32.totalorder %s68, 0
    %p403 = por %p401, %p402
    %p404 = scmp.ne.s32.totalorder %s396, %s398
    %p405 = scmp.eq.s32.totalorder %s73, 1
    %p406 = por %p404, %p405
    %p407 = scmp.ne.s32.totalorder %s398, %s399
    %p408 = scmp.eq.s32.totalorder %s73, 0
    %p409 = por %p407, %p408
    %p410 = scmp.ne.s32.totalorder %s398, %s399
    %p411 = scmp.eq.s32.totalorder %s74, 1
    %p412 = por %p410, %p411
    %p414 = scmp.ne.s32.totalorder %s399, %s413
    %p415 = scmp.eq.s32.totalorder %s74, 0
    %p416 = por %p414, %p415
    %s418 = sadd.s32 %s417, 1
    %p421 = scmp.eq.s32.totalorder %s68, 1
    %p422 = scmp.ne.s32.totalorder %s417, %s419
    %p423 = scmp.eq.s32.totalorder %s68, 0
    %p424 = por %p422, %p423
    %p425 = scmp.ne.s32.totalorder %s417, %s419
    %p426 = scmp.eq.s32.totalorder %s73, 1
    %p427 = por %p425, %p426
    %p428 = scmp.ne.s32.totalorder %s419, %s420
    %p429 = scmp.eq.s32.totalorder %s73, 0
    %p430 = por %p428, %p429
    %p431 = scmp.ne.s32.totalorder %s419, %s420
    %p432 = scmp.eq.s32.totalorder %s74, 1
    %p433 = por %p431, %p432
    %p435 = scmp.ne.s32.totalorder %s420, %s434
    %p436 = scmp.eq.s32.totalorder %s74, 0
    %p437 = por %p435, %p436
    %s439 = sadd.s32 %s438, 1
    %p442 = scmp.eq.s32.totalorder %s68, 1
    %p443 = scmp.ne.s32.totalorder %s438, %s440
    %p444 = scmp.eq.s32.totalorder %s68, 0
    %p445 = por %p443, %p444
    %p446 = scmp.ne.s32.totalorder %s438, %s440
    %p447 = scmp.eq.s32.totalorder %s73, 1
    %p448 = por %p446, %p447
    %p449 = scmp.ne.s32.totalorder %s440, %s441
    %p450 = scmp.eq.s32.totalorder %s73, 0
    %p451 = por %p449, %p450
    %p452 = scmp.ne.s32.totalorder %s440, %s441
    %p453 = scmp.eq.s32.totalorder %s74, 1
    %p454 = por %p452, %p453
    %p456 = scmp.ne.s32.totalorder %s441, %s455
    %p457 = scmp.eq.s32.totalorder %s74, 0
    %p458 = por %p456, %p457
    %s460 = sadd.s32 %s459, 1
    %p463 = scmp.eq.s32.totalorder %s68, 1
    %p464 = scmp.ne.s32.totalorder %s459, %s461
    %p465 = scmp.eq.s32.totalorder %s68, 0
    %p466 = por %p464, %p465
    %p467 = scmp.ne.s32.totalorder %s459, %s461
    %p468 = scmp.eq.s32.totalorder %s73, 1
    %p469 = por %p467, %p468
    %p470 = scmp.ne.s32.totalorder %s461, %s462
    %p471 = scmp.eq.s32.totalorder %s73, 0
    %p472 = por %p470, %p471
    %p473 = scmp.ne.s32.totalorder %s461, %s462
    %p474 = scmp.eq.s32.totalorder %s74, 1
    %p475 = por %p473, %p474
    %p477 = scmp.ne.s32.totalorder %s462, %s476
    %p478 = scmp.eq.s32.totalorder %s74, 0
    %p479 = por %p477, %p478
    %s481 = sadd.s32 %s480, 1
    %p484 = scmp.eq.s32.totalorder %s68, 1
    %p485 = scmp.ne.s32.totalorder %s480, %s482
    %p486 = scmp.eq.s32.totalorder %s68, 0
    %p487 = por %p485, %p486
    %p488 = scmp.ne.s32.totalorder %s480, %s482
    %p489 = scmp.eq.s32.totalorder %s73, 1
    %p490 = por %p488, %p489
    %p491 = scmp.ne.s32.totalorder %s482, %s483
    %p492 = scmp.eq.s32.totalorder %s73, 0
    %p493 = por %p491, %p492
    %p494 = scmp.ne.s32.totalorder %s482, %s483
    %p495 = scmp.eq.s32.totalorder %s74, 1
    %p496 = por %p494, %p495
    %p498 = scmp.ne.s32.totalorder %s483, %s497
    %p499 = scmp.eq.s32.totalorder %s74, 0
    %p500 = por %p498, %p499
    %s502 = sadd.s32 %s501, 1
    %p505 = scmp.eq.s32.totalorder %s68, 1
    %p506 = scmp.ne.s32.totalorder %s501, %s503
    %p507 = scmp.eq.s32.totalorder %s68, 0
    %p508 = por %p506, %p507
    %p509 = scmp.ne.s32.totalorder %s501, %s503
    %p510 = scmp.eq.s32.totalorder %s73, 1
    %p511 = por %p509, %p510
    %p512 = scmp.ne.s32.totalorder %s503, %s504
    %p513 = scmp.eq.s32.totalorder %s73, 0
    %p514 = por %p512, %p513
    %p515 = scmp.ne.s32.totalorder %s503, %s504
    %p516 = scmp.eq.s32.totalorder %s74, 1
    %p517 = por %p515, %p516
    %p519 = scmp.ne.s32.totalorder %s504, %s518
    %p520 = scmp.eq.s32.totalorder %s74, 0
    %p521 = por %p519, %p520
    %s523 = sadd.s32 %s522, 1
    %p526 = scmp.eq.s32.totalorder %s68, 1
    %p527 = scmp.ne.s32.totalorder %s522, %s524
    %p528 = scmp.eq.s32.totalorder %s68, 0
    %p529 = por %p527, %p528
    %p530 = scmp.ne.s32.totalorder %s522, %s524
    %p531 = scmp.eq.s32.totalorder %s73, 1
    %p532 = por %p530, %p531
    %p533 = scmp.ne.s32.totalorder %s524, %s525
    %p534 = scmp.eq.s32.totalorder %s73, 0
    %p535 = por %p533, %p534
    %p536 = scmp.ne.s32.totalorder %s524, %s525
    %p537 = scmp.eq.s32.totalorder %s74, 1
    %p538 = por %p536, %p537
    %p540 = scmp.ne.s32.totalorder %s525, %s539
    %p541 = scmp.eq.s32.totalorder %s74, 0
    %p542 = por %p540, %p541
    %s544 = sadd.s32 %s543, 1
    %p547 = scmp.eq.s32.totalorder %s68, 1
    %p548 = scmp.ne.s32.totalorder %s543, %s545
    %p549 = scmp.eq.s32.totalorder %s68, 0
    %p550 = por %p548, %p549
    %p551 = scmp.ne.s32.totalorder %s543, %s545
    %p552 = scmp.eq.s32.totalorder %s73, 1
    %p553 = por %p551, %p552
    %p554 = scmp.ne.s32.totalorder %s545, %s546
    %p555 = scmp.eq.s32.totalorder %s73, 0
    %p556 = por %p554, %p555
    %p557 = scmp.ne.s32.totalorder %s545, %s546
    %p558 = scmp.eq.s32.totalorder %s74, 1
    %p559 = por %p557, %p558
    %p561 = scmp.ne.s32.totalorder %s546, %s560
    %p562 = scmp.eq.s32.totalorder %s74, 0
    %p563 = por %p561, %p562
    %s565 = sadd.s32 %s564, 1
    %p568 = scmp.eq.s32.totalorder %s68, 1
    %p569 = scmp.ne.s32.totalorder %s564, %s566
    %p570 = scmp.eq.s32.totalorder %s68, 0
    %p571 = por %p569, %p570
    %p572 = scmp.ne.s32.totalorder %s564, %s566
    %p573 = scmp.eq.s32.totalorder %s73, 1
    %p574 = por %p572, %p573
    %p575 = scmp.ne.s32.totalorder %s566, %s567
    %p576 = scmp.eq.s32.totalorder %s73, 0
    %p577 = por %p575, %p576
    %p578 = scmp.ne.s32.totalorder %s566, %s567
    %p579 = scmp.eq.s32.totalorder %s74, 1
    %p580 = por %p578, %p579
    %p582 = scmp.ne.s32.totalorder %s567, %s581
    %p583 = scmp.eq.s32.totalorder %s74, 0
    %p584 = por %p582, %p583
    %s586 = sadd.s32 %s585, 1
    %p589 = scmp.eq.s32.totalorder %s68, 1
    %p590 = scmp.ne.s32.totalorder %s585, %s587
    %p591 = scmp.eq.s32.totalorder %s68, 0
    %p592 = por %p590, %p591
    %p593 = scmp.ne.s32.totalorder %s585, %s587
    %p594 = scmp.eq.s32.totalorder %s73, 1
    %p595 = por %p593, %p594
    %p596 = scmp.ne.s32.totalorder %s587, %s588
    %p597 = scmp.eq.s32.totalorder %s73, 0
    %p598 = por %p596, %p597
    %p599 = scmp.ne.s32.totalorder %s587, %s588
    %p600 = scmp.eq.s32.totalorder %s74, 1
    %p601 = por %p599, %p600
    %p603 = scmp.ne.s32.totalorder %s588, %s602
    %p604 = scmp.eq.s32.totalorder %s74, 0
    %p605 = por %p603, %p604
    %s607 = sadd.s32 %s606, 1
    %p610 = scmp.eq.s32.totalorder %s68, 1
    %p611 = scmp.ne.s32.totalorder %s606, %s608
    %p612 = scmp.eq.s32.totalorder %s68, 0
    %p613 = por %p611, %p612
    %p614 = scmp.ne.s32.totalorder %s606, %s608
    %p615 = scmp.eq.s32.totalorder %s73, 1
    %p616 = por %p614, %p615
    %p617 = scmp.ne.s32.totalorder %s608, %s609
    %p618 = scmp.eq.s32.totalorder %s73, 0
    %p619 = por %p617, %p618
    %p620 = scmp.ne.s32.totalorder %s608, %s609
    %p621 = scmp.eq.s32.totalorder %s74, 1
    %p622 = por %p620, %p621
    %p624 = scmp.ne.s32.totalorder %s609, %s623
    %p625 = scmp.eq.s32.totalorder %s74, 0
    %p626 = por %p624, %p625
    %s628 = sadd.s32 %s627, 1
    %p631 = scmp.eq.s32.totalorder %s68, 1
    %p632 = scmp.ne.s32.totalorder %s627, %s629
    %p633 = scmp.eq.s32.totalorder %s68, 0
    %p634 = por %p632, %p633
    %p635 = scmp.ne.s32.totalorder %s627, %s629
    %p636 = scmp.eq.s32.totalorder %s73, 1
    %p637 = por %p635, %p636
    %p638 = scmp.ne.s32.totalorder %s629, %s630
    %p639 = scmp.eq.s32.totalorder %s73, 0
    %p640 = por %p638, %p639
    %p641 = scmp.ne.s32.totalorder %s629, %s630
    %p642 = scmp.eq.s32.totalorder %s74, 1
    %p643 = por %p641, %p642
    %p645 = scmp.ne.s32.totalorder %s630, %s644
    %p646 = scmp.eq.s32.totalorder %s74, 0
    %p647 = por %p645, %p646
    %s648 = ssub.s32 %s68, %s75
    %p649 = scmp.eq.s32.totalorder %s648, 0
    %s651 = sadd.s32 %s650, 1
    %s652 = scalar_select %p649, %s650, %s651
    %p655 = pneg %p649
    %p656 = scmp.eq.s32.totalorder %s68, 1
    %p657 = por %p655, %p656
    %p658 = scmp.ne.s32.totalorder %s650, %s653
    %p659 = scmp.eq.s32.totalorder %s68, 0
    %p660 = por %p658, %p659
    %p661 = scmp.ne.s32.totalorder %s650, %s653
    %p662 = scmp.eq.s32.totalorder %s73, 1
    %p663 = por %p661, %p662
    %p664 = scmp.ne.s32.totalorder %s653, %s654
    %p665 = scmp.eq.s32.totalorder %s73, 0
    %p666 = por %p664, %p665
    %p667 = scmp.ne.s32.totalorder %s653, %s654
    %p668 = scmp.eq.s32.totalorder %s74, 1
    %p669 = por %p667, %p668
    %p671 = scmp.ne.s32.totalorder %s654, %s670
    %p672 = scmp.eq.s32.totalorder %s74, 0
    %p673 = por %p671, %p672
    %s674 = ssub.s32 %s68, %s75
    %p675 = scmp.eq.s32.totalorder %s674, 0
    %s677 = sadd.s32 %s676, 1
    %s678 = scalar_select %p675, %s676, %s677
    %p681 = pneg %p675
    %p682 = scmp.eq.s32.totalorder %s68, 1
    %p683 = por %p681, %p682
    %p684 = scmp.ne.s32.totalorder %s676, %s679
    %p685 = scmp.eq.s32.totalorder %s68, 0
    %p686 = por %p684, %p685
    %p687 = scmp.ne.s32.totalorder %s676, %s679
    %p688 = scmp.eq.s32.totalorder %s73, 1
    %p689 = por %p687, %p688
    %p690 = scmp.ne.s32.totalorder %s679, %s680
    %p691 = scmp.eq.s32.totalorder %s73, 0
    %p692 = por %p690, %p691
    %p693 = scmp.ne.s32.totalorder %s679, %s680
    %p694 = scmp.eq.s32.totalorder %s74, 1
    %p695 = por %p693, %p694
    %p697 = scmp.ne.s32.totalorder %s680, %s696
    %p698 = scmp.eq.s32.totalorder %s74, 0
    %p699 = por %p697, %p698
    %s700 = ssub.s32 %s68, %s75
    %p701 = scmp.eq.s32.totalorder %s700, 0
    %s703 = sadd.s32 %s702, 1
    %s704 = scalar_select %p701, %s702, %s703
    %p707 = pneg %p701
    %p708 = scmp.eq.s32.totalorder %s68, 1
    %p709 = por %p707, %p708
    %p710 = scmp.ne.s32.totalorder %s702, %s705
    %p711 = scmp.eq.s32.totalorder %s68, 0
    %p712 = por %p710, %p711
    %p713 = scmp.ne.s32.totalorder %s702, %s705
    %p714 = scmp.eq.s32.totalorder %s73, 1
    %p715 = por %p713, %p714
    %p716 = scmp.ne.s32.totalorder %s705, %s706
    %p717 = scmp.eq.s32.totalorder %s73, 0
    %p718 = por %p716, %p717
    %p719 = scmp.ne.s32.totalorder %s705, %s706
    %p720 = scmp.eq.s32.totalorder %s74, 1
    %p721 = por %p719, %p720
    %p723 = scmp.ne.s32.totalorder %s706, %s722
    %p724 = scmp.eq.s32.totalorder %s74, 0
    %p725 = por %p723, %p724
    %s726 = ssub.s32 %s68, %s75
    %p727 = scmp.eq.s32.totalorder %s726, 0
    %s729 = sadd.s32 %s728, 1
    %s730 = scalar_select %p727, %s728, %s729
    %p733 = pneg %p727
    %p734 = scmp.eq.s32.totalorder %s68, 1
    %p735 = por %p733, %p734
    %p736 = scmp.ne.s32.totalorder %s728, %s731
    %p737 = scmp.eq.s32.totalorder %s68, 0
    %p738 = por %p736, %p737
    %p739 = scmp.ne.s32.totalorder %s728, %s731
    %p740 = scmp.eq.s32.totalorder %s73, 1
    %p741 = por %p739, %p740
    %p742 = scmp.ne.s32.totalorder %s731, %s732
    %p743 = scmp.eq.s32.totalorder %s73, 0
    %p744 = por %p742, %p743
    %p745 = scmp.ne.s32.totalorder %s731, %s732
    %p746 = scmp.eq.s32.totalorder %s74, 1
    %p747 = por %p745, %p746
    %p749 = scmp.ne.s32.totalorder %s732, %s748
    %p750 = scmp.eq.s32.totalorder %s74, 0
    %p751 = por %p749, %p750
    %p752 = scmp.le.s32.totalorder 1, %s68
    %p753 = scmp.lt.s32.totalorder %s68, 3
    %p754 = pnand %p752, %p753
    %p755 = pneg %p754
    // Predicated region
    $region9: #{unet_forward.1} parent=5 // pred_check
      _
    $region10: #{unet_forward.1} parent=5 // pred_check_branch
      %757 = sbr.rel (%p754) target = $region12
    $region11: #{unet_forward.1} parent=5 // pred_region
      %s758 = ssub.s32 %s68, 1
      // Predicated region
      $region13: #{unet_forward.1} parent=11 // pred_check
        %p759 = pneg %p115
      $region14: #{unet_forward.1} parent=11 // pred_check_branch
        %761 = sbr.rel (%p759) target = $region16
      $region15: #{unet_forward.1} parent=11 // pred_region
        _
      $region16: #{unet_forward.1} parent=11 // pred_fallthru
        _
      // Predicated region
      $region17: #{unet_forward.1} parent=11 // pred_check
        %p762 = pneg %p136
      $region18: #{unet_forward.1} parent=11 // pred_check_branch
        %764 = sbr.rel (%p762) target = $region20
      $region19: #{unet_forward.1} parent=11 // pred_region
        _
      $region20: #{unet_forward.1} parent=11 // pred_fallthru
        _
      // Predicated region
      $region21: #{unet_forward.1} parent=11 // pred_check
        %p765 = pneg %p157
      $region22: #{unet_forward.1} parent=11 // pred_check_branch
        %767 = sbr.rel (%p765) target = $region24
      $region23: #{unet_forward.1} parent=11 // pred_region
        _
      $region24: #{unet_forward.1} parent=11 // pred_fallthru
        _
      // Predicated region
      $region25: #{unet_forward.1} parent=11 // pred_check
        %p768 = pneg %p178
      $region26: #{unet_forward.1} parent=11 // pred_check_branch
        %770 = sbr.rel (%p768) target = $region28
      $region27: #{unet_forward.1} parent=11 // pred_region
        _
      $region28: #{unet_forward.1} parent=11 // pred_fallthru
        _
      // Predicated region
      $region29: #{unet_forward.1} parent=11 // pred_check
        %p771 = pneg %p199
      $region30: #{unet_forward.1} parent=11 // pred_check_branch
        %773 = sbr.rel (%p771) target = $region32
      $region31: #{unet_forward.1} parent=11 // pred_region
        _
      $region32: #{unet_forward.1} parent=11 // pred_fallthru
        _
      // Predicated region
      $region33: #{unet_forward.1} parent=11 // pred_check
        %p774 = pneg %p220
      $region34: #{unet_forward.1} parent=11 // pred_check_branch
        %776 = sbr.rel (%p774) target = $region36
      $region35: #{unet_forward.1} parent=11 // pred_region
        _
      $region36: #{unet_forward.1} parent=11 // pred_fallthru
        _
      // Predicated region
      $region37: #{unet_forward.1} parent=11 // pred_check
        %p777 = pneg %p241
      $region38: #{unet_forward.1} parent=11 // pred_check_branch
        %779 = sbr.rel (%p777) target = $region40
      $region39: #{unet_forward.1} parent=11 // pred_region
        _
      $region40: #{unet_forward.1} parent=11 // pred_fallthru
        _
      // Predicated region
      $region41: #{unet_forward.1} parent=11 // pred_check
        %p780 = pneg %p262
      $region42: #{unet_forward.1} parent=11 // pred_check_branch
        %782 = sbr.rel (%p780) target = $region44
      $region43: #{unet_forward.1} parent=11 // pred_region
        _
      $region44: #{unet_forward.1} parent=11 // pred_fallthru
        _
      // Predicated region
      $region45: #{unet_forward.1} parent=11 // pred_check
        %p783 = pneg %p283
      $region46: #{unet_forward.1} parent=11 // pred_check_branch
        %785 = sbr.rel (%p783) target = $region48
      $region47: #{unet_forward.1} parent=11 // pred_region
        _
      $region48: #{unet_forward.1} parent=11 // pred_fallthru
        _
      // Predicated region
      $region49: #{unet_forward.1} parent=11 // pred_check
        %p786 = pneg %p304
      $region50: #{unet_forward.1} parent=11 // pred_check_branch
        %788 = sbr.rel (%p786) target = $region52
      $region51: #{unet_forward.1} parent=11 // pred_region
        _
      $region52: #{unet_forward.1} parent=11 // pred_fallthru
        _
      // Predicated region
      $region53: #{unet_forward.1} parent=11 // pred_check
        %p789 = pneg %p325
      $region54: #{unet_forward.1} parent=11 // pred_check_branch
        %791 = sbr.rel (%p789) target = $region56
      $region55: #{unet_forward.1} parent=11 // pred_region
        _
      $region56: #{unet_forward.1} parent=11 // pred_fallthru
        _
      // Predicated region
      $region57: #{unet_forward.1} parent=11 // pred_check
        %p792 = pneg %p346
      $region58: #{unet_forward.1} parent=11 // pred_check_branch
        %794 = sbr.rel (%p792) target = $region60
      $region59: #{unet_forward.1} parent=11 // pred_region
        _
      $region60: #{unet_forward.1} parent=11 // pred_fallthru
        _
      // Predicated region
      $region61: #{unet_forward.1} parent=11 // pred_check
        %p795 = pneg %p367
      $region62: #{unet_forward.1} parent=11 // pred_check_branch
        %797 = sbr.rel (%p795) target = $region64
      $region63: #{unet_forward.1} parent=11 // pred_region
        _
      $region64: #{unet_forward.1} parent=11 // pred_fallthru
        _
      // Predicated region
      $region65: #{unet_forward.1} parent=11 // pred_check
        %p798 = pneg %p388
      $region66: #{unet_forward.1} parent=11 // pred_check_branch
        %800 = sbr.rel (%p798) target = $region68
      $region67: #{unet_forward.1} parent=11 // pred_region
        _
      $region68: #{unet_forward.1} parent=11 // pred_fallthru
        _
      // Predicated region
      $region69: #{unet_forward.1} parent=11 // pred_check
        %p801 = pneg %p409
      $region70: #{unet_forward.1} parent=11 // pred_check_branch
        %803 = sbr.rel (%p801) target = $region72
      $region71: #{unet_forward.1} parent=11 // pred_region
        _
      $region72: #{unet_forward.1} parent=11 // pred_fallthru
        _
      // Predicated region
      $region73: #{unet_forward.1} parent=11 // pred_check
        %p804 = pneg %p430
      $region74: #{unet_forward.1} parent=11 // pred_check_branch
        %806 = sbr.rel (%p804) target = $region76
      $region75: #{unet_forward.1} parent=11 // pred_region
        _
      $region76: #{unet_forward.1} parent=11 // pred_fallthru
        _
      // Predicated region
      $region77: #{unet_forward.1} parent=11 // pred_check
        %p807 = pneg %p451
      $region78: #{unet_forward.1} parent=11 // pred_check_branch
        %809 = sbr.rel (%p807) target = $region80
      $region79: #{unet_forward.1} parent=11 // pred_region
        _
      $region80: #{unet_forward.1} parent=11 // pred_fallthru
        _
      // Predicated region
      $region81: #{unet_forward.1} parent=11 // pred_check
        %p810 = pneg %p472
      $region82: #{unet_forward.1} parent=11 // pred_check_branch
        %812 = sbr.rel (%p810) target = $region84
      $region83: #{unet_forward.1} parent=11 // pred_region
        _
      $region84: #{unet_forward.1} parent=11 // pred_fallthru
        _
      // Predicated region
      $region85: #{unet_forward.1} parent=11 // pred_check
        %p813 = pneg %p493
      $region86: #{unet_forward.1} parent=11 // pred_check_branch
        %815 = sbr.rel (%p813) target = $region88
      $region87: #{unet_forward.1} parent=11 // pred_region
        _
      $region88: #{unet_forward.1} parent=11 // pred_fallthru
        _
      // Predicated region
      $region89: #{unet_forward.1} parent=11 // pred_check
        %p816 = pneg %p514
      $region90: #{unet_forward.1} parent=11 // pred_check_branch
        %818 = sbr.rel (%p816) target = $region92
      $region91: #{unet_forward.1} parent=11 // pred_region
        _
      $region92: #{unet_forward.1} parent=11 // pred_fallthru
        _
      // Predicated region
      $region93: #{unet_forward.1} parent=11 // pred_check
        %p819 = pneg %p535
      $region94: #{unet_forward.1} parent=11 // pred_check_branch
        %821 = sbr.rel (%p819) target = $region96
      $region95: #{unet_forward.1} parent=11 // pred_region
        _
      $region96: #{unet_forward.1} parent=11 // pred_fallthru
        _
      // Predicated region
      $region97: #{unet_forward.1} parent=11 // pred_check
        %p822 = pneg %p556
      $region98: #{unet_forward.1} parent=11 // pred_check_branch
        %824 = sbr.rel (%p822) target = $region100
      $region99: #{unet_forward.1} parent=11 // pred_region
        _
      $region100: #{unet_forward.1} parent=11 // pred_fallthru
        _
      // Predicated region
      $region101: #{unet_forward.1} parent=11 // pred_check
        %p825 = pneg %p577
      $region102: #{unet_forward.1} parent=11 // pred_check_branch
        %827 = sbr.rel (%p825) target = $region104
      $region103: #{unet_forward.1} parent=11 // pred_region
        _
      $region104: #{unet_forward.1} parent=11 // pred_fallthru
        _
      // Predicated region
      $region105: #{unet_forward.1} parent=11 // pred_check
        %p828 = pneg %p598
      $region106: #{unet_forward.1} parent=11 // pred_check_branch
        %830 = sbr.rel (%p828) target = $region108
      $region107: #{unet_forward.1} parent=11 // pred_region
        _
      $region108: #{unet_forward.1} parent=11 // pred_fallthru
        _
      // Predicated region
      $region109: #{unet_forward.1} parent=11 // pred_check
        %p831 = pneg %p619
      $region110: #{unet_forward.1} parent=11 // pred_check_branch
        %833 = sbr.rel (%p831) target = $region112
      $region111: #{unet_forward.1} parent=11 // pred_region
        _
      $region112: #{unet_forward.1} parent=11 // pred_fallthru
        _
      // Predicated region
      $region113: #{unet_forward.1} parent=11 // pred_check
        %p834 = pneg %p640
      $region114: #{unet_forward.1} parent=11 // pred_check_branch
        %836 = sbr.rel (%p834) target = $region116
      $region115: #{unet_forward.1} parent=11 // pred_region
        _
      $region116: #{unet_forward.1} parent=11 // pred_fallthru
        _
    $region12: #{unet_forward.1} parent=5 // pred_fallthru
      _
    %p837 = scmp.lt.s32.totalorder %s68, 2
    // Predicated region
    $region117: #{unet_forward.1} parent=5 // pred_check
      %p838 = pneg %p837
    $region118: #{unet_forward.1} parent=5 // pred_check_branch
      %840 = sbr.rel (%p838) target = $region120
    $region119: #{unet_forward.1} parent=5 // pred_region
      // Predicated region
      $region121: #{unet_forward.1} parent=119 // pred_check
        %p841 = pneg %p88
      $region122: #{unet_forward.1} parent=119 // pred_check_branch
        %843 = sbr.rel (%p841) target = $region124
      $region123: #{unet_forward.1} parent=119 // pred_region
        %p844 = scmp.lt.s32.totalorder %s68, 1
        %s845 = scalar_select %p844, %s68, 1
        %s846 = smul.addr %s845, 2
        %s847 = smul.addr %s846, 8
        %s848 = scalar_lea.vmem %s1, %s847
      $region124: #{unet_forward.1} parent=119 // pred_fallthru
        _
    $region120: #{unet_forward.1} parent=5 // pred_fallthru
      _
    %p849 = scmp.le.s32.totalorder 1, %s68
    %p850 = scmp.lt.s32.totalorder %s68, 3
    %p851 = pnand %p849, %p850
    %p852 = pneg %p851
    // Predicated region
    $region125: #{unet_forward.1} parent=5 // pred_check
      _
    $region126: #{unet_forward.1} parent=5 // pred_check_branch
      %854 = sbr.rel (%p851) target = $region128
    $region127: #{unet_forward.1} parent=5 // pred_region
      %s855 = ssub.s32 %s68, 1
      %p856 = scmp.lt.s32.totalorder %s73, 1
      %s857 = scalar_select %p856, %s73, 1
      %s858 = smul.addr %s857, 2
      %s859 = smul.addr %s858, 8
      %s860 = scalar_lea.vmem %s1, %s859
      %p861 = pneg %p94
      %p862 = pneg %p91
      %p863 = pneg %p115
      %p864 = pneg %p112
      %p865 = pneg %p136
      %p866 = pneg %p133
      %p867 = pneg %p157
      %p868 = pneg %p154
      %p869 = pneg %p178
      %p870 = pneg %p175
      %p871 = pneg %p199
      %p872 = pneg %p196
      %p873 = pneg %p220
      %p874 = pneg %p217
      %p875 = pneg %p241
      %p876 = pneg %p238
      %p877 = pneg %p262
      %p878 = pneg %p259
      %p879 = pneg %p283
      %p880 = pneg %p280
      %p881 = pneg %p304
      %p882 = pneg %p301
      %p883 = pneg %p325
      %p884 = pneg %p322
      %p885 = pneg %p346
      %p886 = pneg %p343
      %p887 = pneg %p367
      %p888 = pneg %p364
      %p889 = pneg %p388
      %p890 = pneg %p385
      %p891 = pneg %p409
      %p892 = pneg %p406
      %p893 = pneg %p430
      %p894 = pneg %p427
      %p895 = pneg %p451
      %p896 = pneg %p448
      %p897 = pneg %p472
      %p898 = pneg %p469
      %p899 = pneg %p493
      %p900 = pneg %p490
      %p901 = pneg %p514
      %p902 = pneg %p511
      %p903 = pneg %p535
      %p904 = pneg %p532
      %p905 = pneg %p556
      %p906 = pneg %p553
      %p907 = pneg %p577
      %p908 = pneg %p574
      %p909 = pneg %p598
      %p910 = pneg %p595
      %p911 = pneg %p619
      %p912 = pneg %p616
      %p913 = pneg %p640
      %p914 = pneg %p637
      %p915 = pneg %p666
      %p916 = pneg %p663
      %p917 = scmp.lt.s32.totalorder %s73, 1
      %s918 = scalar_select %p917, %s73, 1
      %s919 = smul.addr %s918, 2
      %s920 = smul.addr %s919, 8
      %s921 = scalar_lea.vmem %s55, %s920
      %p922 = pneg %p692
      %p923 = pneg %p689
      %p924 = scmp.lt.s32.totalorder %s73, 1
      %s925 = scalar_select %p924, %s73, 1
      %s926 = smul.addr %s925, 2
      %s927 = smul.addr %s926, 8
      %s928 = scalar_lea.vmem %s57, %s927
      %p929 = pneg %p718
      %p930 = pneg %p715
      %p931 = scmp.lt.s32.totalorder %s73, 1
      %s932 = scalar_select %p931, %s73, 1
      %s933 = smul.addr %s932, 4
      %s934 = smul.addr %s933, 8
      %s935 = scalar_lea.vmem %s59, %s934
      %p936 = pneg %p744
      %p937 = pneg %p741
      %p938 = scmp.lt.s32.totalorder %s73, 1
      %s939 = scalar_select %p938, %s73, 1
      %s940 = smul.addr %s939, 2
      %s941 = smul.addr %s940, 4
      %s942 = scalar_lea.vmem %s61, %s941
      %p943 = scmp.lt.s32.totalorder %s73, 1
      %s944 = scalar_select %p943, %s73, 1
      %s945 = smul.addr %s944, 2
      %s946 = smul.addr %s945, 8
      %s947 = scalar_lea.vmem %s1, %s946
      %p948 = scmp.lt.s32.totalorder %s73, 1
      %s949 = scalar_select %p948, %s73, 1
      %s950 = smul.addr %s949, 2
      %s951 = smul.addr %s950, 8
      %s952 = scalar_lea.vmem %s55, %s951
      %p953 = scmp.lt.s32.totalorder %s73, 1
      %s954 = scalar_select %p953, %s73, 1
      %s955 = smul.addr %s954, 2
      %s956 = smul.addr %s955, 8
      %s957 = scalar_lea.vmem %s57, %s956
      %p958 = scmp.lt.s32.totalorder %s73, 1
      %s959 = scalar_select %p958, %s73, 1
      %s960 = smul.addr %s959, 4
      %s961 = smul.addr %s960, 8
      %s962 = scalar_lea.vmem %s59, %s961
      %p963 = scmp.lt.s32.totalorder %s73, 1
      %s964 = scalar_select %p963, %s73, 1
      %s965 = smul.addr %s964, 2
      %s966 = smul.addr %s965, 4
      %s967 = scalar_lea.vmem %s61, %s966
      %v968 = vld [vmem:[%s947] sm:$0xff]
      %v969 = vld [vmem:[%s947 + $0x8] sm:$0xff]
      %v970 = vld [vmem:[%s3] sm:$0xff]
      %v971 = vld [vmem:[%s5] sm:$0xff]
      %972 = vst [vmem:[#allocation2] sm:$0xff] 0.0
      %973 = vst [vmem:[#allocation2 + $0x8] sm:$0xff] 0.0
      %vm974 = vcmask 523264
      %975 = vst.msk [vmem:[#allocation2 + $0x10] sm:$0xff] %vm974, 0.0
      %978 = vrot.lane.b32.xlu0 %v968, 32
      %v979 = vpop.permute.xlu0 %978
      %980 = vrot.lane.b32.xlu0 %v969, 32
      %v981 = vpop.permute.xlu0 %980
      %vm982 = vcmask 261120
      %v983 = vsel %vm982, %v979, %v981
      %vm987 = vcmask 1047808
      %988 = vst.msk [vmem:[#allocation2] sm:$0xff] %vm987, %v979
      %989 = vst [vmem:[#allocation2 + $0x8] sm:$0xff] %v983
      %990 = vst.msk [vmem:[#allocation2 + $0x10] sm:$0xff] %vm982, %v981
      %v991 = vlaneseq
      %v992 = vand.u32 %v991, 127
      %v993 = vadd.s32 %v992, 128
      %v994 = vand.u32 %v992, 15
      %v995 = vand.u32 %v993, 15
      %v996 = vld [vmem:[#allocation2] sm:$0xff]
      %v997 = vld [vmem:[#allocation2 + $0x8] sm:$0xff]
      %v998 = vld [vmem:[#allocation2 + $0x10] sm:$0xff]
      %vm999 = vcmp.eq.s32.totalorder %v994, 0
      %vm1000 = vcmp.eq.s32.totalorder %v995, 0
      %v1001 = vsel %vm999, 1, 0
      %v1002 = vsel %vm1000, 1, 0
      %vm1003 = vcmp.eq.s32.totalorder %v1001, 1
      %vm1004 = vcmp.eq.s32.totalorder %v1002, 1
      %1008 = vrot.lane.b32.xlu0 %v996, 113
      %v1009 = vpop.permute.xlu0 %1008
      %1010 = vrot.lane.b32.xlu0 %v997, 113
      %v1011 = vpop.permute.xlu0 %1010
      %1012 = vrot.lane.b32.xlu0 %v998, 113
      %v1013 = vpop.permute.xlu0 %1012
      %vm1014 = vcmask 924672
      %v1015 = vsel %vm1014, %v1009, %v1011
      %v1016 = vsel %vm1014, %v1011, %v1013
      %v1019 = vsel %vm1003, 0.0, %v1015
      %v1020 = vsel %vm1004, 0.0, %v1016
      %vm1021 = vcmp.eq.s32.totalorder %v994, 15
      %vm1022 = vcmp.eq.s32.totalorder %v995, 15
      %v1023 = vsel %vm1021, 1, 0
      %v1024 = vsel %vm1022, 1, 0
      %vm1025 = vcmp.eq.s32.totalorder %v1023, 1
      %vm1026 = vcmp.eq.s32.totalorder %v1024, 1
      %1027 = vrot.lane.b32.xlu0 %v996, 111
      %v1028 = vpop.permute.xlu0 %1027
      %1029 = vrot.lane.b32.xlu0 %v997, 111
      %v1030 = vpop.permute.xlu0 %1029
      %1031 = vrot.lane.b32.xlu0 %v998, 111
      %v1032 = vpop.permute.xlu0 %1031
      %vm1033 = vcmask 908288
      %v1034 = vsel %vm1033, %v1028, %v1030
      %v1035 = vsel %vm1033, %v1030, %v1032
      %v1038 = vsel %vm1025, 0.0, %v1034
      %v1039 = vsel %vm1026, 0.0, %v1035
      %1040 = vrot.lane.b32.xlu0 %v996, 97
      %v1041 = vpop.permute.xlu0 %1040
      %1042 = vrot.lane.b32.xlu0 %v997, 97
      %v1043 = vpop.permute.xlu0 %1042
      %1044 = vrot.lane.b32.xlu0 %v998, 97
      %v1045 = vpop.permute.xlu0 %1044
      %vm1046 = vcmask 793600
      %v1047 = vsel %vm1046, %v1041, %v1043
      %v1048 = vsel %vm1046, %v1043, %v1045
      %v1051 = vsel %vm1003, 0.0, %v1047
      %v1052 = vsel %vm1004, 0.0, %v1048
      %1053 = vrot.lane.b32.xlu0 %v996, 95
      %v1054 = vpop.permute.xlu0 %1053
      %1055 = vrot.lane.b32.xlu0 %v997, 95
      %v1056 = vpop.permute.xlu0 %1055
      %1057 = vrot.lane.b32.xlu0 %v998, 95
      %v1058 = vpop.permute.xlu0 %1057
      %vm1059 = vcmask 777216
      %v1060 = vsel %vm1059, %v1054, %v1056
      %v1061 = vsel %vm1059, %v1056, %v1058
      %v1064 = vsel %vm1025, 0.0, %v1060
      %v1065 = vsel %vm1026, 0.0, %v1061
      %1066 = vrot.lane.b32.xlu0 %v996, 81
      %v1067 = vpop.permute.xlu0 %1066
      %1068 = vrot.lane.b32.xlu0 %v997, 81
      %v1069 = vpop.permute.xlu0 %1068
      %1070 = vrot.lane.b32.xlu0 %v998, 81
      %v1071 = vpop.permute.xlu0 %1070
      %vm1072 = vcmask 662528
      %v1073 = vsel %vm1072, %v1067, %v1069
      %v1074 = vsel %vm1072, %v1069, %v1071
      %v1077 = vsel %vm1003, 0.0, %v1073
      %v1078 = vsel %vm1004, 0.0, %v1074
      %1079 = vrot.lane.b32.xlu0 %v996, 79
      %v1080 = vpop.permute.xlu0 %1079
      %1081 = vrot.lane.b32.xlu0 %v997, 79
      %v1082 = vpop.permute.xlu0 %1081
      %1083 = vrot.lane.b32.xlu0 %v998, 79
      %v1084 = vpop.permute.xlu0 %1083
      %vm1085 = vcmask 646144
      %v1086 = vsel %vm1085, %v1080, %v1082
      %v1087 = vsel %vm1085, %v1082, %v1084
      %v1090 = vsel %vm1025, 0.0, %v1086
      %v1091 = vsel %vm1026, 0.0, %v1087
      %1092 = vrot.lane.b32.xlu0 %v996, 112
      %v1093 = vpop.permute.xlu0 %1092
      %1094 = vrot.lane.b32.xlu0 %v997, 112
      %v1095 = vpop.permute.xlu0 %1094
      %1096 = vrot.lane.b32.xlu0 %v998, 112
      %v1097 = vpop.permute.xlu0 %1096
      %vm1098 = vcmask 916480
      %v1099 = vsel %vm1098, %v1093, %v1095
      %v1100 = vsel %vm1098, %v1095, %v1097
      %1103 = vrot.lane.b32.xlu0 %v996, 96
      %v1104 = vpop.permute.xlu0 %1103
      %1105 = vrot.lane.b32.xlu0 %v997, 96
      %v1106 = vpop.permute.xlu0 %1105
      %1107 = vrot.lane.b32.xlu0 %v998, 96
      %v1108 = vpop.permute.xlu0 %1107
      %vm1109 = vcmask 785408
      %v1110 = vsel %vm1109, %v1104, %v1106
      %v1111 = vsel %vm1109, %v1106, %v1108
      %1114 = vrot.lane.b32.xlu0 %v996, 80
      %v1115 = vpop.permute.xlu0 %1114
      %1116 = vrot.lane.b32.xlu0 %v997, 80
      %v1117 = vpop.permute.xlu0 %1116
      %1118 = vrot.lane.b32.xlu0 %v998, 80
      %v1119 = vpop.permute.xlu0 %1118
      %vm1120 = vcmask 654336
      %v1121 = vsel %vm1120, %v1115, %v1117
      %v1122 = vsel %vm1120, %v1117, %v1119
      %1126 = vset.pattern.permute.xlu0 0
      %1127 = vperm.xlu0 %1126, %v971
      %v1128 = vpop.permute.xlu0 %1127
      %vm1130 = vcmask 588800
      %v1132 = vsel %vm1130, %v970, 0
      %1134 = vmatprep.subr.mxu0 %v1020
      %1135 = vmatpush1.msra.mxu0 %v1019
      %1136 = vmatprep.subr.mxu0 %v1100
      %1137 = vmatpush1.msra.mxu0 %v1099
      %1138 = vmatprep.subr.mxu0 %v1039
      %1139 = vmatpush1.msra.mxu0 %v1038
      %1140 = vmatprep.subr.mxu0 %v1052
      %1141 = vmatpush1.msra.mxu0 %v1051
      %1142 = vmatprep.subr.mxu0 %v1111
      %1143 = vmatpush1.msra.mxu0 %v1110
      %1144 = vmatprep.subr.mxu0 %v1065
      %1145 = vmatpush1.msra.mxu0 %v1064
      %1146 = vmatprep.subr.mxu0 %v1078
      %1147 = vmatpush1.msra.mxu0 %v1077
      %1148 = vmatprep.subr.mxu0 %v1122
      %1149 = vmatpush1.msra.mxu0 %v1121
      %1150 = vmatprep.subr.mxu0 %v1091
      %1151 = vmatpush1.msra.mxu0 %v1090
      %1152 = vmatprep.subr.mxu0 0.0
      %1153 = vmatpush1.msra.mxu0 0.0
      %1154 = vmatprep.subr.mxu0 0.0
      %1155 = vmatpush1.msra.mxu0 0.0
      %1156 = vmatprep.subr.mxu0 0.0
      %1157 = vmatpush1.msra.mxu0 0.0
      %1158 = vmatprep.subr.mxu0 0.0
      %1159 = vmatpush1.msra.mxu0 0.0
      %1160 = vmatprep.subr.mxu0 0.0
      %1161 = vmatpush1.msra.mxu0 0.0
      %1162 = vmatprep.subr.mxu0 0.0
      %1163 = vmatpush1.msra.mxu0 0.0
      %1164 = vmatprep.subr.mxu0 0.0
      %1165 = vmatpush1.msra.mxu0 0.0
      %1166 = vmatprep.subr.mxu0 0.0
      %1167 = vmatpush1.msra.mxu0 0.0
      %1168 = vmatprep.subr.mxu0 0.0
      %1169 = vmatpush1.msra.mxu0 0.0
      %1170 = vmatprep.subr.mxu0 0.0
      %1171 = vmatpush1.msra.mxu0 0.0
      %1172 = vmatprep.subr.mxu0 0.0
      %1173 = vmatpush1.msra.mxu0 0.0
      %1174 = vmatprep.subr.mxu0 0.0
      %1175 = vmatpush1.msra.mxu0 0.0
      %1176 = vmatprep.subr.mxu0 0.0
      %1177 = vmatpush1.msra.mxu0 0.0
      %1178 = vmatprep.subr.mxu0 0.0
      %1179 = vmatpush1.msra.mxu0 0.0
      %1180 = vmatprep.subr.mxu0 0.0
      %1181 = vmatpush1.msra.mxu0 0.0
      %1182 = vmatprep.subr.mxu0 0.0
      %1183 = vmatpush1.msra.mxu0 0.0
      %1184 = vmatprep.subr.mxu0 0.0
      %1185 = vmatpush1.msra.mxu0 0.0
      %1186 = vmatprep.subr.mxu0 0.0
      %1187 = vmatpush1.msra.mxu0 0.0
      %1188 = vmatprep.subr.mxu0 0.0
      %1189 = vmatpush1.msra.mxu0 0.0
      %1190 = vmatprep.subr.mxu0 0.0
      %1191 = vmatpush1.msra.mxu0 0.0
      %1192 = vmatprep.subr.mxu0 0.0
      %1193 = vmatpush1.msra.mxu0 0.0
      %1194 = vmatprep.subr.mxu0 0.0
      %1195 = vmatpush1.msra.mxu0 0.0
      %1196 = vmatprep.subr.mxu0 0.0
      %1197 = vmatpush1.msra.mxu0 0.0
      %1198 = vmatprep.mubr.f32.mxu0 0.0
      %1199 = vmatmul.mubr.f32.gmra.mrb[0].mxu0 %v1132
      %v1200 = vpop.f32.mrb[0].mxu0
      %v1201 = vadd.f32 %v1128, %v1200
      %v1202 = vpop.f32.mrb[0].mxu0
      %v1203 = vadd.f32 %v1128, %v1202
      %1204 = vdwg.mxu0
      %v1205 = vmax.f32 %v1201, 0.0
      %v1206 = vmax.f32 %v1203, 0.0
      %v1207 = vld [vmem:[%s7] sm:$0xff]
      %v1208 = vld [vmem:[%s9] sm:$0xff]
      %1209 = vst [vmem:[#allocation2] sm:$0xff] 0.0
      %1210 = vst [vmem:[#allocation2 + $0x8] sm:$0xff] 0.0
      %1211 = vst.msk [vmem:[#allocation2 + $0x10] sm:$0xff] %vm974, 0.0
      %1214 = vrot.lane.b32.xlu0 %v1205, 32
      %v1215 = vpop.permute.xlu0 %1214
      %1216 = vrot.lane.b32.xlu0 %v1206, 32
      %v1217 = vpop.permute.xlu0 %1216
      %v1218 = vsel %vm982, %v1215, %v1217
      %1222 = vst.msk [vmem:[#allocation2] sm:$0xff] %vm987, %v1215
      %1223 = vst [vmem:[#allocation2 + $0x8] sm:$0xff] %v1218
      %1224 = vst.msk [vmem:[#allocation2 + $0x10] sm:$0xff] %vm982, %v1217
      %v1225 = vld [vmem:[#allocation2] sm:$0xff]
      %v1226 = vld [vmem:[#allocation2 + $0x8] sm:$0xff]
      %v1227 = vld [vmem:[#allocation2 + $0x10] sm:$0xff]
      %1231 = vrot.lane.b32.xlu0 %v1225, 113
      %v1232 = vpop.permute.xlu0 %1231
      %1233 = vrot.lane.b32.xlu0 %v1226, 113
      %v1234 = vpop.permute.xlu0 %1233
      %1235 = vrot.lane.b32.xlu0 %v1227, 113
      %v1236 = vpop.permute.xlu0 %1235
      %v1237 = vsel %vm1014, %v1232, %v1234
      %v1238 = vsel %vm1014, %v1234, %v1236
      %v1241 = vsel %vm1003, 0.0, %v1237
      %v1242 = vsel %vm1004, 0.0, %v1238
      %1243 = vrot.lane.b32.xlu0 %v1225, 111
      %v1244 = vpop.permute.xlu0 %1243
      %1245 = vrot.lane.b32.xlu0 %v1226, 111
      %v1246 = vpop.permute.xlu0 %1245
      %1247 = vrot.lane.b32.xlu0 %v1227, 111
      %v1248 = vpop.permute.xlu0 %1247
      %v1249 = vsel %vm1033, %v1244, %v1246
      %v1250 = vsel %vm1033, %v1246, %v1248
      %v1253 = vsel %vm1025, 0.0, %v1249
      %v1254 = vsel %vm1026, 0.0, %v1250
      %1255 = vrot.lane.b32.xlu0 %v1225, 97
      %v1256 = vpop.permute.xlu0 %1255
      %1257 = vrot.lane.b32.xlu0 %v1226, 97
      %v1258 = vpop.permute.xlu0 %1257
      %1259 = vrot.lane.b32.xlu0 %v1227, 97
      %v1260 = vpop.permute.xlu0 %1259
      %v1261 = vsel %vm1046, %v1256, %v1258
      %v1262 = vsel %vm1046, %v1258, %v1260
      %v1265 = vsel %vm1003, 0.0, %v1261
      %v1266 = vsel %vm1004, 0.0, %v1262
      %1267 = vrot.lane.b32.xlu0 %v1225, 95
      %v1268 = vpop.permute.xlu0 %1267
      %1269 = vrot.lane.b32.xlu0 %v1226, 95
      %v1270 = vpop.permute.xlu0 %1269
      %1271 = vrot.lane.b32.xlu0 %v1227, 95
      %v1272 = vpop.permute.xlu0 %1271
      %v1273 = vsel %vm1059, %v1268, %v1270
      %v1274 = vsel %vm1059, %v1270, %v1272
      %v1277 = vsel %vm1025, 0.0, %v1273
      %v1278 = vsel %vm1026, 0.0, %v1274
      %1279 = vrot.lane.b32.xlu0 %v1225, 81
      %v1280 = vpop.permute.xlu0 %1279
      %1281 = vrot.lane.b32.xlu0 %v1226, 81
      %v1282 = vpop.permute.xlu0 %1281
      %1283 = vrot.lane.b32.xlu0 %v1227, 81
      %v1284 = vpop.permute.xlu0 %1283
      %v1285 = vsel %vm1072, %v1280, %v1282
      %v1286 = vsel %vm1072, %v1282, %v1284
      %v1289 = vsel %vm1003, 0.0, %v1285
      %v1290 = vsel %vm1004, 0.0, %v1286
      %1291 = vrot.lane.b32.xlu0 %v1225, 79
      %v1292 = vpop.permute.xlu0 %1291
      %1293 = vrot.lane.b32.xlu0 %v1226, 79
      %v1294 = vpop.permute.xlu0 %1293
      %1295 = vrot.lane.b32.xlu0 %v1227, 79
      %v1296 = vpop.permute.xlu0 %1295
      %v1297 = vsel %vm1085, %v1292, %v1294
      %v1298 = vsel %vm1085, %v1294, %v1296
      %v1301 = vsel %vm1025, 0.0, %v1297
      %v1302 = vsel %vm1026, 0.0, %v1298
      %1303 = vrot.lane.b32.xlu0 %v1225, 112
      %v1304 = vpop.permute.xlu0 %1303
      %1305 = vrot.lane.b32.xlu0 %v1226, 112
      %v1306 = vpop.permute.xlu0 %1305
      %1307 = vrot.lane.b32.xlu0 %v1227, 112
      %v1308 = vpop.permute.xlu0 %1307
      %v1309 = vsel %vm1098, %v1304, %v1306
      %v1310 = vsel %vm1098, %v1306, %v1308
      %1313 = vrot.lane.b32.xlu0 %v1225, 96
      %v1314 = vpop.permute.xlu0 %1313
      %1315 = vrot.lane.b32.xlu0 %v1226, 96
      %v1316 = vpop.permute.xlu0 %1315
      %1317 = vrot.lane.b32.xlu0 %v1227, 96
      %v1318 = vpop.permute.xlu0 %1317
      %v1319 = vsel %vm1109, %v1314, %v1316
      %v1320 = vsel %vm1109, %v1316, %v1318
      %1323 = vrot.lane.b32.xlu0 %v1225, 80
      %v1324 = vpop.permute.xlu0 %1323
      %1325 = vrot.lane.b32.xlu0 %v1226, 80
      %v1326 = vpop.permute.xlu0 %1325
      %1327 = vrot.lane.b32.xlu0 %v1227, 80
      %v1328 = vpop.permute.xlu0 %1327
      %v1329 = vsel %vm1120, %v1324, %v1326
      %v1330 = vsel %vm1120, %v1326, %v1328
      %1334 = vset.pattern.permute.xlu0 0
      %1335 = vperm.xlu0 %1334, %v1208
      %v1336 = vpop.permute.xlu0 %1335
      %v1339 = vsel %vm1130, %v1207, 0
      %1341 = vmatprep.subr.mxu0 %v1242
      %1342 = vmatpush1.msra.mxu0 %v1241
      %1343 = vmatprep.subr.mxu0 %v1310
      %1344 = vmatpush1.msra.mxu0 %v1309
      %1345 = vmatprep.subr.mxu0 %v1254
      %1346 = vmatpush1.msra.mxu0 %v1253
      %1347 = vmatprep.subr.mxu0 %v1266
      %1348 = vmatpush1.msra.mxu0 %v1265
      %1349 = vmatprep.subr.mxu0 %v1320
      %1350 = vmatpush1.msra.mxu0 %v1319
      %1351 = vmatprep.subr.mxu0 %v1278
      %1352 = vmatpush1.msra.mxu0 %v1277
      %1353 = vmatprep.subr.mxu0 %v1290
      %1354 = vmatpush1.msra.mxu0 %v1289
      %1355 = vmatprep.subr.mxu0 %v1330
      %1356 = vmatpush1.msra.mxu0 %v1329
      %1357 = vmatprep.subr.mxu0 %v1302
      %1358 = vmatpush1.msra.mxu0 %v1301
      %1359 = vmatprep.subr.mxu0 0.0
      %1360 = vmatpush1.msra.mxu0 0.0
      %1361 = vmatprep.subr.mxu0 0.0
      %1362 = vmatpush1.msra.mxu0 0.0
      %1363 = vmatprep.subr.mxu0 0.0
      %1364 = vmatpush1.msra.mxu0 0.0
      %1365 = vmatprep.subr.mxu0 0.0
      %1366 = vmatpush1.msra.mxu0 0.0
      %1367 = vmatprep.subr.mxu0 0.0
      %1368 = vmatpush1.msra.mxu0 0.0
      %1369 = vmatprep.subr.mxu0 0.0
      %1370 = vmatpush1.msra.mxu0 0.0
      %1371 = vmatprep.subr.mxu0 0.0
      %1372 = vmatpush1.msra.mxu0 0.0
      %1373 = vmatprep.subr.mxu0 0.0
      %1374 = vmatpush1.msra.mxu0 0.0
      %1375 = vmatprep.subr.mxu0 0.0
      %1376 = vmatpush1.msra.mxu0 0.0
      %1377 = vmatprep.subr.mxu0 0.0
      %1378 = vmatpush1.msra.mxu0 0.0
      %1379 = vmatprep.subr.mxu0 0.0
      %1380 = vmatpush1.msra.mxu0 0.0
      %1381 = vmatprep.subr.mxu0 0.0
      %1382 = vmatpush1.msra.mxu0 0.0
      %1383 = vmatprep.subr.mxu0 0.0
      %1384 = vmatpush1.msra.mxu0 0.0
      %1385 = vmatprep.subr.mxu0 0.0
      %1386 = vmatpush1.msra.mxu0 0.0
      %1387 = vmatprep.subr.mxu0 0.0
      %1388 = vmatpush1.msra.mxu0 0.0
      %1389 = vmatprep.subr.mxu0 0.0
      %1390 = vmatpush1.msra.mxu0 0.0
      %1391 = vmatprep.subr.mxu0 0.0
      %1392 = vmatpush1.msra.mxu0 0.0
      %1393 = vmatprep.subr.mxu0 0.0
      %1394 = vmatpush1.msra.mxu0 0.0
      %1395 = vmatprep.subr.mxu0 0.0
      %1396 = vmatpush1.msra.mxu0 0.0
      %1397 = vmatprep.subr.mxu0 0.0
      %1398 = vmatpush1.msra.mxu0 0.0
      %1399 = vmatprep.subr.mxu0 0.0
      %1400 = vmatpush1.msra.mxu0 0.0
      %1401 = vmatprep.subr.mxu0 0.0
      %1402 = vmatpush1.msra.mxu0 0.0
      %1403 = vmatprep.subr.mxu0 0.0
      %1404 = vmatpush1.msra.mxu0 0.0
      %1405 = vmatprep.mubr.f32.mxu0 0.0
      %1406 = vmatmul.mubr.f32.gmra.mrb[0].mxu0 %v1339
      %v1407 = vpop.f32.mrb[0].mxu0
      %v1408 = vadd.f32 %v1336, %v1407
      %v1409 = vpop.f32.mrb[0].mxu0
      %v1410 = vadd.f32 %v1336, %v1409
      %1411 = vdwg.mxu0
      %v1412 = vmax.f32 %v1408, 0.0
      %v1413 = vmax.f32 %v1410, 0.0
      %1414 = vst [vmem:[%s952] sm:$0xff] %v1412
      %1415 = vst [vmem:[%s952 + $0x8] sm:$0xff] %v1413
      %v1416 = vld [vmem:[%s47] sm:$0xff]
      %v1417 = vld [vmem:[%s47 + $0x8] sm:$0xff]
      %v1418 = vld [vmem:[%s47 + $0x10] sm:$0xff]
      %v1419 = vld [vmem:[%s47 + $0x18] sm:$0xff]
      %v1420 = vld [vmem:[%s47 + $0x20] sm:$0xff]
      %v1421 = vld [vmem:[%s47 + $0x28] sm:$0xff]
      %v1422 = vld [vmem:[%s47 + $0x30] sm:$0xff]
      %v1423 = vld [vmem:[%s47 + $0x38] sm:$0xff]
      %v1424 = vld [vmem:[%s47 + $0x40] sm:$0xff]
      %v1425 = vld [vmem:[%s47 + $0x48] sm:$0xff]
      %v1426 = vld [vmem:[%s47 + $0x50] sm:$0xff]
      %v1427 = vld [vmem:[%s47 + $0x58] sm:$0xff]
      %v1428 = vld [vmem:[%s47 + $0x60] sm:$0xff]
      %v1429 = vld [vmem:[%s47 + $0x68] sm:$0xff]
      %v1430 = vld [vmem:[%s47 + $0x70] sm:$0xff]
      %v1431 = vld [vmem:[%s47 + $0x78] sm:$0xff]
      %v1432 = vld [vmem:[%s47 + $0x80] sm:$0xff]
      %v1433 = vld [vmem:[%s47 + $0x88] sm:$0xff]
      %v1434 = vld [vmem:[%s47 + $0x90] sm:$0xff]
      %v1435 = vld [vmem:[%s47 + $0x98] sm:$0xff]
      %v1436 = vld [vmem:[%s47 + $0xa0] sm:$0xff]
      %v1437 = vld [vmem:[%s47 + $0xa8] sm:$0xff]
      %v1438 = vld [vmem:[%s47 + $0xb0] sm:$0xff]
      %v1439 = vld [vmem:[%s47 + $0xb8] sm:$0xff]
      %v1440 = vld [vmem:[%s47 + $0xc0] sm:$0xff]
      %v1441 = vld [vmem:[%s47 + $0xc8] sm:$0xff]
      %v1442 = vld [vmem:[%s47 + $0xd0] sm:$0xff]
      %v1443 = vld [vmem:[%s47 + $0xd8] sm:$0xff]
      %v1444 = vld [vmem:[%s47 + $0xe0] sm:$0xff]
      %v1445 = vld [vmem:[%s47 + $0xe8] sm:$0xff]
      %v1446 = vld [vmem:[%s47 + $0xf0] sm:$0xff]
      %v1447 = vld [vmem:[%s47 + $0xf8] sm:$0xff]
      %v1448 = vld [vmem:[%s47 + $0x100] sm:$0xff]
      %v1449 = vld [vmem:[%s47 + $0x108] sm:$0xff]
      %v1450 = vld [vmem:[%s47 + $0x110] sm:$0xff]
      %v1451 = vld [vmem:[%s47 + $0x118] sm:$0xff]
      %v1452 = vld [vmem:[%s47 + $0x120] sm:$0xff]
      %v1453 = vld [vmem:[%s47 + $0x128] sm:$0xff]
      %v1454 = vld [vmem:[%s47 + $0x130] sm:$0xff]
      %v1455 = vld [vmem:[%s47 + $0x138] sm:$0xff]
      %v1456 = vld [vmem:[%s47 + $0x140] sm:$0xff]
      %v1457 = vld [vmem:[%s47 + $0x148] sm:$0xff]
      %v1458 = vld [vmem:[%s47 + $0x150] sm:$0xff]
      %v1459 = vld [vmem:[%s47 + $0x158] sm:$0xff]
      %v1460 = vld [vmem:[%s47 + $0x160] sm:$0xff]
      %v1461 = vld [vmem:[%s47 + $0x168] sm:$0xff]
      %v1462 = vld [vmem:[%s47 + $0x170] sm:$0xff]
      %v1463 = vld [vmem:[%s47 + $0x178] sm:$0xff]
      %v1464 = vld [vmem:[%s47 + $0x180] sm:$0xff]
      %v1465 = vld [vmem:[%s47 + $0x188] sm:$0xff]
      %v1466 = vld [vmem:[%s47 + $0x190] sm:$0xff]
      %v1467 = vld [vmem:[%s47 + $0x198] sm:$0xff]
      %v1468 = vld [vmem:[%s47 + $0x1a0] sm:$0xff]
      %v1469 = vld [vmem:[%s47 + $0x1a8] sm:$0xff]
      %v1470 = vld [vmem:[%s47 + $0x1b0] sm:$0xff]
      %v1471 = vld [vmem:[%s47 + $0x1b8] sm:$0xff]
      %v1472 = vld [vmem:[%s47 + $0x1c0] sm:$0xff]
      %v1473 = vld [vmem:[%s47 + $0x1c8] sm:$0xff]
      %v1474 = vld [vmem:[%s47 + $0x1d0] sm:$0xff]
      %v1475 = vld [vmem:[%s47 + $0x1d8] sm:$0xff]
      %v1476 = vld [vmem:[%s47 + $0x1e0] sm:$0xff]
      %v1477 = vld [vmem:[%s47 + $0x1e8] sm:$0xff]
      %v1478 = vld [vmem:[%s47 + $0x1f0] sm:$0xff]
      %v1479 = vld [vmem:[%s47 + $0x1f8] sm:$0xff]
      %1480 = vmatprep.subr.mxu0 %v1417
      %1481 = vmatpush1.msra.mxu0 %v1416
      %1482 = vmatprep.subr.mxu0 %v1419
      %1483 = vmatpush1.msra.mxu0 %v1418
      %1484 = vmatprep.subr.mxu0 %v1421
      %1485 = vmatpush1.msra.mxu0 %v1420
      %1486 = vmatprep.subr.mxu0 %v1423
      %1487 = vmatpush1.msra.mxu0 %v1422
      %1488 = vmatprep.subr.mxu0 %v1425
      %1489 = vmatpush1.msra.mxu0 %v1424
      %1490 = vmatprep.subr.mxu0 %v1427
      %1491 = vmatpush1.msra.mxu0 %v1426
      %1492 = vmatprep.subr.mxu0 %v1429
      %1493 = vmatpush1.msra.mxu0 %v1428
      %1494 = vmatprep.subr.mxu0 %v1431
      %1495 = vmatpush1.msra.mxu0 %v1430
      %1496 = vmatprep.subr.mxu0 %v1433
      %1497 = vmatpush1.msra.mxu0 %v1432
      %1498 = vmatprep.subr.mxu0 %v1435
      %1499 = vmatpush1.msra.mxu0 %v1434
      %1500 = vmatprep.subr.mxu0 %v1437
      %1501 = vmatpush1.msra.mxu0 %v1436
      %1502 = vmatprep.subr.mxu0 %v1439
      %1503 = vmatpush1.msra.mxu0 %v1438
      %1504 = vmatprep.subr.mxu0 %v1441
      %1505 = vmatpush1.msra.mxu0 %v1440
      %1506 = vmatprep.subr.mxu0 %v1443
      %1507 = vmatpush1.msra.mxu0 %v1442
      %1508 = vmatprep.subr.mxu0 %v1445
      %1509 = vmatpush1.msra.mxu0 %v1444
      %1510 = vmatprep.subr.mxu0 %v1447
      %1511 = vmatpush1.msra.mxu0 %v1446
      %1512 = vmatprep.subr.mxu0 %v1449
      %1513 = vmatpush1.msra.mxu0 %v1448
      %1514 = vmatprep.subr.mxu0 %v1451
      %1515 = vmatpush1.msra.mxu0 %v1450
      %1516 = vmatprep.subr.mxu0 %v1453
      %1517 = vmatpush1.msra.mxu0 %v1452
      %1518 = vmatprep.subr.mxu0 %v1455
      %1519 = vmatpush1.msra.mxu0 %v1454
      %1520 = vmatprep.subr.mxu0 %v1457
      %1521 = vmatpush1.msra.mxu0 %v1456
      %1522 = vmatprep.subr.mxu0 %v1459
      %1523 = vmatpush1.msra.mxu0 %v1458
      %1524 = vmatprep.subr.mxu0 %v1461
      %1525 = vmatpush1.msra.mxu0 %v1460
      %1526 = vmatprep.subr.mxu0 %v1463
      %1527 = vmatpush1.msra.mxu0 %v1462
      %1528 = vmatprep.subr.mxu0 %v1465
      %1529 = vmatpush1.msra.mxu0 %v1464
      %1530 = vmatprep.subr.mxu0 %v1467
      %1531 = vmatpush1.msra.mxu0 %v1466
      %1532 = vmatprep.subr.mxu0 %v1469
      %1533 = vmatpush1.msra.mxu0 %v1468
      %1534 = vmatprep.subr.mxu0 %v1471
      %1535 = vmatpush1.msra.mxu0 %v1470
      %1536 = vmatprep.subr.mxu0 %v1473
      %1537 = vmatpush1.msra.mxu0 %v1472
      %1538 = vmatprep.subr.mxu0 %v1475
      %1539 = vmatpush1.msra.mxu0 %v1474
      %1540 = vmatprep.subr.mxu0 %v1477
      %1541 = vmatpush1.msra.mxu0 %v1476
      %1542 = vmatprep.subr.mxu0 %v1479
      %1543 = vmatpush1.msra.mxu0 %v1478
      %1544 = vmatprep.mubr.f32.mxu0 %v1413
      %1545 = vmatmul.mubr.f32.gmra.mrb[0].mxu0 %v1412
      %v1546 = vpop.f32.mrb[0].mxu0
      %v1547 = vadd.f32 0.0, %v1546
      %v1548 = vpop.f32.mrb[0].mxu0
      %v1549 = vadd.f32 0.0, %v1548
      %1550 = vdwg.mxu0
      %1552 = vrot.lane.b32.xlu0 %v1547, 64
      %v1553 = vpop.permute.xlu0 %1552
      %v1555 = vmax.f32 %v1547, %v1553
      %1557 = vrot.lane.b32.xlu0 %v1549, 64
      %v1558 = vpop.permute.xlu0 %1557
      %v1560 = vmax.f32 %v1549, %v1558
      %v1561 = vmax.f32 %v1555, %v1560
      %v1562 = vld [vmem:[%s11] sm:$0xff]
      %v1563 = vld [vmem:[%s11 + $0x8] sm:$0xff]
      %v1564 = vld [vmem:[%s13] sm:$0xff]
      %v1565 = vld [vmem:[%s13 + $0x8] sm:$0xff]
      %1566 = vst [vmem:[#allocation2] sm:$0xff] 0.0
      %1567 = vst [vmem:[#allocation2 + $0x8] sm:$0xff] 0.0
      %1568 = vst.msk [vmem:[#allocation2 + $0x10] sm:$0xff] %vm974, 0.0
      %1570 = vrot.lane.b32.xlu0 %v1561, 32
      %v1571 = vpop.permute.xlu0 %1570
      %vm1573 = vcmask 785664
      %1574 = vst.msk [vmem:[#allocation2] sm:$0xff] %vm1573, %v1571
      %v1575 = vand.u32 %v992, 7
      %v1576 = vld [vmem:[#allocation2] sm:$0xff]
      %vm1577 = vcmp.eq.s32.totalorder %v1575, 0
      %v1578 = vsel %vm1577, 1, 0
      %vm1579 = vcmp.eq.s32.totalorder %v1578, 1
      %1581 = vrot.lane.b32.xlu0 %v1576, 105
      %v1582 = vpop.permute.xlu0 %1581
      %v1584 = vsel %vm1579, 0.0, %v1582
      %vm1585 = vcmp.eq.s32.totalorder %v1575, 7
      %v1586 = vsel %vm1585, 1, 0
      %vm1587 = vcmp.eq.s32.totalorder %v1586, 1
      %1588 = vrot.lane.b32.xlu0 %v1576, 103
      %v1589 = vpop.permute.xlu0 %1588
      %v1591 = vsel %vm1587, 0.0, %v1589
      %1592 = vrot.lane.b32.xlu0 %v1576, 97
      %v1593 = vpop.permute.xlu0 %1592
      %v1595 = vsel %vm1579, 0.0, %v1593
      %1596 = vrot.lane.b32.xlu0 %v1576, 95
      %v1597 = vpop.permute.xlu0 %1596
      %v1599 = vsel %vm1587, 0.0, %v1597
      %1600 = vrot.lane.b32.xlu0 %v1576, 89
      %v1601 = vpop.permute.xlu0 %1600
      %v1603 = vsel %vm1579, 0.0, %v1601
      %1604 = vrot.lane.b32.xlu0 %v1576, 87
      %v1605 = vpop.permute.xlu0 %1604
      %v1607 = vsel %vm1587, 0.0, %v1605
      %1608 = vrot.lane.b32.xlu0 %v1576, 104
      %v1609 = vpop.permute.xlu0 %1608
      %1611 = vrot.lane.b32.xlu0 %v1576, 96
      %v1612 = vpop.permute.xlu0 %1611
      %1614 = vrot.lane.b32.xlu0 %v1576, 88
      %v1615 = vpop.permute.xlu0 %1614
      %1618 = vset.pattern.permute.xlu0 0
      %1619 = vperm.xlu0 %1618, %v1564
      %v1620 = vpop.permute.xlu0 %1619
      %1623 = vset.pattern.permute.xlu0 0
      %1624 = vperm.xlu0 %1623, %v1565
      %v1625 = vpop.permute.xlu0 %1624
      %v1628 = vsel %vm1130, %v1562, 0
      %v1631 = vsel %vm1130, %v1563, 0
      %1633 = vmatprep.subr.mxu0 0.0
      %1634 = vmatpush1.msra.mxu0 %v1584
      %1635 = vmatprep.subr.mxu0 0.0
      %1636 = vmatpush1.msra.mxu0 %v1609
      %1637 = vmatprep.subr.mxu0 0.0
      %1638 = vmatpush1.msra.mxu0 %v1591
      %1639 = vmatprep.subr.mxu0 0.0
      %1640 = vmatpush1.msra.mxu0 %v1595
      %1641 = vmatprep.subr.mxu0 0.0
      %1642 = vmatpush1.msra.mxu0 %v1612
      %1643 = vmatprep.subr.mxu0 0.0
      %1644 = vmatpush1.msra.mxu0 %v1599
      %1645 = vmatprep.subr.mxu0 0.0
      %1646 = vmatpush1.msra.mxu0 %v1603
      %1647 = vmatprep.subr.mxu0 0.0
      %1648 = vmatpush1.msra.mxu0 %v1615
      %1649 = vmatprep.subr.mxu0 0.0
      %1650 = vmatpush1.msra.mxu0 %v1607
      %1651 = vmatprep.subr.mxu0 0.0
      %1652 = vmatpush1.msra.mxu0 0.0
      %1653 = vmatprep.subr.mxu0 0.0
      %1654 = vmatpush1.msra.mxu0 0.0
      %1655 = vmatprep.subr.mxu0 0.0
      %1656 = vmatpush1.msra.mxu0 0.0
      %1657 = vmatprep.subr.mxu0 0.0
      %1658 = vmatpush1.msra.mxu0 0.0
      %1659 = vmatprep.subr.mxu0 0.0
      %1660 = vmatpush1.msra.mxu0 0.0
      %1661 = vmatprep.subr.mxu0 0.0
      %1662 = vmatpush1.msra.mxu0 0.0
      %1663 = vmatprep.subr.mxu0 0.0
      %1664 = vmatpush1.msra.mxu0 0.0
      %1665 = vmatprep.subr.mxu0 0.0
      %1666 = vmatpush1.msra.mxu0 0.0
      %1667 = vmatprep.subr.mxu0 0.0
      %1668 = vmatpush1.msra.mxu0 0.0
      %1669 = vmatprep.subr.mxu0 0.0
      %1670 = vmatpush1.msra.mxu0 0.0
      %1671 = vmatprep.subr.mxu0 0.0
      %1672 = vmatpush1.msra.mxu0 0.0
      %1673 = vmatprep.subr.mxu0 0.0
      %1674 = vmatpush1.msra.mxu0 0.0
      %1675 = vmatprep.subr.mxu0 0.0
      %1676 = vmatpush1.msra.mxu0 0.0
      %1677 = vmatprep.subr.mxu0 0.0
      %1678 = vmatpush1.msra.mxu0 0.0
      %1679 = vmatprep.subr.mxu0 0.0
      %1680 = vmatpush1.msra.mxu0 0.0
      %1681 = vmatprep.subr.mxu0 0.0
      %1682 = vmatpush1.msra.mxu0 0.0
      %1683 = vmatprep.subr.mxu0 0.0
      %1684 = vmatpush1.msra.mxu0 0.0
      %1685 = vmatprep.subr.mxu0 0.0
      %1686 = vmatpush1.msra.mxu0 0.0
      %1687 = vmatprep.subr.mxu0 0.0
      %1688 = vmatpush1.msra.mxu0 0.0
      %1689 = vmatprep.subr.mxu0 0.0
      %1690 = vmatpush1.msra.mxu0 0.0
      %1691 = vmatprep.subr.mxu0 0.0
      %1692 = vmatpush1.msra.mxu0 0.0
      %1693 = vmatprep.subr.mxu0 0.0
      %1694 = vmatpush1.msra.mxu0 0.0
      %1695 = vmatprep.subr.mxu0 0.0
      %1696 = vmatpush1.msra.mxu0 0.0
      %1697 = vmatprep.mubr.f32.mxu0 0.0
      %1698 = vmatmul.mubr.f32.gmra.mrb[0].mxu0 %v1628
      %v1699 = vpop.f32.mrb[0].mxu0
      %v1700 = vadd.f32 %v1620, %v1699
      %v1701 = vpop.f32.mrb[0].mxu0
      %1702 = vmatprep.mubr.f32.mxu0 0.0
      %1703 = vmatmul.mubr.f32.gmra.mrb[0].mxu0 %v1631
      %v1704 = vpop.f32.mrb[0].mxu0
      %v1705 = vadd.f32 %v1625, %v1704
      %v1706 = vpop.f32.mrb[0].mxu0
      %1707 = vdwg.mxu0
      %v1708 = vmax.f32 %v1700, 0.0
      %v1709 = vmax.f32 %v1705, 0.0
      %v1710 = vld [vmem:[%s15] sm:$0xff]
      %v1711 = vld [vmem:[%s15 + $0x8] sm:$0xff]
      %v1712 = vld [vmem:[%s15 + $0x10] sm:$0xff]
      %v1713 = vld [vmem:[%s15 + $0x18] sm:$0xff]
      %v1714 = vld [vmem:[%s17] sm:$0xff]
      %v1715 = vld [vmem:[%s17 + $0x8] sm:$0xff]
      %1716 = vst [vmem:[#allocation2] sm:$0xff] 0.0
      %1717 = vst [vmem:[#allocation2 + $0x8] sm:$0xff] 0.0
      %1718 = vst.msk [vmem:[#allocation2 + $0x10] sm:$0xff] %vm974, 0.0
      %1719 = vst [vmem:[#allocation2 + $0x18] sm:$0xff] 0.0
      %1720 = vst [vmem:[#allocation2 + $0x20] sm:$0xff] 0.0
      %1721 = vst.msk [vmem:[#allocation2 + $0x28] sm:$0xff] %vm974, 0.0
      %1724 = vrot.lane.b32.xlu0 %v1708, 32
      %v1725 = vpop.permute.xlu0 %1724
      %1726 = vrot.lane.b32.xlu0 %v1709, 32
      %v1727 = vpop.permute.xlu0 %1726
      %1730 = vst.msk [vmem:[#allocation2] sm:$0xff] %vm1573, %v1725
      %1731 = vst.msk [vmem:[#allocation2 + $0x18] sm:$0xff] %vm1573, %v1727
      %v1732 = vld [vmem:[#allocation2] sm:$0xff]
      %v1733 = vld [vmem:[#allocation2 + $0x18] sm:$0xff]
      %1736 = vrot.lane.b32.xlu0 %v1732, 105
      %v1737 = vpop.permute.xlu0 %1736
      %1738 = vrot.lane.b32.xlu0 %v1733, 105
      %v1739 = vpop.permute.xlu0 %1738
      %v1742 = vsel %vm1579, 0.0, %v1737
      %v1743 = vsel %vm1579, 0.0, %v1739
      %1744 = vrot.lane.b32.xlu0 %v1732, 103
      %v1745 = vpop.permute.xlu0 %1744
      %1746 = vrot.lane.b32.xlu0 %v1733, 103
      %v1747 = vpop.permute.xlu0 %1746
      %v1750 = vsel %vm1587, 0.0, %v1745
      %v1751 = vsel %vm1587, 0.0, %v1747
      %1752 = vrot.lane.b32.xlu0 %v1732, 97
      %v1753 = vpop.permute.xlu0 %1752
      %1754 = vrot.lane.b32.xlu0 %v1733, 97
      %v1755 = vpop.permute.xlu0 %1754
      %v1758 = vsel %vm1579, 0.0, %v1753
      %v1759 = vsel %vm1579, 0.0, %v1755
      %1760 = vrot.lane.b32.xlu0 %v1732, 95
      %v1761 = vpop.permute.xlu0 %1760
      %1762 = vrot.lane.b32.xlu0 %v1733, 95
      %v1763 = vpop.permute.xlu0 %1762
      %v1766 = vsel %vm1587, 0.0, %v1761
      %v1767 = vsel %vm1587, 0.0, %v1763
      %1768 = vrot.lane.b32.xlu0 %v1732, 89
      %v1769 = vpop.permute.xlu0 %1768
      %1770 = vrot.lane.b32.xlu0 %v1733, 89
      %v1771 = vpop.permute.xlu0 %1770
      %v1774 = vsel %vm1579, 0.0, %v1769
      %v1775 = vsel %vm1579, 0.0, %v1771
      %1776 = vrot.lane.b32.xlu0 %v1732, 87
      %v1777 = vpop.permute.xlu0 %1776
      %1778 = vrot.lane.b32.xlu0 %v1733, 87
      %v1779 = vpop.permute.xlu0 %1778
      %v1782 = vsel %vm1587, 0.0, %v1777
      %v1783 = vsel %vm1587, 0.0, %v1779
      %1784 = vrot.lane.b32.xlu0 %v1732, 104
      %v1785 = vpop.permute.xlu0 %1784
      %1786 = vrot.lane.b32.xlu0 %v1733, 104
      %v1787 = vpop.permute.xlu0 %1786
      %1790 = vrot.lane.b32.xlu0 %v1732, 96
      %v1791 = vpop.permute.xlu0 %1790
      %1792 = vrot.lane.b32.xlu0 %v1733, 96
      %v1793 = vpop.permute.xlu0 %1792
      %1796 = vrot.lane.b32.xlu0 %v1732, 88
      %v1797 = vpop.permute.xlu0 %1796
      %1798 = vrot.lane.b32.xlu0 %v1733, 88
      %v1799 = vpop.permute.xlu0 %1798
      %1803 = vset.pattern.permute.xlu0 0
      %1804 = vperm.xlu0 %1803, %v1714
      %v1805 = vpop.permute.xlu0 %1804
      %1808 = vset.pattern.permute.xlu0 0
      %1809 = vperm.xlu0 %1808, %v1715
      %v1810 = vpop.permute.xlu0 %1809
      %vm1812 = vcmask 130048
      %v1814 = vsel %vm1812, %v1711, 0
      %v1817 = vsel %vm1812, %v1713, 0
      %1819 = vmatprep.subr.mxu0 0.0
      %1820 = vmatpush1.msra.mxu0 %v1742
      %1821 = vmatprep.subr.mxu0 0.0
      %1822 = vmatpush1.msra.mxu0 %v1743
      %1823 = vmatprep.subr.mxu0 0.0
      %1824 = vmatpush1.msra.mxu0 %v1785
      %1825 = vmatprep.subr.mxu0 0.0
      %1826 = vmatpush1.msra.mxu0 %v1787
      %1827 = vmatprep.subr.mxu0 0.0
      %1828 = vmatpush1.msra.mxu0 %v1750
      %1829 = vmatprep.subr.mxu0 0.0
      %1830 = vmatpush1.msra.mxu0 %v1751
      %1831 = vmatprep.subr.mxu0 0.0
      %1832 = vmatpush1.msra.mxu0 %v1758
      %1833 = vmatprep.subr.mxu0 0.0
      %1834 = vmatpush1.msra.mxu0 %v1759
      %1835 = vmatprep.subr.mxu0 0.0
      %1836 = vmatpush1.msra.mxu0 %v1791
      %1837 = vmatprep.subr.mxu0 0.0
      %1838 = vmatpush1.msra.mxu0 %v1793
      %1839 = vmatprep.subr.mxu0 0.0
      %1840 = vmatpush1.msra.mxu0 %v1766
      %1841 = vmatprep.subr.mxu0 0.0
      %1842 = vmatpush1.msra.mxu0 %v1767
      %1843 = vmatprep.subr.mxu0 0.0
      %1844 = vmatpush1.msra.mxu0 %v1774
      %1845 = vmatprep.subr.mxu0 0.0
      %1846 = vmatpush1.msra.mxu0 %v1775
      %1847 = vmatprep.subr.mxu0 0.0
      %1848 = vmatpush1.msra.mxu0 %v1797
      %1849 = vmatprep.subr.mxu0 0.0
      %1850 = vmatpush1.msra.mxu0 %v1799
      %1851 = vmatprep.subr.mxu0 0.0
      %1852 = vmatpush1.msra.mxu0 %v1782
      %1853 = vmatprep.subr.mxu0 0.0
      %1854 = vmatpush1.msra.mxu0 %v1783
      %1855 = vmatprep.subr.mxu0 0.0
      %1856 = vmatpush1.msra.mxu0 0.0
      %1857 = vmatprep.subr.mxu0 0.0
      %1858 = vmatpush1.msra.mxu0 0.0
      %1859 = vmatprep.subr.mxu0 0.0
      %1860 = vmatpush1.msra.mxu0 0.0
      %1861 = vmatprep.subr.mxu0 0.0
      %1862 = vmatpush1.msra.mxu0 0.0
      %1863 = vmatprep.subr.mxu0 0.0
      %1864 = vmatpush1.msra.mxu0 0.0
      %1865 = vmatprep.subr.mxu0 0.0
      %1866 = vmatpush1.msra.mxu0 0.0
      %1867 = vmatprep.subr.mxu0 0.0
      %1868 = vmatpush1.msra.mxu0 0.0
      %1869 = vmatprep.subr.mxu0 0.0
      %1870 = vmatpush1.msra.mxu0 0.0
      %1871 = vmatprep.subr.mxu0 0.0
      %1872 = vmatpush1.msra.mxu0 0.0
      %1873 = vmatprep.subr.mxu0 0.0
      %1874 = vmatpush1.msra.mxu0 0.0
      %1875 = vmatprep.subr.mxu0 0.0
      %1876 = vmatpush1.msra.mxu0 0.0
      %1877 = vmatprep.subr.mxu0 0.0
      %1878 = vmatpush1.msra.mxu0 0.0
      %1879 = vmatprep.subr.mxu0 0.0
      %1880 = vmatpush1.msra.mxu0 0.0
      %1881 = vmatprep.subr.mxu0 0.0
      %1882 = vmatpush1.msra.mxu0 0.0
      %1883 = vmatprep.mubr.f32.mxu0 %v1814
      %1884 = vmatmul.mubr.f32.gmra.mrb[0].mxu0 %v1710
      %v1885 = vpop.f32.mrb[0].mxu0
      %v1886 = vadd.f32 %v1805, %v1885
      %v1887 = vpop.f32.mrb[0].mxu0
      %1888 = vmatprep.mubr.f32.mxu0 %v1817
      %1889 = vmatmul.mubr.f32.gmra.mrb[0].mxu0 %v1712
      %v1890 = vpop.f32.mrb[0].mxu0
      %v1891 = vadd.f32 %v1810, %v1890
      %v1892 = vpop.f32.mrb[0].mxu0
      %1893 = vdwg.mxu0
      %v1894 = vmax.f32 %v1886, 0.0
      %v1895 = vmax.f32 %v1891, 0.0
      %1896 = vst.msk [vmem:[%s957] sm:$0xff] %vm974, %v1894
      %1897 = vst.msk [vmem:[%s957 + $0x8] sm:$0xff] %vm974, %v1895
      %v1898 = vld [vmem:[%s49] sm:$0xff]
      %v1899 = vld [vmem:[%s49 + $0x8] sm:$0xff]
      %v1900 = vld [vmem:[%s49 + $0x10] sm:$0xff]
      %v1901 = vld [vmem:[%s49 + $0x18] sm:$0xff]
      %v1902 = vld [vmem:[%s49 + $0x20] sm:$0xff]
      %v1903 = vld [vmem:[%s49 + $0x28] sm:$0xff]
      %v1904 = vld [vmem:[%s49 + $0x30] sm:$0xff]
      %v1905 = vld [vmem:[%s49 + $0x38] sm:$0xff]
      %v1907 = vsel %vm974, %v1894, 0
      %v1910 = vsel %vm974, %v1895, 0
      %1912 = vmatprep.subr.mxu0 0.0
      %1913 = vmatpush1.msra.mxu0 %v1898
      %1914 = vmatprep.subr.mxu0 0.0
      %1915 = vmatpush1.msra.mxu0 %v1899
      %1916 = vmatprep.subr.mxu0 0.0
      %1917 = vmatpush1.msra.mxu0 %v1900
      %1918 = vmatprep.subr.mxu0 0.0
      %1919 = vmatpush1.msra.mxu0 %v1901
      %1920 = vmatprep.subr.mxu0 0.0
      %1921 = vmatpush1.msra.mxu0 %v1902
      %1922 = vmatprep.subr.mxu0 0.0
      %1923 = vmatpush1.msra.mxu0 %v1903
      %1924 = vmatprep.subr.mxu0 0.0
      %1925 = vmatpush1.msra.mxu0 %v1904
      %1926 = vmatprep.subr.mxu0 0.0
      %1927 = vmatpush1.msra.mxu0 %v1905
      %1928 = vmatprep.subr.mxu0 0.0
      %1929 = vmatpush1.msra.mxu0 0.0
      %1930 = vmatprep.subr.mxu0 0.0
      %1931 = vmatpush1.msra.mxu0 0.0
      %1932 = vmatprep.subr.mxu0 0.0
      %1933 = vmatpush1.msra.mxu0 0.0
      %1934 = vmatprep.subr.mxu0 0.0
      %1935 = vmatpush1.msra.mxu0 0.0
      %1936 = vmatprep.subr.mxu0 0.0
      %1937 = vmatpush1.msra.mxu0 0.0
      %1938 = vmatprep.subr.mxu0 0.0
      %1939 = vmatpush1.msra.mxu0 0.0
      %1940 = vmatprep.subr.mxu0 0.0
      %1941 = vmatpush1.msra.mxu0 0.0
      %1942 = vmatprep.subr.mxu0 0.0
      %1943 = vmatpush1.msra.mxu0 0.0
      %1944 = vmatprep.subr.mxu0 0.0
      %1945 = vmatpush1.msra.mxu0 0.0
      %1946 = vmatprep.subr.mxu0 0.0
      %1947 = vmatpush1.msra.mxu0 0.0
      %1948 = vmatprep.subr.mxu0 0.0
      %1949 = vmatpush1.msra.mxu0 0.0
      %1950 = vmatprep.subr.mxu0 0.0
      %1951 = vmatpush1.msra.mxu0 0.0
      %1952 = vmatprep.subr.mxu0 0.0
      %1953 = vmatpush1.msra.mxu0 0.0
      %1954 = vmatprep.subr.mxu0 0.0
      %1955 = vmatpush1.msra.mxu0 0.0
      %1956 = vmatprep.subr.mxu0 0.0
      %1957 = vmatpush1.msra.mxu0 0.0
      %1958 = vmatprep.subr.mxu0 0.0
      %1959 = vmatpush1.msra.mxu0 0.0
      %1960 = vmatprep.subr.mxu0 0.0
      %1961 = vmatpush1.msra.mxu0 0.0
      %1962 = vmatprep.subr.mxu0 0.0
      %1963 = vmatpush1.msra.mxu0 0.0
      %1964 = vmatprep.subr.mxu0 0.0
      %1965 = vmatpush1.msra.mxu0 0.0
      %1966 = vmatprep.subr.mxu0 0.0
      %1967 = vmatpush1.msra.mxu0 0.0
      %1968 = vmatprep.subr.mxu0 0.0
      %1969 = vmatpush1.msra.mxu0 0.0
      %1970 = vmatprep.subr.mxu0 0.0
      %1971 = vmatpush1.msra.mxu0 0.0
      %1972 = vmatprep.subr.mxu0 0.0
      %1973 = vmatpush1.msra.mxu0 0.0
      %1974 = vmatprep.subr.mxu0 0.0
      %1975 = vmatpush1.msra.mxu0 0.0
      %1976 = vmatprep.mubr.f32.mxu0 0.0
      %1977 = vmatmul.mubr.f32.gmra.mrb[0].mxu0 %v1907
      %v1978 = vpop.f32.mrb[0].mxu0
      %v1979 = vadd.f32 0.0, %v1978
      %v1980 = vpop.f32.mrb[0].mxu0
      %1981 = vmatprep.mubr.f32.mxu0 0.0
      %1982 = vmatmul.mubr.f32.gmra.mrb[0].mxu0 %v1910
      %v1983 = vpop.f32.mrb[0].mxu0
      %v1984 = vadd.f32 0.0, %v1983
      %v1985 = vpop.f32.mrb[0].mxu0
      %1986 = vdwg.mxu0
      %1989 = vrot.lane.b32.xlu0 %v1979, 112
      %v1990 = vpop.permute.xlu0 %1989
      %1991 = vrot.lane.b32.xlu0 %v1984, 112
      %v1992 = vpop.permute.xlu0 %1991
      %v1995 = vmax.f32 %v1979, %v1990
      %v1996 = vmax.f32 %v1984, %v1992
      %1999 = vrot.lane.b32.xlu0 %v1995, 96
      %v2000 = vpop.permute.xlu0 %1999
      %2001 = vrot.lane.b32.xlu0 %v1996, 96
      %v2002 = vpop.permute.xlu0 %2001
      %v2005 = vmax.f32 %v1995, %v2000
      %v2006 = vmax.f32 %v1996, %v2002
      %v2007 = vld [vmem:[%s19] sm:$0xff]
      %v2008 = vld [vmem:[%s19 + $0x8] sm:$0xff]
      %v2009 = vld [vmem:[%s19 + $0x10] sm:$0xff]
      %v2010 = vld [vmem:[%s19 + $0x18] sm:$0xff]
      %v2011 = vld [vmem:[%s19 + $0x20] sm:$0xff]
      %v2012 = vld [vmem:[%s19 + $0x28] sm:$0xff]
      %v2013 = vld [vmem:[%s19 + $0x30] sm:$0xff]
      %v2014 = vld [vmem:[%s19 + $0x38] sm:$0xff]
      %v2015 = vld [vmem:[%s21] sm:$0xff]
      %v2016 = vld [vmem:[%s21 + $0x8] sm:$0xff]
      %v2017 = vld [vmem:[%s21 + $0x10] sm:$0xff]
      %v2018 = vld [vmem:[%s21 + $0x18] sm:$0xff]
      %2019 = vst [vmem:[#allocation2] sm:$0xff] 0.0
      %2020 = vst [vmem:[#allocation2 + $0x8] sm:$0xff] 0.0
      %2021 = vst.msk [vmem:[#allocation2 + $0x10] sm:$0xff] %vm974, 0.0
      %2022 = vst [vmem:[#allocation2 + $0x18] sm:$0xff] 0.0
      %2023 = vst [vmem:[#allocation2 + $0x20] sm:$0xff] 0.0
      %2024 = vst.msk [vmem:[#allocation2 + $0x28] sm:$0xff] %vm974, 0.0
      %2027 = vrot.lane.b32.xlu0 %v2005, 32
      %v2028 = vpop.permute.xlu0 %2027
      %2029 = vrot.lane.b32.xlu0 %v2006, 32
      %v2030 = vpop.permute.xlu0 %2029
      %vm2033 = vcmask 392448
      %2034 = vst.msk [vmem:[#allocation2] sm:$0xff] %vm2033, %v2028
      %2035 = vst.msk [vmem:[#allocation2 + $0x18] sm:$0xff] %vm2033, %v2030
      %v2036 = vand.u32 %v992, 3
      %v2037 = vld [vmem:[#allocation2] sm:$0xff]
      %v2038 = vld [vmem:[#allocation2 + $0x18] sm:$0xff]
      %vm2039 = vcmp.eq.s32.totalorder %v2036, 0
      %v2040 = vsel %vm2039, 1, 0
      %vm2041 = vcmp.eq.s32.totalorder %v2040, 1
      %2044 = vrot.lane.b32.xlu0 %v2037, 101
      %v2045 = vpop.permute.xlu0 %2044
      %2046 = vrot.lane.b32.xlu0 %v2038, 101
      %v2047 = vpop.permute.xlu0 %2046
      %v2050 = vsel %vm2041, 0.0, %v2045
      %v2051 = vsel %vm2041, 0.0, %v2047
      %vm2052 = vcmp.eq.s32.totalorder %v2036, 3
      %v2053 = vsel %vm2052, 1, 0
      %vm2054 = vcmp.eq.s32.totalorder %v2053, 1
      %2055 = vrot.lane.b32.xlu0 %v2037, 99
      %v2056 = vpop.permute.xlu0 %2055
      %2057 = vrot.lane.b32.xlu0 %v2038, 99
      %v2058 = vpop.permute.xlu0 %2057
      %v2061 = vsel %vm2054, 0.0, %v2056
      %v2062 = vsel %vm2054, 0.0, %v2058
      %2063 = vrot.lane.b32.xlu0 %v2037, 97
      %v2064 = vpop.permute.xlu0 %2063
      %2065 = vrot.lane.b32.xlu0 %v2038, 97
      %v2066 = vpop.permute.xlu0 %2065
      %v2069 = vsel %vm2041, 0.0, %v2064
      %v2070 = vsel %vm2041, 0.0, %v2066
      %2071 = vrot.lane.b32.xlu0 %v2037, 95
      %v2072 = vpop.permute.xlu0 %2071
      %2073 = vrot.lane.b32.xlu0 %v2038, 95
      %v2074 = vpop.permute.xlu0 %2073
      %v2077 = vsel %vm2054, 0.0, %v2072
      %v2078 = vsel %vm2054, 0.0, %v2074
      %2079 = vrot.lane.b32.xlu0 %v2037, 93
      %v2080 = vpop.permute.xlu0 %2079
      %2081 = vrot.lane.b32.xlu0 %v2038, 93
      %v2082 = vpop.permute.xlu0 %2081
      %v2085 = vsel %vm2041, 0.0, %v2080
      %v2086 = vsel %vm2041, 0.0, %v2082
      %2087 = vrot.lane.b32.xlu0 %v2037, 91
      %v2088 = vpop.permute.xlu0 %2087
      %2089 = vrot.lane.b32.xlu0 %v2038, 91
      %v2090 = vpop.permute.xlu0 %2089
      %v2093 = vsel %vm2054, 0.0, %v2088
      %v2094 = vsel %vm2054, 0.0, %v2090
      %2095 = vrot.lane.b32.xlu0 %v2037, 100
      %v2096 = vpop.permute.xlu0 %2095
      %2097 = vrot.lane.b32.xlu0 %v2038, 100
      %v2098 = vpop.permute.xlu0 %2097
      %2101 = vrot.lane.b32.xlu0 %v2037, 96
      %v2102 = vpop.permute.xlu0 %2101
      %2103 = vrot.lane.b32.xlu0 %v2038, 96
      %v2104 = vpop.permute.xlu0 %2103
      %2107 = vrot.lane.b32.xlu0 %v2037, 92
      %v2108 = vpop.permute.xlu0 %2107
      %2109 = vrot.lane.b32.xlu0 %v2038, 92
      %v2110 = vpop.permute.xlu0 %2109
      %2114 = vset.pattern.permute.xlu0 0
      %2115 = vperm.xlu0 %2114, %v2015
      %v2116 = vpop.permute.xlu0 %2115
      %2119 = vset.pattern.permute.xlu0 0
      %2120 = vperm.xlu0 %2119, %v2016
      %v2121 = vpop.permute.xlu0 %2120
      %2124 = vset.pattern.permute.xlu0 0
      %2125 = vperm.xlu0 %2124, %v2017
      %v2126 = vpop.permute.xlu0 %2125
      %2129 = vset.pattern.permute.xlu0 0
      %2130 = vperm.xlu0 %2129, %v2018
      %v2131 = vpop.permute.xlu0 %2130
      %v2134 = vsel %vm1812, %v2008, 0
      %v2137 = vsel %vm1812, %v2010, 0
      %v2140 = vsel %vm1812, %v2012, 0
      %v2143 = vsel %vm1812, %v2014, 0
      %2145 = vmatprep.subr.mxu0 0.0
      %2146 = vmatpush1.msra.mxu0 %v2050
      %2147 = vmatprep.subr.mxu0 0.0
      %2148 = vmatpush1.msra.mxu0 %v2051
      %2149 = vmatprep.subr.mxu0 0.0
      %2150 = vmatpush1.msra.mxu0 %v2096
      %2151 = vmatprep.subr.mxu0 0.0
      %2152 = vmatpush1.msra.mxu0 %v2098
      %2153 = vmatprep.subr.mxu0 0.0
      %2154 = vmatpush1.msra.mxu0 %v2061
      %2155 = vmatprep.subr.mxu0 0.0
      %2156 = vmatpush1.msra.mxu0 %v2062
      %2157 = vmatprep.subr.mxu0 0.0
      %2158 = vmatpush1.msra.mxu0 %v2069
      %2159 = vmatprep.subr.mxu0 0.0
      %2160 = vmatpush1.msra.mxu0 %v2070
      %2161 = vmatprep.subr.mxu0 0.0
      %2162 = vmatpush1.msra.mxu0 %v2102
      %2163 = vmatprep.subr.mxu0 0.0
      %2164 = vmatpush1.msra.mxu0 %v2104
      %2165 = vmatprep.subr.mxu0 0.0
      %2166 = vmatpush1.msra.mxu0 %v2077
      %2167 = vmatprep.subr.mxu0 0.0
      %2168 = vmatpush1.msra.mxu0 %v2078
      %2169 = vmatprep.subr.mxu0 0.0
      %2170 = vmatpush1.msra.mxu0 %v2085
      %2171 = vmatprep.subr.mxu0 0.0
      %2172 = vmatpush1.msra.mxu0 %v2086
      %2173 = vmatprep.subr.mxu0 0.0
      %2174 = vmatpush1.msra.mxu0 %v2108
      %2175 = vmatprep.subr.mxu0 0.0
      %2176 = vmatpush1.msra.mxu0 %v2110
      %2177 = vmatprep.subr.mxu0 0.0
      %2178 = vmatpush1.msra.mxu0 %v2093
      %2179 = vmatprep.subr.mxu0 0.0
      %2180 = vmatpush1.msra.mxu0 %v2094
      %2181 = vmatprep.subr.mxu0 0.0
      %2182 = vmatpush1.msra.mxu0 0.0
      %2183 = vmatprep.subr.mxu0 0.0
      %2184 = vmatpush1.msra.mxu0 0.0
      %2185 = vmatprep.subr.mxu0 0.0
      %2186 = vmatpush1.msra.mxu0 0.0
      %2187 = vmatprep.subr.mxu0 0.0
      %2188 = vmatpush1.msra.mxu0 0.0
      %2189 = vmatprep.subr.mxu0 0.0
      %2190 = vmatpush1.msra.mxu0 0.0
      %2191 = vmatprep.subr.mxu0 0.0
      %2192 = vmatpush1.msra.mxu0 0.0
      %2193 = vmatprep.subr.mxu0 0.0
      %2194 = vmatpush1.msra.mxu0 0.0
      %2195 = vmatprep.subr.mxu0 0.0
      %2196 = vmatpush1.msra.mxu0 0.0
      %2197 = vmatprep.subr.mxu0 0.0
      %2198 = vmatpush1.msra.mxu0 0.0
      %2199 = vmatprep.subr.mxu0 0.0
      %2200 = vmatpush1.msra.mxu0 0.0
      %2201 = vmatprep.subr.mxu0 0.0
      %2202 = vmatpush1.msra.mxu0 0.0
      %2203 = vmatprep.subr.mxu0 0.0
      %2204 = vmatpush1.msra.mxu0 0.0
      %2205 = vmatprep.subr.mxu0 0.0
      %2206 = vmatpush1.msra.mxu0 0.0
      %2207 = vmatprep.subr.mxu0 0.0
      %2208 = vmatpush1.msra.mxu0 0.0
      %2209 = vmatprep.mubr.f32.mxu0 %v2134
      %2210 = vmatmul.mubr.f32.gmra.mrb[0].mxu0 %v2007
      %v2211 = vpop.f32.mrb[0].mxu0
      %v2212 = vadd.f32 %v2116, %v2211
      %v2213 = vpop.f32.mrb[0].mxu0
      %2214 = vmatprep.mubr.f32.mxu0 %v2137
      %2215 = vmatmul.mubr.f32.gmra.mrb[0].mxu0 %v2009
      %v2216 = vpop.f32.mrb[0].mxu0
      %v2217 = vadd.f32 %v2121, %v2216
      %v2218 = vpop.f32.mrb[0].mxu0
      %2219 = vmatprep.mubr.f32.mxu0 %v2140
      %2220 = vmatmul.mubr.f32.gmra.mrb[0].mxu0 %v2011
      %v2221 = vpop.f32.mrb[0].mxu0
      %v2222 = vadd.f32 %v2126, %v2221
      %v2223 = vpop.f32.mrb[0].mxu0
      %2224 = vmatprep.mubr.f32.mxu0 %v2143
      %2225 = vmatmul.mubr.f32.gmra.mrb[0].mxu0 %v2013
      %v2226 = vpop.f32.mrb[0].mxu0
      %v2227 = vadd.f32 %v2131, %v2226
      %v2228 = vpop.f32.mrb[0].mxu0
      %2229 = vdwg.mxu0
      %v2230 = vmax.f32 %v2212, 0.0
      %v2231 = vmax.f32 %v2217, 0.0
      %v2232 = vmax.f32 %v2222, 0.0
      %v2233 = vmax.f32 %v2227, 0.0
      %v2234 = vld [vmem:[%s23] sm:$0xff]
      %v2235 = vld [vmem:[%s23 + $0x8] sm:$0xff]
      %v2236 = vld [vmem:[%s23 + $0x10] sm:$0xff]
      %v2237 = vld [vmem:[%s23 + $0x18] sm:$0xff]
      %v2238 = vld [vmem:[%s23 + $0x20] sm:$0xff]
      %v2239 = vld [vmem:[%s23 + $0x28] sm:$0xff]
      %v2240 = vld [vmem:[%s23 + $0x30] sm:$0xff]
      %v2241 = vld [vmem:[%s23 + $0x38] sm:$0xff]
      %v2242 = vld [vmem:[%s23 + $0x40] sm:$0xff]
      %v2243 = vld [vmem:[%s23 + $0x48] sm:$0xff]
      %v2244 = vld [vmem:[%s23 + $0x50] sm:$0xff]
      %v2245 = vld [vmem:[%s23 + $0x58] sm:$0xff]
      %v2246 = vld [vmem:[%s25] sm:$0xff]
      %v2247 = vld [vmem:[%s25 + $0x8] sm:$0xff]
      %v2248 = vld [vmem:[%s25 + $0x10] sm:$0xff]
      %v2249 = vld [vmem:[%s25 + $0x18] sm:$0xff]
      %2250 = vst [vmem:[#allocation2] sm:$0xff] 0.0
      %2251 = vst [vmem:[#allocation2 + $0x8] sm:$0xff] 0.0
      %2252 = vst.msk [vmem:[#allocation2 + $0x10] sm:$0xff] %vm974, 0.0
      %2253 = vst [vmem:[#allocation2 + $0x18] sm:$0xff] 0.0
      %2254 = vst [vmem:[#allocation2 + $0x20] sm:$0xff] 0.0
      %2255 = vst.msk [vmem:[#allocation2 + $0x28] sm:$0xff] %vm974, 0.0
      %2256 = vst [vmem:[#allocation2 + $0x30] sm:$0xff] 0.0
      %2257 = vst [vmem:[#allocation2 + $0x38] sm:$0xff] 0.0
      %2258 = vst.msk [vmem:[#allocation2 + $0x40] sm:$0xff] %vm974, 0.0
      %2259 = vst [vmem:[#allocation2 + $0x48] sm:$0xff] 0.0
      %2260 = vst [vmem:[#allocation2 + $0x50] sm:$0xff] 0.0
      %2261 = vst.msk [vmem:[#allocation2 + $0x58] sm:$0xff] %vm974, 0.0
      %2266 = vrot.lane.b32.xlu0 %v2230, 32
      %v2267 = vpop.permute.xlu0 %2266
      %2268 = vrot.lane.b32.xlu0 %v2231, 32
      %v2269 = vpop.permute.xlu0 %2268
      %2270 = vrot.lane.b32.xlu0 %v2232, 32
      %v2271 = vpop.permute.xlu0 %2270
      %2272 = vrot.lane.b32.xlu0 %v2233, 32
      %v2273 = vpop.permute.xlu0 %2272
      %2278 = vst.msk [vmem:[#allocation2] sm:$0xff] %vm2033, %v2267
      %2279 = vst.msk [vmem:[#allocation2 + $0x18] sm:$0xff] %vm2033, %v2269
      %2280 = vst.msk [vmem:[#allocation2 + $0x30] sm:$0xff] %vm2033, %v2271
      %2281 = vst.msk [vmem:[#allocation2 + $0x48] sm:$0xff] %vm2033, %v2273
      %v2282 = vld [vmem:[#allocation2] sm:$0xff]
      %v2283 = vld [vmem:[#allocation2 + $0x18] sm:$0xff]
      %v2284 = vld [vmem:[#allocation2 + $0x30] sm:$0xff]
      %v2285 = vld [vmem:[#allocation2 + $0x48] sm:$0xff]
      %2290 = vrot.lane.b32.xlu0 %v2282, 101
      %v2291 = vpop.permute.xlu0 %2290
      %2292 = vrot.lane.b32.xlu0 %v2283, 101
      %v2293 = vpop.permute.xlu0 %2292
      %2294 = vrot.lane.b32.xlu0 %v2284, 101
      %v2295 = vpop.permute.xlu0 %2294
      %2296 = vrot.lane.b32.xlu0 %v2285, 101
      %v2297 = vpop.permute.xlu0 %2296
      %v2302 = vsel %vm2041, 0.0, %v2291
      %v2303 = vsel %vm2041, 0.0, %v2293
      %v2304 = vsel %vm2041, 0.0, %v2295
      %v2305 = vsel %vm2041, 0.0, %v2297
      %2306 = vrot.lane.b32.xlu0 %v2282, 99
      %v2307 = vpop.permute.xlu0 %2306
      %2308 = vrot.lane.b32.xlu0 %v2283, 99
      %v2309 = vpop.permute.xlu0 %2308
      %2310 = vrot.lane.b32.xlu0 %v2284, 99
      %v2311 = vpop.permute.xlu0 %2310
      %2312 = vrot.lane.b32.xlu0 %v2285, 99
      %v2313 = vpop.permute.xlu0 %2312
      %v2318 = vsel %vm2054, 0.0, %v2307
      %v2319 = vsel %vm2054, 0.0, %v2309
      %v2320 = vsel %vm2054, 0.0, %v2311
      %v2321 = vsel %vm2054, 0.0, %v2313
      %2322 = vrot.lane.b32.xlu0 %v2282, 97
      %v2323 = vpop.permute.xlu0 %2322
      %2324 = vrot.lane.b32.xlu0 %v2283, 97
      %v2325 = vpop.permute.xlu0 %2324
      %2326 = vrot.lane.b32.xlu0 %v2284, 97
      %v2327 = vpop.permute.xlu0 %2326
      %2328 = vrot.lane.b32.xlu0 %v2285, 97
      %v2329 = vpop.permute.xlu0 %2328
      %v2334 = vsel %vm2041, 0.0, %v2323
      %v2335 = vsel %vm2041, 0.0, %v2325
      %v2336 = vsel %vm2041, 0.0, %v2327
      %v2337 = vsel %vm2041, 0.0, %v2329
      %2338 = vrot.lane.b32.xlu0 %v2282, 95
      %v2339 = vpop.permute.xlu0 %2338
      %2340 = vrot.lane.b32.xlu0 %v2283, 95
      %v2341 = vpop.permute.xlu0 %2340
      %2342 = vrot.lane.b32.xlu0 %v2284, 95
      %v2343 = vpop.permute.xlu0 %2342
      %2344 = vrot.lane.b32.xlu0 %v2285, 95
      %v2345 = vpop.permute.xlu0 %2344
      %v2350 = vsel %vm2054, 0.0, %v2339
      %v2351 = vsel %vm2054, 0.0, %v2341
      %v2352 = vsel %vm2054, 0.0, %v2343
      %v2353 = vsel %vm2054, 0.0, %v2345
      %2354 = vrot.lane.b32.xlu0 %v2282, 93
      %v2355 = vpop.permute.xlu0 %2354
      %2356 = vrot.lane.b32.xlu0 %v2283, 93
      %v2357 = vpop.permute.xlu0 %2356
      %2358 = vrot.lane.b32.xlu0 %v2284, 93
      %v2359 = vpop.permute.xlu0 %2358
      %2360 = vrot.lane.b32.xlu0 %v2285, 93
      %v2361 = vpop.permute.xlu0 %2360
      %v2366 = vsel %vm2041, 0.0, %v2355
      %v2367 = vsel %vm2041, 0.0, %v2357
      %v2368 = vsel %vm2041, 0.0, %v2359
      %v2369 = vsel %vm2041, 0.0, %v2361
      %2370 = vrot.lane.b32.xlu0 %v2282, 91
      %v2371 = vpop.permute.xlu0 %2370
      %2372 = vrot.lane.b32.xlu0 %v2283, 91
      %v2373 = vpop.permute.xlu0 %2372
      %2374 = vrot.lane.b32.xlu0 %v2284, 91
      %v2375 = vpop.permute.xlu0 %2374
      %2376 = vrot.lane.b32.xlu0 %v2285, 91
      %v2377 = vpop.permute.xlu0 %2376
      %v2382 = vsel %vm2054, 0.0, %v2371
      %v2383 = vsel %vm2054, 0.0, %v2373
      %v2384 = vsel %vm2054, 0.0, %v2375
      %v2385 = vsel %vm2054, 0.0, %v2377
      %2386 = vrot.lane.b32.xlu0 %v2282, 100
      %v2387 = vpop.permute.xlu0 %2386
      %2388 = vrot.lane.b32.xlu0 %v2283, 100
      %v2389 = vpop.permute.xlu0 %2388
      %2390 = vrot.lane.b32.xlu0 %v2284, 100
      %v2391 = vpop.permute.xlu0 %2390
      %2392 = vrot.lane.b32.xlu0 %v2285, 100
      %v2393 = vpop.permute.xlu0 %2392
      %2398 = vrot.lane.b32.xlu0 %v2282, 96
      %v2399 = vpop.permute.xlu0 %2398
      %2400 = vrot.lane.b32.xlu0 %v2283, 96
      %v2401 = vpop.permute.xlu0 %2400
      %2402 = vrot.lane.b32.xlu0 %v2284, 96
      %v2403 = vpop.permute.xlu0 %2402
      %2404 = vrot.lane.b32.xlu0 %v2285, 96
      %v2405 = vpop.permute.xlu0 %2404
      %2410 = vrot.lane.b32.xlu0 %v2282, 92
      %v2411 = vpop.permute.xlu0 %2410
      %2412 = vrot.lane.b32.xlu0 %v2283, 92
      %v2413 = vpop.permute.xlu0 %2412
      %2414 = vrot.lane.b32.xlu0 %v2284, 92
      %v2415 = vpop.permute.xlu0 %2414
      %2416 = vrot.lane.b32.xlu0 %v2285, 92
      %v2417 = vpop.permute.xlu0 %2416
      %2423 = vset.pattern.permute.xlu0 0
      %2424 = vperm.xlu0 %2423, %v2246
      %v2425 = vpop.permute.xlu0 %2424
      %2428 = vset.pattern.permute.xlu0 0
      %2429 = vperm.xlu0 %2428, %v2247
      %v2430 = vpop.permute.xlu0 %2429
      %2433 = vset.pattern.permute.xlu0 0
      %2434 = vperm.xlu0 %2433, %v2248
      %v2435 = vpop.permute.xlu0 %2434
      %2438 = vset.pattern.permute.xlu0 0
      %2439 = vperm.xlu0 %2438, %v2249
      %v2440 = vpop.permute.xlu0 %2439
      %v2443 = vsel %vm982, %v2236, 0
      %v2446 = vsel %vm982, %v2239, 0
      %v2449 = vsel %vm982, %v2242, 0
      %v2452 = vsel %vm982, %v2245, 0
      %2454 = vmatprep.subr.mxu0 0.0
      %2455 = vmatpush1.msra.mxu0 %v2302
      %2456 = vmatprep.subr.mxu0 0.0
      %2457 = vmatpush1.msra.mxu0 %v2303
      %2458 = vmatprep.subr.mxu0 0.0
      %2459 = vmatpush1.msra.mxu0 %v2304
      %2460 = vmatprep.subr.mxu0 0.0
      %2461 = vmatpush1.msra.mxu0 %v2305
      %2462 = vmatprep.subr.mxu0 0.0
      %2463 = vmatpush1.msra.mxu0 %v2387
      %2464 = vmatprep.subr.mxu0 0.0
      %2465 = vmatpush1.msra.mxu0 %v2389
      %2466 = vmatprep.subr.mxu0 0.0
      %2467 = vmatpush1.msra.mxu0 %v2391
      %2468 = vmatprep.subr.mxu0 0.0
      %2469 = vmatpush1.msra.mxu0 %v2393
      %2470 = vmatprep.subr.mxu0 0.0
      %2471 = vmatpush1.msra.mxu0 %v2318
      %2472 = vmatprep.subr.mxu0 0.0
      %2473 = vmatpush1.msra.mxu0 %v2319
      %2474 = vmatprep.subr.mxu0 0.0
      %2475 = vmatpush1.msra.mxu0 %v2320
      %2476 = vmatprep.subr.mxu0 0.0
      %2477 = vmatpush1.msra.mxu0 %v2321
      %2478 = vmatprep.subr.mxu0 0.0
      %2479 = vmatpush1.msra.mxu0 %v2334
      %2480 = vmatprep.subr.mxu0 0.0
      %2481 = vmatpush1.msra.mxu0 %v2335
      %2482 = vmatprep.subr.mxu0 0.0
      %2483 = vmatpush1.msra.mxu0 %v2336
      %2484 = vmatprep.subr.mxu0 0.0
      %2485 = vmatpush1.msra.mxu0 %v2337
      %2486 = vmatprep.subr.mxu0 0.0
      %2487 = vmatpush1.msra.mxu0 %v2399
      %2488 = vmatprep.subr.mxu0 0.0
      %2489 = vmatpush1.msra.mxu0 %v2401
      %2490 = vmatprep.subr.mxu0 0.0
      %2491 = vmatpush1.msra.mxu0 %v2403
      %2492 = vmatprep.subr.mxu0 0.0
      %2493 = vmatpush1.msra.mxu0 %v2405
      %2494 = vmatprep.subr.mxu0 0.0
      %2495 = vmatpush1.msra.mxu0 %v2350
      %2496 = vmatprep.subr.mxu0 0.0
      %2497 = vmatpush1.msra.mxu0 %v2351
      %2498 = vmatprep.subr.mxu0 0.0
      %2499 = vmatpush1.msra.mxu0 %v2352
      %2500 = vmatprep.subr.mxu0 0.0
      %2501 = vmatpush1.msra.mxu0 %v2353
      %2502 = vmatprep.subr.mxu0 0.0
      %2503 = vmatpush1.msra.mxu0 %v2366
      %2504 = vmatprep.subr.mxu0 0.0
      %2505 = vmatpush1.msra.mxu0 %v2367
      %2506 = vmatprep.subr.mxu0 0.0
      %2507 = vmatpush1.msra.mxu0 %v2368
      %2508 = vmatprep.subr.mxu0 0.0
      %2509 = vmatpush1.msra.mxu0 %v2369
      %2510 = vmatprep.subr.mxu0 0.0
      %2511 = vmatpush1.msra.mxu0 %v2411
      %2512 = vmatprep.subr.mxu0 0.0
      %2513 = vmatpush1.msra.mxu0 %v2413
      %2514 = vmatprep.subr.mxu0 0.0
      %2515 = vmatpush1.msra.mxu0 %v2415
      %2516 = vmatprep.subr.mxu0 0.0
      %2517 = vmatpush1.msra.mxu0 %v2417
      %2518 = vmatprep.mubr.f32.mxu0 %v2235
      %2519 = vmatmul.mubr.f32.gmra.mrb[0].mxu0 %v2234
      %v2520 = vpop.f32.mrb[0].mxu0
      %v2521 = vadd.f32 %v2425, %v2520
      %v2522 = vpop.f32.mrb[0].mxu0
      %2523 = vmatprep.mubr.f32.mxu0 %v2238
      %2524 = vmatmul.mubr.f32.gmra.mrb[0].mxu0 %v2237
      %v2525 = vpop.f32.mrb[0].mxu0
      %v2526 = vadd.f32 %v2430, %v2525
      %v2527 = vpop.f32.mrb[0].mxu0
      %2528 = vmatprep.mubr.f32.mxu0 %v2241
      %2529 = vmatmul.mubr.f32.gmra.mrb[0].mxu0 %v2240
      %v2530 = vpop.f32.mrb[0].mxu0
      %v2531 = vadd.f32 %v2435, %v2530
      %v2532 = vpop.f32.mrb[0].mxu0
      %2533 = vmatprep.mubr.f32.mxu0 %v2244
      %2534 = vmatmul.mubr.f32.gmra.mrb[0].mxu0 %v2243
      %v2535 = vpop.f32.mrb[0].mxu0
      %v2536 = vadd.f32 %v2440, %v2535
      %v2537 = vpop.f32.mrb[0].mxu0
      %2538 = vdwg.mxu0
      %2539 = vmatprep.subr.mxu0 0.0
      %2540 = vmatpush1.msra.mxu0 %v2382
      %2541 = vmatprep.subr.mxu0 0.0
      %2542 = vmatpush1.msra.mxu0 %v2383
      %2543 = vmatprep.subr.mxu0 0.0
      %2544 = vmatpush1.msra.mxu0 %v2384
      %2545 = vmatprep.subr.mxu0 0.0
      %2546 = vmatpush1.msra.mxu0 %v2385
      %2547 = vmatprep.subr.mxu0 0.0
      %2548 = vmatpush1.msra.mxu0 0.0
      %2549 = vmatprep.subr.mxu0 0.0
      %2550 = vmatpush1.msra.mxu0 0.0
      %2551 = vmatprep.subr.mxu0 0.0
      %2552 = vmatpush1.msra.mxu0 0.0
      %2553 = vmatprep.subr.mxu0 0.0
      %2554 = vmatpush1.msra.mxu0 0.0
      %2555 = vmatprep.subr.mxu0 0.0
      %2556 = vmatpush1.msra.mxu0 0.0
      %2557 = vmatprep.subr.mxu0 0.0
      %2558 = vmatpush1.msra.mxu0 0.0
      %2559 = vmatprep.subr.mxu0 0.0
      %2560 = vmatpush1.msra.mxu0 0.0
      %2561 = vmatprep.subr.mxu0 0.0
      %2562 = vmatpush1.msra.mxu0 0.0
      %2563 = vmatprep.subr.mxu0 0.0
      %2564 = vmatpush1.msra.mxu0 0.0
      %2565 = vmatprep.subr.mxu0 0.0
      %2566 = vmatpush1.msra.mxu0 0.0
      %2567 = vmatprep.subr.mxu0 0.0
      %2568 = vmatpush1.msra.mxu0 0.0
      %2569 = vmatprep.subr.mxu0 0.0
      %2570 = vmatpush1.msra.mxu0 0.0
      %2571 = vmatprep.subr.mxu0 0.0
      %2572 = vmatpush1.msra.mxu0 0.0
      %2573 = vmatprep.subr.mxu0 0.0
      %2574 = vmatpush1.msra.mxu0 0.0
      %2575 = vmatprep.subr.mxu0 0.0
      %2576 = vmatpush1.msra.mxu0 0.0
      %2577 = vmatprep.subr.mxu0 0.0
      %2578 = vmatpush1.msra.mxu0 0.0
      %2579 = vmatprep.subr.mxu0 0.0
      %2580 = vmatpush1.msra.mxu0 0.0
      %2581 = vmatprep.subr.mxu0 0.0
      %2582 = vmatpush1.msra.mxu0 0.0
      %2583 = vmatprep.subr.mxu0 0.0
      %2584 = vmatpush1.msra.mxu0 0.0
      %2585 = vmatprep.subr.mxu0 0.0
      %2586 = vmatpush1.msra.mxu0 0.0
      %2587 = vmatprep.subr.mxu0 0.0
      %2588 = vmatpush1.msra.mxu0 0.0
      %2589 = vmatprep.subr.mxu0 0.0
      %2590 = vmatpush1.msra.mxu0 0.0
      %2591 = vmatprep.subr.mxu0 0.0
      %2592 = vmatpush1.msra.mxu0 0.0
      %2593 = vmatprep.subr.mxu0 0.0
      %2594 = vmatpush1.msra.mxu0 0.0
      %2595 = vmatprep.subr.mxu0 0.0
      %2596 = vmatpush1.msra.mxu0 0.0
      %2597 = vmatprep.subr.mxu0 0.0
      %2598 = vmatpush1.msra.mxu0 0.0
      %2599 = vmatprep.subr.mxu0 0.0
      %2600 = vmatpush1.msra.mxu0 0.0
      %2601 = vmatprep.subr.mxu0 0.0
      %2602 = vmatpush1.msra.mxu0 0.0
      %2603 = vmatprep.mubr.f32.mxu0 0.0
      %2604 = vmatmul.mubr.f32.gmra.mrb[0].mxu0 %v2443
      %v2605 = vpop.f32.mrb[0].mxu0
      %v2606 = vadd.f32 %v2521, %v2605
      %v2607 = vpop.f32.mrb[0].mxu0
      %2608 = vmatprep.mubr.f32.mxu0 0.0
      %2609 = vmatmul.mubr.f32.gmra.mrb[0].mxu0 %v2446
      %v2610 = vpop.f32.mrb[0].mxu0
      %v2611 = vadd.f32 %v2526, %v2610
      %v2612 = vpop.f32.mrb[0].mxu0
      %2613 = vmatprep.mubr.f32.mxu0 0.0
      %2614 = vmatmul.mubr.f32.gmra.mrb[0].mxu0 %v2449
      %v2615 = vpop.f32.mrb[0].mxu0
      %v2616 = vadd.f32 %v2531, %v2615
      %v2617 = vpop.f32.mrb[0].mxu0
      %2618 = vmatprep.mubr.f32.mxu0 0.0
      %2619 = vmatmul.mubr.f32.gmra.mrb[0].mxu0 %v2452
      %v2620 = vpop.f32.mrb[0].mxu0
      %v2621 = vadd.f32 %v2536, %v2620
      %v2622 = vpop.f32.mrb[0].mxu0
      %2623 = vdwg.mxu0
      %v2624 = vmax.f32 %v2606, 0.0
      %v2625 = vmax.f32 %v2611, 0.0
      %v2626 = vmax.f32 %v2616, 0.0
      %v2627 = vmax.f32 %v2621, 0.0
      %2628 = vst.msk [vmem:[%s962] sm:$0xff] %vm1812, %v2624
      %2629 = vst.msk [vmem:[%s962 + $0x8] sm:$0xff] %vm1812, %v2625
      %2630 = vst.msk [vmem:[%s962 + $0x10] sm:$0xff] %vm1812, %v2626
      %2631 = vst.msk [vmem:[%s962 + $0x18] sm:$0xff] %vm1812, %v2627
      %v2632 = vld [vmem:[%s51] sm:$0xff]
      %v2633 = vld [vmem:[%s51 + $0x8] sm:$0xff]
      %v2635 = vsel %vm1812, %v2624, 0
      %v2638 = vsel %vm1812, %v2625, 0
      %v2641 = vsel %vm1812, %v2626, 0
      %v2644 = vsel %vm1812, %v2627, 0
      %2646 = vmatprep.subr.mxu0 0.0
      %2647 = vmatpush1.msra.mxu0 %v2632
      %2648 = vmatprep.subr.mxu0 0.0
      %2649 = vmatpush1.msra.mxu0 %v2633
      %2650 = vmatprep.subr.mxu0 0.0
      %2651 = vmatpush1.msra.mxu0 0.0
      %2652 = vmatprep.subr.mxu0 0.0
      %2653 = vmatpush1.msra.mxu0 0.0
      %2654 = vmatprep.subr.mxu0 0.0
      %2655 = vmatpush1.msra.mxu0 0.0
      %2656 = vmatprep.subr.mxu0 0.0
      %2657 = vmatpush1.msra.mxu0 0.0
      %2658 = vmatprep.subr.mxu0 0.0
      %2659 = vmatpush1.msra.mxu0 0.0
      %2660 = vmatprep.subr.mxu0 0.0
      %2661 = vmatpush1.msra.mxu0 0.0
      %2662 = vmatprep.subr.mxu0 0.0
      %2663 = vmatpush1.msra.mxu0 0.0
      %2664 = vmatprep.subr.mxu0 0.0
      %2665 = vmatpush1.msra.mxu0 0.0
      %2666 = vmatprep.subr.mxu0 0.0
      %2667 = vmatpush1.msra.mxu0 0.0
      %2668 = vmatprep.subr.mxu0 0.0
      %2669 = vmatpush1.msra.mxu0 0.0
      %2670 = vmatprep.subr.mxu0 0.0
      %2671 = vmatpush1.msra.mxu0 0.0
      %2672 = vmatprep.subr.mxu0 0.0
      %2673 = vmatpush1.msra.mxu0 0.0
      %2674 = vmatprep.subr.mxu0 0.0
      %2675 = vmatpush1.msra.mxu0 0.0
      %2676 = vmatprep.subr.mxu0 0.0
      %2677 = vmatpush1.msra.mxu0 0.0
      %2678 = vmatprep.subr.mxu0 0.0
      %2679 = vmatpush1.msra.mxu0 0.0
      %2680 = vmatprep.subr.mxu0 0.0
      %2681 = vmatpush1.msra.mxu0 0.0
      %2682 = vmatprep.subr.mxu0 0.0
      %2683 = vmatpush1.msra.mxu0 0.0
      %2684 = vmatprep.subr.mxu0 0.0
      %2685 = vmatpush1.msra.mxu0 0.0
      %2686 = vmatprep.subr.mxu0 0.0
      %2687 = vmatpush1.msra.mxu0 0.0
      %2688 = vmatprep.subr.mxu0 0.0
      %2689 = vmatpush1.msra.mxu0 0.0
      %2690 = vmatprep.subr.mxu0 0.0
      %2691 = vmatpush1.msra.mxu0 0.0
      %2692 = vmatprep.subr.mxu0 0.0
      %2693 = vmatpush1.msra.mxu0 0.0
      %2694 = vmatprep.subr.mxu0 0.0
      %2695 = vmatpush1.msra.mxu0 0.0
      %2696 = vmatprep.subr.mxu0 0.0
      %2697 = vmatpush1.msra.mxu0 0.0
      %2698 = vmatprep.subr.mxu0 0.0
      %2699 = vmatpush1.msra.mxu0 0.0
      %2700 = vmatprep.subr.mxu0 0.0
      %2701 = vmatpush1.msra.mxu0 0.0
      %2702 = vmatprep.subr.mxu0 0.0
      %2703 = vmatpush1.msra.mxu0 0.0
      %2704 = vmatprep.subr.mxu0 0.0
      %2705 = vmatpush1.msra.mxu0 0.0
      %2706 = vmatprep.subr.mxu0 0.0
      %2707 = vmatpush1.msra.mxu0 0.0
      %2708 = vmatprep.subr.mxu0 0.0
      %2709 = vmatpush1.msra.mxu0 0.0
      %2710 = vmatprep.mubr.f32.mxu0 0.0
      %2711 = vmatmul.mubr.f32.gmra.mrb[0].mxu0 %v2635
      %v2712 = vpop.f32.mrb[0].mxu0
      %v2713 = vadd.f32 0.0, %v2712
      %v2714 = vpop.f32.mrb[0].mxu0
      %2715 = vmatprep.mubr.f32.mxu0 0.0
      %2716 = vmatmul.mubr.f32.gmra.mrb[0].mxu0 %v2638
      %v2717 = vpop.f32.mrb[0].mxu0
      %v2718 = vadd.f32 0.0, %v2717
      %v2719 = vpop.f32.mrb[0].mxu0
      %2720 = vmatprep.mubr.f32.mxu0 0.0
      %2721 = vmatmul.mubr.f32.gmra.mrb[0].mxu0 %v2641
      %v2722 = vpop.f32.mrb[0].mxu0
      %v2723 = vadd.f32 0.0, %v2722
      %v2724 = vpop.f32.mrb[0].mxu0
      %2725 = vmatprep.mubr.f32.mxu0 0.0
      %2726 = vmatmul.mubr.f32.gmra.mrb[0].mxu0 %v2644
      %v2727 = vpop.f32.mrb[0].mxu0
      %v2728 = vadd.f32 0.0, %v2727
      %v2729 = vpop.f32.mrb[0].mxu0
      %2730 = vdwg.mxu0
      %v2731 = vld [vmem:[%s27] sm:$0xff]
      %v2732 = vld [vmem:[%s27 + $0x8] sm:$0xff]
      %v2733 = vld [vmem:[%s27 + $0x10] sm:$0xff]
      %v2734 = vld [vmem:[%s27 + $0x18] sm:$0xff]
      %v2735 = vld [vmem:[%s27 + $0x20] sm:$0xff]
      %v2736 = vld [vmem:[%s27 + $0x28] sm:$0xff]
      %v2737 = vld [vmem:[%s27 + $0x30] sm:$0xff]
      %v2738 = vld [vmem:[%s27 + $0x38] sm:$0xff]
      %v2739 = vld [vmem:[%s29] sm:$0xff]
      %v2740 = vld [vmem:[%s29 + $0x8] sm:$0xff]
      %2741 = vst [vmem:[#allocation2] sm:$0xff] 0.0
      %2742 = vst [vmem:[#allocation2 + $0x8] sm:$0xff] 0.0
      %2743 = vst.msk [vmem:[#allocation2 + $0x10] sm:$0xff] %vm974, 0.0
      %2744 = vst [vmem:[#allocation2 + $0x18] sm:$0xff] 0.0
      %2745 = vst [vmem:[#allocation2 + $0x20] sm:$0xff] 0.0
      %2746 = vst.msk [vmem:[#allocation2 + $0x28] sm:$0xff] %vm974, 0.0
      %2747 = vst [vmem:[#allocation2 + $0x30] sm:$0xff] 0.0
      %2748 = vst [vmem:[#allocation2 + $0x38] sm:$0xff] 0.0
      %2749 = vst.msk [vmem:[#allocation2 + $0x40] sm:$0xff] %vm974, 0.0
      %2750 = vst [vmem:[#allocation2 + $0x48] sm:$0xff] 0.0
      %2751 = vst [vmem:[#allocation2 + $0x50] sm:$0xff] 0.0
      %2752 = vst.msk [vmem:[#allocation2 + $0x58] sm:$0xff] %vm974, 0.0
      %2753 = vst [vmem:[#allocation2 + $0x60] sm:$0xff] 0.0
      %2754 = vst [vmem:[#allocation2 + $0x68] sm:$0xff] 0.0
      %2755 = vst.msk [vmem:[#allocation2 + $0x70] sm:$0xff] %vm974, 0.0
      %2756 = vst [vmem:[#allocation2 + $0x78] sm:$0xff] 0.0
      %2757 = vst [vmem:[#allocation2 + $0x80] sm:$0xff] 0.0
      %2758 = vst.msk [vmem:[#allocation2 + $0x88] sm:$0xff] %vm974, 0.0
      %2763 = vrot.lane.b32.xlu0 %v2713, 32
      %v2764 = vpop.permute.xlu0 %2763
      %2765 = vrot.lane.b32.xlu0 %v2718, 32
      %v2766 = vpop.permute.xlu0 %2765
      %2767 = vrot.lane.b32.xlu0 %v2723, 32
      %v2768 = vpop.permute.xlu0 %2767
      %2769 = vrot.lane.b32.xlu0 %v2728, 32
      %v2770 = vpop.permute.xlu0 %2769
      %2771 = vrot.lane.b32.xlu0 %v1894, 32
      %v2772 = vpop.permute.xlu0 %2771
      %2773 = vrot.lane.b32.xlu0 %v1895, 32
      %v2774 = vpop.permute.xlu0 %2773
      %2781 = vst.msk [vmem:[#allocation2] sm:$0xff] %vm1573, %v2764
      %2782 = vst.msk [vmem:[#allocation2 + $0x18] sm:$0xff] %vm1573, %v2766
      %2783 = vst.msk [vmem:[#allocation2 + $0x30] sm:$0xff] %vm1573, %v2768
      %2784 = vst.msk [vmem:[#allocation2 + $0x48] sm:$0xff] %vm1573, %v2770
      %2785 = vst.msk [vmem:[#allocation2 + $0x60] sm:$0xff] %vm1573, %v2772
      %2786 = vst.msk [vmem:[#allocation2 + $0x78] sm:$0xff] %vm1573, %v2774
      %v2787 = vld [vmem:[#allocation2] sm:$0xff]
      %v2788 = vld [vmem:[#allocation2 + $0x18] sm:$0xff]
      %v2789 = vld [vmem:[#allocation2 + $0x30] sm:$0xff]
      %v2790 = vld [vmem:[#allocation2 + $0x48] sm:$0xff]
      %v2791 = vld [vmem:[#allocation2 + $0x60] sm:$0xff]
      %v2792 = vld [vmem:[#allocation2 + $0x78] sm:$0xff]
      %2799 = vrot.lane.b32.xlu0 %v2787, 105
      %v2800 = vpop.permute.xlu0 %2799
      %2801 = vrot.lane.b32.xlu0 %v2788, 105
      %v2802 = vpop.permute.xlu0 %2801
      %2803 = vrot.lane.b32.xlu0 %v2789, 105
      %v2804 = vpop.permute.xlu0 %2803
      %2805 = vrot.lane.b32.xlu0 %v2790, 105
      %v2806 = vpop.permute.xlu0 %2805
      %2807 = vrot.lane.b32.xlu0 %v2791, 105
      %v2808 = vpop.permute.xlu0 %2807
      %2809 = vrot.lane.b32.xlu0 %v2792, 105
      %v2810 = vpop.permute.xlu0 %2809
      %v2817 = vsel %vm1579, 0.0, %v2800
      %v2818 = vsel %vm1579, 0.0, %v2802
      %v2819 = vsel %vm1579, 0.0, %v2804
      %v2820 = vsel %vm1579, 0.0, %v2806
      %v2821 = vsel %vm1579, 0.0, %v2808
      %v2822 = vsel %vm1579, 0.0, %v2810
      %2823 = vrot.lane.b32.xlu0 %v2787, 103
      %v2824 = vpop.permute.xlu0 %2823
      %2825 = vrot.lane.b32.xlu0 %v2788, 103
      %v2826 = vpop.permute.xlu0 %2825
      %2827 = vrot.lane.b32.xlu0 %v2789, 103
      %v2828 = vpop.permute.xlu0 %2827
      %2829 = vrot.lane.b32.xlu0 %v2790, 103
      %v2830 = vpop.permute.xlu0 %2829
      %2831 = vrot.lane.b32.xlu0 %v2791, 103
      %v2832 = vpop.permute.xlu0 %2831
      %2833 = vrot.lane.b32.xlu0 %v2792, 103
      %v2834 = vpop.permute.xlu0 %2833
      %v2841 = vsel %vm1587, 0.0, %v2824
      %v2842 = vsel %vm1587, 0.0, %v2826
      %v2843 = vsel %vm1587, 0.0, %v2828
      %v2844 = vsel %vm1587, 0.0, %v2830
      %v2845 = vsel %vm1587, 0.0, %v2832
      %v2846 = vsel %vm1587, 0.0, %v2834
      %2847 = vrot.lane.b32.xlu0 %v2787, 97
      %v2848 = vpop.permute.xlu0 %2847
      %2849 = vrot.lane.b32.xlu0 %v2788, 97
      %v2850 = vpop.permute.xlu0 %2849
      %2851 = vrot.lane.b32.xlu0 %v2789, 97
      %v2852 = vpop.permute.xlu0 %2851
      %2853 = vrot.lane.b32.xlu0 %v2790, 97
      %v2854 = vpop.permute.xlu0 %2853
      %2855 = vrot.lane.b32.xlu0 %v2791, 97
      %v2856 = vpop.permute.xlu0 %2855
      %2857 = vrot.lane.b32.xlu0 %v2792, 97
      %v2858 = vpop.permute.xlu0 %2857
      %v2865 = vsel %vm1579, 0.0, %v2848
      %v2866 = vsel %vm1579, 0.0, %v2850
      %v2867 = vsel %vm1579, 0.0, %v2852
      %v2868 = vsel %vm1579, 0.0, %v2854
      %v2869 = vsel %vm1579, 0.0, %v2856
      %v2870 = vsel %vm1579, 0.0, %v2858
      %2871 = vrot.lane.b32.xlu0 %v2787, 95
      %v2872 = vpop.permute.xlu0 %2871
      %2873 = vrot.lane.b32.xlu0 %v2788, 95
      %v2874 = vpop.permute.xlu0 %2873
      %2875 = vrot.lane.b32.xlu0 %v2789, 95
      %v2876 = vpop.permute.xlu0 %2875
      %2877 = vrot.lane.b32.xlu0 %v2790, 95
      %v2878 = vpop.permute.xlu0 %2877
      %2879 = vrot.lane.b32.xlu0 %v2791, 95
      %v2880 = vpop.permute.xlu0 %2879
      %2881 = vrot.lane.b32.xlu0 %v2792, 95
      %v2882 = vpop.permute.xlu0 %2881
      %v2889 = vsel %vm1587, 0.0, %v2872
      %v2890 = vsel %vm1587, 0.0, %v2874
      %v2891 = vsel %vm1587, 0.0, %v2876
      %v2892 = vsel %vm1587, 0.0, %v2878
      %v2893 = vsel %vm1587, 0.0, %v2880
      %v2894 = vsel %vm1587, 0.0, %v2882
      %2895 = vrot.lane.b32.xlu0 %v2787, 89
      %v2896 = vpop.permute.xlu0 %2895
      %2897 = vrot.lane.b32.xlu0 %v2788, 89
      %v2898 = vpop.permute.xlu0 %2897
      %2899 = vrot.lane.b32.xlu0 %v2789, 89
      %v2900 = vpop.permute.xlu0 %2899
      %2901 = vrot.lane.b32.xlu0 %v2790, 89
      %v2902 = vpop.permute.xlu0 %2901
      %2903 = vrot.lane.b32.xlu0 %v2791, 89
      %v2904 = vpop.permute.xlu0 %2903
      %2905 = vrot.lane.b32.xlu0 %v2792, 89
      %v2906 = vpop.permute.xlu0 %2905
      %v2913 = vsel %vm1579, 0.0, %v2896
      %v2914 = vsel %vm1579, 0.0, %v2898
      %v2915 = vsel %vm1579, 0.0, %v2900
      %v2916 = vsel %vm1579, 0.0, %v2902
      %v2917 = vsel %vm1579, 0.0, %v2904
      %v2918 = vsel %vm1579, 0.0, %v2906
      %2919 = vrot.lane.b32.xlu0 %v2787, 87
      %v2920 = vpop.permute.xlu0 %2919
      %2921 = vrot.lane.b32.xlu0 %v2788, 87
      %v2922 = vpop.permute.xlu0 %2921
      %2923 = vrot.lane.b32.xlu0 %v2789, 87
      %v2924 = vpop.permute.xlu0 %2923
      %2925 = vrot.lane.b32.xlu0 %v2790, 87
      %v2926 = vpop.permute.xlu0 %2925
      %2927 = vrot.lane.b32.xlu0 %v2791, 87
      %v2928 = vpop.permute.xlu0 %2927
      %2929 = vrot.lane.b32.xlu0 %v2792, 87
      %v2930 = vpop.permute.xlu0 %2929
      %v2937 = vsel %vm1587, 0.0, %v2920
      %v2938 = vsel %vm1587, 0.0, %v2922
      %v2939 = vsel %vm1587, 0.0, %v2924
      %v2940 = vsel %vm1587, 0.0, %v2926
      %v2941 = vsel %vm1587, 0.0, %v2928
      %v2942 = vsel %vm1587, 0.0, %v2930
      %2943 = vrot.lane.b32.xlu0 %v2787, 104
      %v2944 = vpop.permute.xlu0 %2943
      %2945 = vrot.lane.b32.xlu0 %v2788, 104
      %v2946 = vpop.permute.xlu0 %2945
      %2947 = vrot.lane.b32.xlu0 %v2789, 104
      %v2948 = vpop.permute.xlu0 %2947
      %2949 = vrot.lane.b32.xlu0 %v2790, 104
      %v2950 = vpop.permute.xlu0 %2949
      %2951 = vrot.lane.b32.xlu0 %v2791, 104
      %v2952 = vpop.permute.xlu0 %2951
      %2953 = vrot.lane.b32.xlu0 %v2792, 104
      %v2954 = vpop.permute.xlu0 %2953
      %2961 = vrot.lane.b32.xlu0 %v2787, 96
      %v2962 = vpop.permute.xlu0 %2961
      %2963 = vrot.lane.b32.xlu0 %v2788, 96
      %v2964 = vpop.permute.xlu0 %2963
      %2965 = vrot.lane.b32.xlu0 %v2789, 96
      %v2966 = vpop.permute.xlu0 %2965
      %2967 = vrot.lane.b32.xlu0 %v2790, 96
      %v2968 = vpop.permute.xlu0 %2967
      %2969 = vrot.lane.b32.xlu0 %v2791, 96
      %v2970 = vpop.permute.xlu0 %2969
      %2971 = vrot.lane.b32.xlu0 %v2792, 96
      %v2972 = vpop.permute.xlu0 %2971
      %2979 = vrot.lane.b32.xlu0 %v2787, 88
      %v2980 = vpop.permute.xlu0 %2979
      %2981 = vrot.lane.b32.xlu0 %v2788, 88
      %v2982 = vpop.permute.xlu0 %2981
      %2983 = vrot.lane.b32.xlu0 %v2789, 88
      %v2984 = vpop.permute.xlu0 %2983
      %2985 = vrot.lane.b32.xlu0 %v2790, 88
      %v2986 = vpop.permute.xlu0 %2985
      %2987 = vrot.lane.b32.xlu0 %v2791, 88
      %v2988 = vpop.permute.xlu0 %2987
      %2989 = vrot.lane.b32.xlu0 %v2792, 88
      %v2990 = vpop.permute.xlu0 %2989
      %2998 = vset.pattern.permute.xlu0 0
      %2999 = vperm.xlu0 %2998, %v2739
      %v3000 = vpop.permute.xlu0 %2999
      %3003 = vset.pattern.permute.xlu0 0
      %3004 = vperm.xlu0 %3003, %v2740
      %v3005 = vpop.permute.xlu0 %3004
      %vm3007 = vcmask 392192
      %v3009 = vsel %vm3007, %v2734, 0
      %v3012 = vsel %vm3007, %v2738, 0
      %3014 = vmatprep.subr.mxu0 0.0
      %3015 = vmatpush1.msra.mxu0 %v2817
      %3016 = vmatprep.subr.mxu0 0.0
      %3017 = vmatpush1.msra.mxu0 %v2818
      %3018 = vmatprep.subr.mxu0 0.0
      %3019 = vmatpush1.msra.mxu0 %v2819
      %3020 = vmatprep.subr.mxu0 0.0
      %3021 = vmatpush1.msra.mxu0 %v2820
      %3022 = vmatprep.subr.mxu0 0.0
      %3023 = vmatpush1.msra.mxu0 %v2821
      %3024 = vmatprep.subr.mxu0 0.0
      %3025 = vmatpush1.msra.mxu0 %v2822
      %3026 = vmatprep.subr.mxu0 0.0
      %3027 = vmatpush1.msra.mxu0 %v2944
      %3028 = vmatprep.subr.mxu0 0.0
      %3029 = vmatpush1.msra.mxu0 %v2946
      %3030 = vmatprep.subr.mxu0 0.0
      %3031 = vmatpush1.msra.mxu0 %v2948
      %3032 = vmatprep.subr.mxu0 0.0
      %3033 = vmatpush1.msra.mxu0 %v2950
      %3034 = vmatprep.subr.mxu0 0.0
      %3035 = vmatpush1.msra.mxu0 %v2952
      %3036 = vmatprep.subr.mxu0 0.0
      %3037 = vmatpush1.msra.mxu0 %v2954
      %3038 = vmatprep.subr.mxu0 0.0
      %3039 = vmatpush1.msra.mxu0 %v2841
      %3040 = vmatprep.subr.mxu0 0.0
      %3041 = vmatpush1.msra.mxu0 %v2842
      %3042 = vmatprep.subr.mxu0 0.0
      %3043 = vmatpush1.msra.mxu0 %v2843
      %3044 = vmatprep.subr.mxu0 0.0
      %3045 = vmatpush1.msra.mxu0 %v2844
      %3046 = vmatprep.subr.mxu0 0.0
      %3047 = vmatpush1.msra.mxu0 %v2845
      %3048 = vmatprep.subr.mxu0 0.0
      %3049 = vmatpush1.msra.mxu0 %v2846
      %3050 = vmatprep.subr.mxu0 0.0
      %3051 = vmatpush1.msra.mxu0 %v2865
      %3052 = vmatprep.subr.mxu0 0.0
      %3053 = vmatpush1.msra.mxu0 %v2866
      %3054 = vmatprep.subr.mxu0 0.0
      %3055 = vmatpush1.msra.mxu0 %v2867
      %3056 = vmatprep.subr.mxu0 0.0
      %3057 = vmatpush1.msra.mxu0 %v2868
      %3058 = vmatprep.subr.mxu0 0.0
      %3059 = vmatpush1.msra.mxu0 %v2869
      %3060 = vmatprep.subr.mxu0 0.0
      %3061 = vmatpush1.msra.mxu0 %v2870
      %3062 = vmatprep.subr.mxu0 0.0
      %3063 = vmatpush1.msra.mxu0 %v2962
      %3064 = vmatprep.subr.mxu0 0.0
      %3065 = vmatpush1.msra.mxu0 %v2964
      %3066 = vmatprep.subr.mxu0 0.0
      %3067 = vmatpush1.msra.mxu0 %v2966
      %3068 = vmatprep.subr.mxu0 0.0
      %3069 = vmatpush1.msra.mxu0 %v2968
      %3070 = vmatprep.subr.mxu0 0.0
      %3071 = vmatpush1.msra.mxu0 %v2970
      %3072 = vmatprep.subr.mxu0 0.0
      %3073 = vmatpush1.msra.mxu0 %v2972
      %3074 = vmatprep.subr.mxu0 0.0
      %3075 = vmatpush1.msra.mxu0 %v2889
      %3076 = vmatprep.subr.mxu0 0.0
      %3077 = vmatpush1.msra.mxu0 %v2890
      %3078 = vmatprep.mubr.f32.mxu0 %v2732
      %3079 = vmatmul.mubr.f32.gmra.mrb[0].mxu0 %v2731
      %v3080 = vpop.f32.mrb[0].mxu0
      %v3081 = vadd.f32 %v3000, %v3080
      %v3082 = vpop.f32.mrb[0].mxu0
      %3083 = vmatprep.mubr.f32.mxu0 %v2736
      %3084 = vmatmul.mubr.f32.gmra.mrb[0].mxu0 %v2735
      %v3085 = vpop.f32.mrb[0].mxu0
      %v3086 = vadd.f32 %v3005, %v3085
      %v3087 = vpop.f32.mrb[0].mxu0
      %3088 = vdwg.mxu0
      %3089 = vmatprep.subr.mxu0 0.0
      %3090 = vmatpush1.msra.mxu0 %v2891
      %3091 = vmatprep.subr.mxu0 0.0
      %3092 = vmatpush1.msra.mxu0 %v2892
      %3093 = vmatprep.subr.mxu0 0.0
      %3094 = vmatpush1.msra.mxu0 %v2893
      %3095 = vmatprep.subr.mxu0 0.0
      %3096 = vmatpush1.msra.mxu0 %v2894
      %3097 = vmatprep.subr.mxu0 0.0
      %3098 = vmatpush1.msra.mxu0 %v2913
      %3099 = vmatprep.subr.mxu0 0.0
      %3100 = vmatpush1.msra.mxu0 %v2914
      %3101 = vmatprep.subr.mxu0 0.0
      %3102 = vmatpush1.msra.mxu0 %v2915
      %3103 = vmatprep.subr.mxu0 0.0
      %3104 = vmatpush1.msra.mxu0 %v2916
      %3105 = vmatprep.subr.mxu0 0.0
      %3106 = vmatpush1.msra.mxu0 %v2917
      %3107 = vmatprep.subr.mxu0 0.0
      %3108 = vmatpush1.msra.mxu0 %v2918
      %3109 = vmatprep.subr.mxu0 0.0
      %3110 = vmatpush1.msra.mxu0 %v2980
      %3111 = vmatprep.subr.mxu0 0.0
      %3112 = vmatpush1.msra.mxu0 %v2982
      %3113 = vmatprep.subr.mxu0 0.0
      %3114 = vmatpush1.msra.mxu0 %v2984
      %3115 = vmatprep.subr.mxu0 0.0
      %3116 = vmatpush1.msra.mxu0 %v2986
      %3117 = vmatprep.subr.mxu0 0.0
      %3118 = vmatpush1.msra.mxu0 %v2988
      %3119 = vmatprep.subr.mxu0 0.0
      %3120 = vmatpush1.msra.mxu0 %v2990
      %3121 = vmatprep.subr.mxu0 0.0
      %3122 = vmatpush1.msra.mxu0 %v2937
      %3123 = vmatprep.subr.mxu0 0.0
      %3124 = vmatpush1.msra.mxu0 %v2938
      %3125 = vmatprep.subr.mxu0 0.0
      %3126 = vmatpush1.msra.mxu0 %v2939
      %3127 = vmatprep.subr.mxu0 0.0
      %3128 = vmatpush1.msra.mxu0 %v2940
      %3129 = vmatprep.subr.mxu0 0.0
      %3130 = vmatpush1.msra.mxu0 %v2941
      %3131 = vmatprep.subr.mxu0 0.0
      %3132 = vmatpush1.msra.mxu0 %v2942
      %3133 = vmatprep.subr.mxu0 0.0
      %3134 = vmatpush1.msra.mxu0 0.0
      %3135 = vmatprep.subr.mxu0 0.0
      %3136 = vmatpush1.msra.mxu0 0.0
      %3137 = vmatprep.subr.mxu0 0.0
      %3138 = vmatpush1.msra.mxu0 0.0
      %3139 = vmatprep.subr.mxu0 0.0
      %3140 = vmatpush1.msra.mxu0 0.0
      %3141 = vmatprep.subr.mxu0 0.0
      %3142 = vmatpush1.msra.mxu0 0.0
      %3143 = vmatprep.subr.mxu0 0.0
      %3144 = vmatpush1.msra.mxu0 0.0
      %3145 = vmatprep.subr.mxu0 0.0
      %3146 = vmatpush1.msra.mxu0 0.0
      %3147 = vmatprep.subr.mxu0 0.0
      %3148 = vmatpush1.msra.mxu0 0.0
      %3149 = vmatprep.subr.mxu0 0.0
      %3150 = vmatpush1.msra.mxu0 0.0
      %3151 = vmatprep.subr.mxu0 0.0
      %3152 = vmatpush1.msra.mxu0 0.0
      %3153 = vmatprep.mubr.f32.mxu0 %v3009
      %3154 = vmatmul.mubr.f32.gmra.mrb[0].mxu0 %v2733
      %v3155 = vpop.f32.mrb[0].mxu0
      %v3156 = vadd.f32 %v3081, %v3155
      %v3157 = vpop.f32.mrb[0].mxu0
      %3158 = vmatprep.mubr.f32.mxu0 %v3012
      %3159 = vmatmul.mubr.f32.gmra.mrb[0].mxu0 %v2737
      %v3160 = vpop.f32.mrb[0].mxu0
      %v3161 = vadd.f32 %v3086, %v3160
      %v3162 = vpop.f32.mrb[0].mxu0
      %3163 = vdwg.mxu0
      %v3164 = vmax.f32 %v3156, 0.0
      %v3165 = vmax.f32 %v3161, 0.0
      %v3166 = vld [vmem:[%s31] sm:$0xff]
      %v3167 = vld [vmem:[%s31 + $0x8] sm:$0xff]
      %v3168 = vld [vmem:[%s31 + $0x10] sm:$0xff]
      %v3169 = vld [vmem:[%s31 + $0x18] sm:$0xff]
      %v3170 = vld [vmem:[%s33] sm:$0xff]
      %v3171 = vld [vmem:[%s33 + $0x8] sm:$0xff]
      %3172 = vst [vmem:[#allocation2] sm:$0xff] 0.0
      %3173 = vst [vmem:[#allocation2 + $0x8] sm:$0xff] 0.0
      %3174 = vst.msk [vmem:[#allocation2 + $0x10] sm:$0xff] %vm974, 0.0
      %3175 = vst [vmem:[#allocation2 + $0x18] sm:$0xff] 0.0
      %3176 = vst [vmem:[#allocation2 + $0x20] sm:$0xff] 0.0
      %3177 = vst.msk [vmem:[#allocation2 + $0x28] sm:$0xff] %vm974, 0.0
      %3180 = vrot.lane.b32.xlu0 %v3164, 32
      %v3181 = vpop.permute.xlu0 %3180
      %3182 = vrot.lane.b32.xlu0 %v3165, 32
      %v3183 = vpop.permute.xlu0 %3182
      %3186 = vst.msk [vmem:[#allocation2] sm:$0xff] %vm1573, %v3181
      %3187 = vst.msk [vmem:[#allocation2 + $0x18] sm:$0xff] %vm1573, %v3183
      %v3188 = vld [vmem:[#allocation2] sm:$0xff]
      %v3189 = vld [vmem:[#allocation2 + $0x18] sm:$0xff]
      %3192 = vrot.lane.b32.xlu0 %v3188, 105
      %v3193 = vpop.permute.xlu0 %3192
      %3194 = vrot.lane.b32.xlu0 %v3189, 105
      %v3195 = vpop.permute.xlu0 %3194
      %v3198 = vsel %vm1579, 0.0, %v3193
      %v3199 = vsel %vm1579, 0.0, %v3195
      %3200 = vrot.lane.b32.xlu0 %v3188, 103
      %v3201 = vpop.permute.xlu0 %3200
      %3202 = vrot.lane.b32.xlu0 %v3189, 103
      %v3203 = vpop.permute.xlu0 %3202
      %v3206 = vsel %vm1587, 0.0, %v3201
      %v3207 = vsel %vm1587, 0.0, %v3203
      %3208 = vrot.lane.b32.xlu0 %v3188, 97
      %v3209 = vpop.permute.xlu0 %3208
      %3210 = vrot.lane.b32.xlu0 %v3189, 97
      %v3211 = vpop.permute.xlu0 %3210
      %v3214 = vsel %vm1579, 0.0, %v3209
      %v3215 = vsel %vm1579, 0.0, %v3211
      %3216 = vrot.lane.b32.xlu0 %v3188, 95
      %v3217 = vpop.permute.xlu0 %3216
      %3218 = vrot.lane.b32.xlu0 %v3189, 95
      %v3219 = vpop.permute.xlu0 %3218
      %v3222 = vsel %vm1587, 0.0, %v3217
      %v3223 = vsel %vm1587, 0.0, %v3219
      %3224 = vrot.lane.b32.xlu0 %v3188, 89
      %v3225 = vpop.permute.xlu0 %3224
      %3226 = vrot.lane.b32.xlu0 %v3189, 89
      %v3227 = vpop.permute.xlu0 %3226
      %v3230 = vsel %vm1579, 0.0, %v3225
      %v3231 = vsel %vm1579, 0.0, %v3227
      %3232 = vrot.lane.b32.xlu0 %v3188, 87
      %v3233 = vpop.permute.xlu0 %3232
      %3234 = vrot.lane.b32.xlu0 %v3189, 87
      %v3235 = vpop.permute.xlu0 %3234
      %v3238 = vsel %vm1587, 0.0, %v3233
      %v3239 = vsel %vm1587, 0.0, %v3235
      %3240 = vrot.lane.b32.xlu0 %v3188, 104
      %v3241 = vpop.permute.xlu0 %3240
      %3242 = vrot.lane.b32.xlu0 %v3189, 104
      %v3243 = vpop.permute.xlu0 %3242
      %3246 = vrot.lane.b32.xlu0 %v3188, 96
      %v3247 = vpop.permute.xlu0 %3246
      %3248 = vrot.lane.b32.xlu0 %v3189, 96
      %v3249 = vpop.permute.xlu0 %3248
      %3252 = vrot.lane.b32.xlu0 %v3188, 88
      %v3253 = vpop.permute.xlu0 %3252
      %3254 = vrot.lane.b32.xlu0 %v3189, 88
      %v3255 = vpop.permute.xlu0 %3254
      %3259 = vset.pattern.permute.xlu0 0
      %3260 = vperm.xlu0 %3259, %v3170
      %v3261 = vpop.permute.xlu0 %3260
      %3264 = vset.pattern.permute.xlu0 0
      %3265 = vperm.xlu0 %3264, %v3171
      %v3266 = vpop.permute.xlu0 %3265
      %v3269 = vsel %vm1812, %v3167, 0
      %v3272 = vsel %vm1812, %v3169, 0
      %3274 = vmatprep.subr.mxu0 0.0
      %3275 = vmatpush1.msra.mxu0 %v3198
      %3276 = vmatprep.subr.mxu0 0.0
      %3277 = vmatpush1.msra.mxu0 %v3199
      %3278 = vmatprep.subr.mxu0 0.0
      %3279 = vmatpush1.msra.mxu0 %v3241
      %3280 = vmatprep.subr.mxu0 0.0
      %3281 = vmatpush1.msra.mxu0 %v3243
      %3282 = vmatprep.subr.mxu0 0.0
      %3283 = vmatpush1.msra.mxu0 %v3206
      %3284 = vmatprep.subr.mxu0 0.0
      %3285 = vmatpush1.msra.mxu0 %v3207
      %3286 = vmatprep.subr.mxu0 0.0
      %3287 = vmatpush1.msra.mxu0 %v3214
      %3288 = vmatprep.subr.mxu0 0.0
      %3289 = vmatpush1.msra.mxu0 %v3215
      %3290 = vmatprep.subr.mxu0 0.0
      %3291 = vmatpush1.msra.mxu0 %v3247
      %3292 = vmatprep.subr.mxu0 0.0
      %3293 = vmatpush1.msra.mxu0 %v3249
      %3294 = vmatprep.subr.mxu0 0.0
      %3295 = vmatpush1.msra.mxu0 %v3222
      %3296 = vmatprep.subr.mxu0 0.0
      %3297 = vmatpush1.msra.mxu0 %v3223
      %3298 = vmatprep.subr.mxu0 0.0
      %3299 = vmatpush1.msra.mxu0 %v3230
      %3300 = vmatprep.subr.mxu0 0.0
      %3301 = vmatpush1.msra.mxu0 %v3231
      %3302 = vmatprep.subr.mxu0 0.0
      %3303 = vmatpush1.msra.mxu0 %v3253
      %3304 = vmatprep.subr.mxu0 0.0
      %3305 = vmatpush1.msra.mxu0 %v3255
      %3306 = vmatprep.subr.mxu0 0.0
      %3307 = vmatpush1.msra.mxu0 %v3238
      %3308 = vmatprep.subr.mxu0 0.0
      %3309 = vmatpush1.msra.mxu0 %v3239
      %3310 = vmatprep.subr.mxu0 0.0
      %3311 = vmatpush1.msra.mxu0 0.0
      %3312 = vmatprep.subr.mxu0 0.0
      %3313 = vmatpush1.msra.mxu0 0.0
      %3314 = vmatprep.subr.mxu0 0.0
      %3315 = vmatpush1.msra.mxu0 0.0
      %3316 = vmatprep.subr.mxu0 0.0
      %3317 = vmatpush1.msra.mxu0 0.0
      %3318 = vmatprep.subr.mxu0 0.0
      %3319 = vmatpush1.msra.mxu0 0.0
      %3320 = vmatprep.subr.mxu0 0.0
      %3321 = vmatpush1.msra.mxu0 0.0
      %3322 = vmatprep.subr.mxu0 0.0
      %3323 = vmatpush1.msra.mxu0 0.0
      %3324 = vmatprep.subr.mxu0 0.0
      %3325 = vmatpush1.msra.mxu0 0.0
      %3326 = vmatprep.subr.mxu0 0.0
      %3327 = vmatpush1.msra.mxu0 0.0
      %3328 = vmatprep.subr.mxu0 0.0
      %3329 = vmatpush1.msra.mxu0 0.0
      %3330 = vmatprep.subr.mxu0 0.0
      %3331 = vmatpush1.msra.mxu0 0.0
      %3332 = vmatprep.subr.mxu0 0.0
      %3333 = vmatpush1.msra.mxu0 0.0
      %3334 = vmatprep.subr.mxu0 0.0
      %3335 = vmatpush1.msra.mxu0 0.0
      %3336 = vmatprep.subr.mxu0 0.0
      %3337 = vmatpush1.msra.mxu0 0.0
      %3338 = vmatprep.mubr.f32.mxu0 %v3269
      %3339 = vmatmul.mubr.f32.gmra.mrb[0].mxu0 %v3166
      %v3340 = vpop.f32.mrb[0].mxu0
      %v3341 = vadd.f32 %v3261, %v3340
      %v3342 = vpop.f32.mrb[0].mxu0
      %3343 = vmatprep.mubr.f32.mxu0 %v3272
      %3344 = vmatmul.mubr.f32.gmra.mrb[0].mxu0 %v3168
      %v3345 = vpop.f32.mrb[0].mxu0
      %v3346 = vadd.f32 %v3266, %v3345
      %v3347 = vpop.f32.mrb[0].mxu0
      %3348 = vdwg.mxu0
      %v3349 = vmax.f32 %v3341, 0.0
      %v3350 = vmax.f32 %v3346, 0.0
      %v3351 = vld [vmem:[%s53] sm:$0xff]
      %v3352 = vld [vmem:[%s53 + $0x8] sm:$0xff]
      %v3353 = vld [vmem:[%s53 + $0x10] sm:$0xff]
      %v3354 = vld [vmem:[%s53 + $0x18] sm:$0xff]
      %v3355 = vld [vmem:[%s53 + $0x20] sm:$0xff]
      %v3356 = vld [vmem:[%s53 + $0x28] sm:$0xff]
      %v3357 = vld [vmem:[%s53 + $0x30] sm:$0xff]
      %v3358 = vld [vmem:[%s53 + $0x38] sm:$0xff]
      %v3359 = vld [vmem:[%s53 + $0x40] sm:$0xff]
      %v3360 = vld [vmem:[%s53 + $0x48] sm:$0xff]
      %v3361 = vld [vmem:[%s53 + $0x50] sm:$0xff]
      %v3362 = vld [vmem:[%s53 + $0x58] sm:$0xff]
      %v3363 = vld [vmem:[%s53 + $0x60] sm:$0xff]
      %v3364 = vld [vmem:[%s53 + $0x68] sm:$0xff]
      %v3365 = vld [vmem:[%s53 + $0x70] sm:$0xff]
      %v3366 = vld [vmem:[%s53 + $0x78] sm:$0xff]
      %v3368 = vsel %vm974, %v3349, 0
      %v3371 = vsel %vm974, %v3350, 0
      %3373 = vmatprep.subr.mxu0 %v3352
      %3374 = vmatpush1.msra.mxu0 %v3351
      %3375 = vmatprep.subr.mxu0 %v3354
      %3376 = vmatpush1.msra.mxu0 %v3353
      %3377 = vmatprep.subr.mxu0 %v3356
      %3378 = vmatpush1.msra.mxu0 %v3355
      %3379 = vmatprep.subr.mxu0 %v3358
      %3380 = vmatpush1.msra.mxu0 %v3357
      %3381 = vmatprep.subr.mxu0 %v3360
      %3382 = vmatpush1.msra.mxu0 %v3359
      %3383 = vmatprep.subr.mxu0 %v3362
      %3384 = vmatpush1.msra.mxu0 %v3361
      %3385 = vmatprep.subr.mxu0 %v3364
      %3386 = vmatpush1.msra.mxu0 %v3363
      %3387 = vmatprep.subr.mxu0 %v3366
      %3388 = vmatpush1.msra.mxu0 %v3365
      %3389 = vmatprep.subr.mxu0 0.0
      %3390 = vmatpush1.msra.mxu0 0.0
      %3391 = vmatprep.subr.mxu0 0.0
      %3392 = vmatpush1.msra.mxu0 0.0
      %3393 = vmatprep.subr.mxu0 0.0
      %3394 = vmatpush1.msra.mxu0 0.0
      %3395 = vmatprep.subr.mxu0 0.0
      %3396 = vmatpush1.msra.mxu0 0.0
      %3397 = vmatprep.subr.mxu0 0.0
      %3398 = vmatpush1.msra.mxu0 0.0
      %3399 = vmatprep.subr.mxu0 0.0
      %3400 = vmatpush1.msra.mxu0 0.0
      %3401 = vmatprep.subr.mxu0 0.0
      %3402 = vmatpush1.msra.mxu0 0.0
      %3403 = vmatprep.subr.mxu0 0.0
      %3404 = vmatpush1.msra.mxu0 0.0
      %3405 = vmatprep.subr.mxu0 0.0
      %3406 = vmatpush1.msra.mxu0 0.0
      %3407 = vmatprep.subr.mxu0 0.0
      %3408 = vmatpush1.msra.mxu0 0.0
      %3409 = vmatprep.subr.mxu0 0.0
      %3410 = vmatpush1.msra.mxu0 0.0
      %3411 = vmatprep.subr.mxu0 0.0
      %3412 = vmatpush1.msra.mxu0 0.0
      %3413 = vmatprep.subr.mxu0 0.0
      %3414 = vmatpush1.msra.mxu0 0.0
      %3415 = vmatprep.subr.mxu0 0.0
      %3416 = vmatpush1.msra.mxu0 0.0
      %3417 = vmatprep.subr.mxu0 0.0
      %3418 = vmatpush1.msra.mxu0 0.0
      %3419 = vmatprep.subr.mxu0 0.0
      %3420 = vmatpush1.msra.mxu0 0.0
      %3421 = vmatprep.subr.mxu0 0.0
      %3422 = vmatpush1.msra.mxu0 0.0
      %3423 = vmatprep.subr.mxu0 0.0
      %3424 = vmatpush1.msra.mxu0 0.0
      %3425 = vmatprep.subr.mxu0 0.0
      %3426 = vmatpush1.msra.mxu0 0.0
      %3427 = vmatprep.subr.mxu0 0.0
      %3428 = vmatpush1.msra.mxu0 0.0
      %3429 = vmatprep.subr.mxu0 0.0
      %3430 = vmatpush1.msra.mxu0 0.0
      %3431 = vmatprep.subr.mxu0 0.0
      %3432 = vmatpush1.msra.mxu0 0.0
      %3433 = vmatprep.subr.mxu0 0.0
      %3434 = vmatpush1.msra.mxu0 0.0
      %3435 = vmatprep.subr.mxu0 0.0
      %3436 = vmatpush1.msra.mxu0 0.0
      %3437 = vmatprep.mubr.f32.mxu0 0.0
      %3438 = vmatmul.mubr.f32.gmra.mrb[0].mxu0 %v3368
      %v3439 = vpop.f32.mrb[0].mxu0
      %v3440 = vadd.f32 0.0, %v3439
      %v3441 = vpop.f32.mrb[0].mxu0
      %v3442 = vadd.f32 0.0, %v3441
      %3443 = vmatprep.mubr.f32.mxu0 0.0
      %3444 = vmatmul.mubr.f32.gmra.mrb[0].mxu0 %v3371
      %v3445 = vpop.f32.mrb[0].mxu0
      %v3446 = vadd.f32 0.0, %v3445
      %v3447 = vpop.f32.mrb[0].mxu0
      %v3448 = vadd.f32 0.0, %v3447
      %3449 = vdwg.mxu0
      %v3450 = vld [vmem:[%s35] sm:$0xff]
      %v3451 = vld [vmem:[%s35 + $0x8] sm:$0xff]
      %v3452 = vld [vmem:[%s37] sm:$0xff]
      %3453 = vst [vmem:[#allocation2] sm:$0xff] 0.0
      %3454 = vst [vmem:[#allocation2 + $0x8] sm:$0xff] 0.0
      %3455 = vst.msk [vmem:[#allocation2 + $0x10] sm:$0xff] %vm974, 0.0
      %3456 = vst [vmem:[#allocation2 + $0x18] sm:$0xff] 0.0
      %3457 = vst [vmem:[#allocation2 + $0x20] sm:$0xff] 0.0
      %3458 = vst.msk [vmem:[#allocation2 + $0x28] sm:$0xff] %vm974, 0.0
      %3459 = vst [vmem:[#allocation2 + $0x30] sm:$0xff] 0.0
      %3460 = vst [vmem:[#allocation2 + $0x38] sm:$0xff] 0.0
      %3461 = vst.msk [vmem:[#allocation2 + $0x40] sm:$0xff] %vm974, 0.0
      %3468 = vrot.lane.b32.xlu0 %v3440, 32
      %v3469 = vpop.permute.xlu0 %3468
      %3470 = vrot.lane.b32.xlu0 %v3442, 32
      %v3471 = vpop.permute.xlu0 %3470
      %3472 = vrot.lane.b32.xlu0 %v3446, 32
      %v3473 = vpop.permute.xlu0 %3472
      %3474 = vrot.lane.b32.xlu0 %v3448, 32
      %v3475 = vpop.permute.xlu0 %3474
      %3476 = vrot.lane.b32.xlu0 %v1412, 32
      %v3477 = vpop.permute.xlu0 %3476
      %3478 = vrot.lane.b32.xlu0 %v1413, 32
      %v3479 = vpop.permute.xlu0 %3478
      %v3480 = vsel %vm982, %v3469, %v3471
      %v3481 = vsel %vm982, %v3473, %v3475
      %v3482 = vsel %vm982, %v3477, %v3479
      %3492 = vst.msk [vmem:[#allocation2] sm:$0xff] %vm987, %v3469
      %3493 = vst [vmem:[#allocation2 + $0x8] sm:$0xff] %v3480
      %3494 = vst.msk [vmem:[#allocation2 + $0x10] sm:$0xff] %vm982, %v3471
      %3495 = vst.msk [vmem:[#allocation2 + $0x18] sm:$0xff] %vm987, %v3473
      %3496 = vst [vmem:[#allocation2 + $0x20] sm:$0xff] %v3481
      %3497 = vst.msk [vmem:[#allocation2 + $0x28] sm:$0xff] %vm982, %v3475
      %3498 = vst.msk [vmem:[#allocation2 + $0x30] sm:$0xff] %vm987, %v3477
      %3499 = vst [vmem:[#allocation2 + $0x38] sm:$0xff] %v3482
      %3500 = vst.msk [vmem:[#allocation2 + $0x40] sm:$0xff] %vm982, %v3479
      %v3501 = vld [vmem:[#allocation2] sm:$0xff]
      %v3502 = vld [vmem:[#allocation2 + $0x8] sm:$0xff]
      %v3503 = vld [vmem:[#allocation2 + $0x10] sm:$0xff]
      %v3504 = vld [vmem:[#allocation2 + $0x18] sm:$0xff]
      %v3505 = vld [vmem:[#allocation2 + $0x20] sm:$0xff]
      %v3506 = vld [vmem:[#allocation2 + $0x28] sm:$0xff]
      %v3507 = vld [vmem:[#allocation2 + $0x30] sm:$0xff]
      %v3508 = vld [vmem:[#allocation2 + $0x38] sm:$0xff]
      %v3509 = vld [vmem:[#allocation2 + $0x40] sm:$0xff]
      %3519 = vrot.lane.b32.xlu0 %v3501, 113
      %v3520 = vpop.permute.xlu0 %3519
      %3521 = vrot.lane.b32.xlu0 %v3502, 113
      %v3522 = vpop.permute.xlu0 %3521
      %3523 = vrot.lane.b32.xlu0 %v3503, 113
      %v3524 = vpop.permute.xlu0 %3523
      %3525 = vrot.lane.b32.xlu0 %v3504, 113
      %v3526 = vpop.permute.xlu0 %3525
      %3527 = vrot.lane.b32.xlu0 %v3505, 113
      %v3528 = vpop.permute.xlu0 %3527
      %3529 = vrot.lane.b32.xlu0 %v3506, 113
      %v3530 = vpop.permute.xlu0 %3529
      %3531 = vrot.lane.b32.xlu0 %v3507, 113
      %v3532 = vpop.permute.xlu0 %3531
      %3533 = vrot.lane.b32.xlu0 %v3508, 113
      %v3534 = vpop.permute.xlu0 %3533
      %3535 = vrot.lane.b32.xlu0 %v3509, 113
      %v3536 = vpop.permute.xlu0 %3535
      %v3537 = vsel %vm1014, %v3520, %v3522
      %v3538 = vsel %vm1014, %v3522, %v3524
      %v3539 = vsel %vm1014, %v3526, %v3528
      %v3540 = vsel %vm1014, %v3528, %v3530
      %v3541 = vsel %vm1014, %v3532, %v3534
      %v3542 = vsel %vm1014, %v3534, %v3536
      %v3549 = vsel %vm1003, 0.0, %v3537
      %v3550 = vsel %vm1004, 0.0, %v3538
      %v3551 = vsel %vm1003, 0.0, %v3539
      %v3552 = vsel %vm1004, 0.0, %v3540
      %v3553 = vsel %vm1003, 0.0, %v3541
      %v3554 = vsel %vm1004, 0.0, %v3542
      %3555 = vrot.lane.b32.xlu0 %v3501, 111
      %v3556 = vpop.permute.xlu0 %3555
      %3557 = vrot.lane.b32.xlu0 %v3502, 111
      %v3558 = vpop.permute.xlu0 %3557
      %3559 = vrot.lane.b32.xlu0 %v3503, 111
      %v3560 = vpop.permute.xlu0 %3559
      %3561 = vrot.lane.b32.xlu0 %v3504, 111
      %v3562 = vpop.permute.xlu0 %3561
      %3563 = vrot.lane.b32.xlu0 %v3505, 111
      %v3564 = vpop.permute.xlu0 %3563
      %3565 = vrot.lane.b32.xlu0 %v3506, 111
      %v3566 = vpop.permute.xlu0 %3565
      %3567 = vrot.lane.b32.xlu0 %v3507, 111
      %v3568 = vpop.permute.xlu0 %3567
      %3569 = vrot.lane.b32.xlu0 %v3508, 111
      %v3570 = vpop.permute.xlu0 %3569
      %3571 = vrot.lane.b32.xlu0 %v3509, 111
      %v3572 = vpop.permute.xlu0 %3571
      %v3573 = vsel %vm1033, %v3556, %v3558
      %v3574 = vsel %vm1033, %v3558, %v3560
      %v3575 = vsel %vm1033, %v3562, %v3564
      %v3576 = vsel %vm1033, %v3564, %v3566
      %v3577 = vsel %vm1033, %v3568, %v3570
      %v3578 = vsel %vm1033, %v3570, %v3572
      %v3585 = vsel %vm1025, 0.0, %v3573
      %v3586 = vsel %vm1026, 0.0, %v3574
      %v3587 = vsel %vm1025, 0.0, %v3575
      %v3588 = vsel %vm1026, 0.0, %v3576
      %v3589 = vsel %vm1025, 0.0, %v3577
      %v3590 = vsel %vm1026, 0.0, %v3578
      %3591 = vrot.lane.b32.xlu0 %v3501, 97
      %v3592 = vpop.permute.xlu0 %3591
      %3593 = vrot.lane.b32.xlu0 %v3502, 97
      %v3594 = vpop.permute.xlu0 %3593
      %3595 = vrot.lane.b32.xlu0 %v3503, 97
      %v3596 = vpop.permute.xlu0 %3595
      %3597 = vrot.lane.b32.xlu0 %v3504, 97
      %v3598 = vpop.permute.xlu0 %3597
      %3599 = vrot.lane.b32.xlu0 %v3505, 97
      %v3600 = vpop.permute.xlu0 %3599
      %3601 = vrot.lane.b32.xlu0 %v3506, 97
      %v3602 = vpop.permute.xlu0 %3601
      %3603 = vrot.lane.b32.xlu0 %v3507, 97
      %v3604 = vpop.permute.xlu0 %3603
      %3605 = vrot.lane.b32.xlu0 %v3508, 97
      %v3606 = vpop.permute.xlu0 %3605
      %3607 = vrot.lane.b32.xlu0 %v3509, 97
      %v3608 = vpop.permute.xlu0 %3607
      %v3609 = vsel %vm1046, %v3592, %v3594
      %v3610 = vsel %vm1046, %v3594, %v3596
      %v3611 = vsel %vm1046, %v3598, %v3600
      %v3612 = vsel %vm1046, %v3600, %v3602
      %v3613 = vsel %vm1046, %v3604, %v3606
      %v3614 = vsel %vm1046, %v3606, %v3608
      %v3621 = vsel %vm1003, 0.0, %v3609
      %v3622 = vsel %vm1004, 0.0, %v3610
      %v3623 = vsel %vm1003, 0.0, %v3611
      %v3624 = vsel %vm1004, 0.0, %v3612
      %v3625 = vsel %vm1003, 0.0, %v3613
      %v3626 = vsel %vm1004, 0.0, %v3614
      %3627 = vrot.lane.b32.xlu0 %v3501, 95
      %v3628 = vpop.permute.xlu0 %3627
      %3629 = vrot.lane.b32.xlu0 %v3502, 95
      %v3630 = vpop.permute.xlu0 %3629
      %3631 = vrot.lane.b32.xlu0 %v3503, 95
      %v3632 = vpop.permute.xlu0 %3631
      %3633 = vrot.lane.b32.xlu0 %v3504, 95
      %v3634 = vpop.permute.xlu0 %3633
      %3635 = vrot.lane.b32.xlu0 %v3505, 95
      %v3636 = vpop.permute.xlu0 %3635
      %3637 = vrot.lane.b32.xlu0 %v3506, 95
      %v3638 = vpop.permute.xlu0 %3637
      %3639 = vrot.lane.b32.xlu0 %v3507, 95
      %v3640 = vpop.permute.xlu0 %3639
      %3641 = vrot.lane.b32.xlu0 %v3508, 95
      %v3642 = vpop.permute.xlu0 %3641
      %3643 = vrot.lane.b32.xlu0 %v3509, 95
      %v3644 = vpop.permute.xlu0 %3643
      %v3645 = vsel %vm1059, %v3628, %v3630
      %v3646 = vsel %vm1059, %v3630, %v3632
      %v3647 = vsel %vm1059, %v3634, %v3636
      %v3648 = vsel %vm1059, %v3636, %v3638
      %v3649 = vsel %vm1059, %v3640, %v3642
      %v3650 = vsel %vm1059, %v3642, %v3644
      %v3657 = vsel %vm1025, 0.0, %v3645
      %v3658 = vsel %vm1026, 0.0, %v3646
      %v3659 = vsel %vm1025, 0.0, %v3647
      %v3660 = vsel %vm1026, 0.0, %v3648
      %v3661 = vsel %vm1025, 0.0, %v3649
      %v3662 = vsel %vm1026, 0.0, %v3650
      %3663 = vrot.lane.b32.xlu0 %v3501, 81
      %v3664 = vpop.permute.xlu0 %3663
      %3665 = vrot.lane.b32.xlu0 %v3502, 81
      %v3666 = vpop.permute.xlu0 %3665
      %3667 = vrot.lane.b32.xlu0 %v3503, 81
      %v3668 = vpop.permute.xlu0 %3667
      %3669 = vrot.lane.b32.xlu0 %v3504, 81
      %v3670 = vpop.permute.xlu0 %3669
      %3671 = vrot.lane.b32.xlu0 %v3505, 81
      %v3672 = vpop.permute.xlu0 %3671
      %3673 = vrot.lane.b32.xlu0 %v3506, 81
      %v3674 = vpop.permute.xlu0 %3673
      %3675 = vrot.lane.b32.xlu0 %v3507, 81
      %v3676 = vpop.permute.xlu0 %3675
      %3677 = vrot.lane.b32.xlu0 %v3508, 81
      %v3678 = vpop.permute.xlu0 %3677
      %3679 = vrot.lane.b32.xlu0 %v3509, 81
      %v3680 = vpop.permute.xlu0 %3679
      %v3681 = vsel %vm1072, %v3664, %v3666
      %v3682 = vsel %vm1072, %v3666, %v3668
      %v3683 = vsel %vm1072, %v3670, %v3672
      %v3684 = vsel %vm1072, %v3672, %v3674
      %v3685 = vsel %vm1072, %v3676, %v3678
      %v3686 = vsel %vm1072, %v3678, %v3680
      %v3693 = vsel %vm1003, 0.0, %v3681
      %v3694 = vsel %vm1004, 0.0, %v3682
      %v3695 = vsel %vm1003, 0.0, %v3683
      %v3696 = vsel %vm1004, 0.0, %v3684
      %v3697 = vsel %vm1003, 0.0, %v3685
      %v3698 = vsel %vm1004, 0.0, %v3686
      %3699 = vrot.lane.b32.xlu0 %v3501, 79
      %v3700 = vpop.permute.xlu0 %3699
      %3701 = vrot.lane.b32.xlu0 %v3502, 79
      %v3702 = vpop.permute.xlu0 %3701
      %3703 = vrot.lane.b32.xlu0 %v3503, 79
      %v3704 = vpop.permute.xlu0 %3703
      %3705 = vrot.lane.b32.xlu0 %v3504, 79
      %v3706 = vpop.permute.xlu0 %3705
      %3707 = vrot.lane.b32.xlu0 %v3505, 79
      %v3708 = vpop.permute.xlu0 %3707
      %3709 = vrot.lane.b32.xlu0 %v3506, 79
      %v3710 = vpop.permute.xlu0 %3709
      %3711 = vrot.lane.b32.xlu0 %v3507, 79
      %v3712 = vpop.permute.xlu0 %3711
      %3713 = vrot.lane.b32.xlu0 %v3508, 79
      %v3714 = vpop.permute.xlu0 %3713
      %3715 = vrot.lane.b32.xlu0 %v3509, 79
      %v3716 = vpop.permute.xlu0 %3715
      %v3717 = vsel %vm1085, %v3700, %v3702
      %v3718 = vsel %vm1085, %v3702, %v3704
      %v3719 = vsel %vm1085, %v3706, %v3708
      %v3720 = vsel %vm1085, %v3708, %v3710
      %v3721 = vsel %vm1085, %v3712, %v3714
      %v3722 = vsel %vm1085, %v3714, %v3716
      %v3729 = vsel %vm1025, 0.0, %v3717
      %v3730 = vsel %vm1026, 0.0, %v3718
      %v3731 = vsel %vm1025, 0.0, %v3719
      %v3732 = vsel %vm1026, 0.0, %v3720
      %v3733 = vsel %vm1025, 0.0, %v3721
      %v3734 = vsel %vm1026, 0.0, %v3722
      %3735 = vrot.lane.b32.xlu0 %v3501, 112
      %v3736 = vpop.permute.xlu0 %3735
      %3737 = vrot.lane.b32.xlu0 %v3502, 112
      %v3738 = vpop.permute.xlu0 %3737
      %3739 = vrot.lane.b32.xlu0 %v3503, 112
      %v3740 = vpop.permute.xlu0 %3739
      %3741 = vrot.lane.b32.xlu0 %v3504, 112
      %v3742 = vpop.permute.xlu0 %3741
      %3743 = vrot.lane.b32.xlu0 %v3505, 112
      %v3744 = vpop.permute.xlu0 %3743
      %3745 = vrot.lane.b32.xlu0 %v3506, 112
      %v3746 = vpop.permute.xlu0 %3745
      %3747 = vrot.lane.b32.xlu0 %v3507, 112
      %v3748 = vpop.permute.xlu0 %3747
      %3749 = vrot.lane.b32.xlu0 %v3508, 112
      %v3750 = vpop.permute.xlu0 %3749
      %3751 = vrot.lane.b32.xlu0 %v3509, 112
      %v3752 = vpop.permute.xlu0 %3751
      %v3753 = vsel %vm1098, %v3736, %v3738
      %v3754 = vsel %vm1098, %v3738, %v3740
      %v3755 = vsel %vm1098, %v3742, %v3744
      %v3756 = vsel %vm1098, %v3744, %v3746
      %v3757 = vsel %vm1098, %v3748, %v3750
      %v3758 = vsel %vm1098, %v3750, %v3752
      %3765 = vrot.lane.b32.xlu0 %v3501, 96
      %v3766 = vpop.permute.xlu0 %3765
      %3767 = vrot.lane.b32.xlu0 %v3502, 96
      %v3768 = vpop.permute.xlu0 %3767
      %3769 = vrot.lane.b32.xlu0 %v3503, 96
      %v3770 = vpop.permute.xlu0 %3769
      %3771 = vrot.lane.b32.xlu0 %v3504, 96
      %v3772 = vpop.permute.xlu0 %3771
      %3773 = vrot.lane.b32.xlu0 %v3505, 96
      %v3774 = vpop.permute.xlu0 %3773
      %3775 = vrot.lane.b32.xlu0 %v3506, 96
      %v3776 = vpop.permute.xlu0 %3775
      %3777 = vrot.lane.b32.xlu0 %v3507, 96
      %v3778 = vpop.permute.xlu0 %3777
      %3779 = vrot.lane.b32.xlu0 %v3508, 96
      %v3780 = vpop.permute.xlu0 %3779
      %3781 = vrot.lane.b32.xlu0 %v3509, 96
      %v3782 = vpop.permute.xlu0 %3781
      %v3783 = vsel %vm1109, %v3766, %v3768
      %v3784 = vsel %vm1109, %v3768, %v3770
      %v3785 = vsel %vm1109, %v3772, %v3774
      %v3786 = vsel %vm1109, %v3774, %v3776
      %v3787 = vsel %vm1109, %v3778, %v3780
      %v3788 = vsel %vm1109, %v3780, %v3782
      %3795 = vrot.lane.b32.xlu0 %v3501, 80
      %v3796 = vpop.permute.xlu0 %3795
      %3797 = vrot.lane.b32.xlu0 %v3502, 80
      %v3798 = vpop.permute.xlu0 %3797
      %3799 = vrot.lane.b32.xlu0 %v3503, 80
      %v3800 = vpop.permute.xlu0 %3799
      %3801 = vrot.lane.b32.xlu0 %v3504, 80
      %v3802 = vpop.permute.xlu0 %3801
      %3803 = vrot.lane.b32.xlu0 %v3505, 80
      %v3804 = vpop.permute.xlu0 %3803
      %3805 = vrot.lane.b32.xlu0 %v3506, 80
      %v3806 = vpop.permute.xlu0 %3805
      %3807 = vrot.lane.b32.xlu0 %v3507, 80
      %v3808 = vpop.permute.xlu0 %3807
      %3809 = vrot.lane.b32.xlu0 %v3508, 80
      %v3810 = vpop.permute.xlu0 %3809
      %3811 = vrot.lane.b32.xlu0 %v3509, 80
      %v3812 = vpop.permute.xlu0 %3811
      %v3813 = vsel %vm1120, %v3796, %v3798
      %v3814 = vsel %vm1120, %v3798, %v3800
      %v3815 = vsel %vm1120, %v3802, %v3804
      %v3816 = vsel %vm1120, %v3804, %v3806
      %v3817 = vsel %vm1120, %v3808, %v3810
      %v3818 = vsel %vm1120, %v3810, %v3812
      %3826 = vset.pattern.permute.xlu0 0
      %3827 = vperm.xlu0 %3826, %v3452
      %v3828 = vpop.permute.xlu0 %3827
      %vm3830 = vcmask 719872
      %v3832 = vsel %vm3830, %v3451, 0
      %3834 = vmatprep.subr.mxu0 %v3550
      %3835 = vmatpush1.msra.mxu0 %v3549
      %3836 = vmatprep.subr.mxu0 %v3552
      %3837 = vmatpush1.msra.mxu0 %v3551
      %3838 = vmatprep.subr.mxu0 %v3554
      %3839 = vmatpush1.msra.mxu0 %v3553
      %3840 = vmatprep.subr.mxu0 %v3754
      %3841 = vmatpush1.msra.mxu0 %v3753
      %3842 = vmatprep.subr.mxu0 %v3756
      %3843 = vmatpush1.msra.mxu0 %v3755
      %3844 = vmatprep.subr.mxu0 %v3758
      %3845 = vmatpush1.msra.mxu0 %v3757
      %3846 = vmatprep.subr.mxu0 %v3586
      %3847 = vmatpush1.msra.mxu0 %v3585
      %3848 = vmatprep.subr.mxu0 %v3588
      %3849 = vmatpush1.msra.mxu0 %v3587
      %3850 = vmatprep.subr.mxu0 %v3590
      %3851 = vmatpush1.msra.mxu0 %v3589
      %3852 = vmatprep.subr.mxu0 %v3622
      %3853 = vmatpush1.msra.mxu0 %v3621
      %3854 = vmatprep.subr.mxu0 %v3624
      %3855 = vmatpush1.msra.mxu0 %v3623
      %3856 = vmatprep.subr.mxu0 %v3626
      %3857 = vmatpush1.msra.mxu0 %v3625
      %3858 = vmatprep.subr.mxu0 %v3784
      %3859 = vmatpush1.msra.mxu0 %v3783
      %3860 = vmatprep.subr.mxu0 %v3786
      %3861 = vmatpush1.msra.mxu0 %v3785
      %3862 = vmatprep.subr.mxu0 %v3788
      %3863 = vmatpush1.msra.mxu0 %v3787
      %3864 = vmatprep.subr.mxu0 %v3658
      %3865 = vmatpush1.msra.mxu0 %v3657
      %3866 = vmatprep.subr.mxu0 %v3660
      %3867 = vmatpush1.msra.mxu0 %v3659
      %3868 = vmatprep.subr.mxu0 %v3662
      %3869 = vmatpush1.msra.mxu0 %v3661
      %3870 = vmatprep.subr.mxu0 %v3694
      %3871 = vmatpush1.msra.mxu0 %v3693
      %3872 = vmatprep.subr.mxu0 %v3696
      %3873 = vmatpush1.msra.mxu0 %v3695
      %3874 = vmatprep.subr.mxu0 %v3698
      %3875 = vmatpush1.msra.mxu0 %v3697
      %3876 = vmatprep.subr.mxu0 %v3814
      %3877 = vmatpush1.msra.mxu0 %v3813
      %3878 = vmatprep.subr.mxu0 %v3816
      %3879 = vmatpush1.msra.mxu0 %v3815
      %3880 = vmatprep.subr.mxu0 %v3818
      %3881 = vmatpush1.msra.mxu0 %v3817
      %3882 = vmatprep.subr.mxu0 %v3730
      %3883 = vmatpush1.msra.mxu0 %v3729
      %3884 = vmatprep.subr.mxu0 %v3732
      %3885 = vmatpush1.msra.mxu0 %v3731
      %3886 = vmatprep.subr.mxu0 %v3734
      %3887 = vmatpush1.msra.mxu0 %v3733
      %3888 = vmatprep.subr.mxu0 0.0
      %3889 = vmatpush1.msra.mxu0 0.0
      %3890 = vmatprep.subr.mxu0 0.0
      %3891 = vmatpush1.msra.mxu0 0.0
      %3892 = vmatprep.subr.mxu0 0.0
      %3893 = vmatpush1.msra.mxu0 0.0
      %3894 = vmatprep.subr.mxu0 0.0
      %3895 = vmatpush1.msra.mxu0 0.0
      %3896 = vmatprep.subr.mxu0 0.0
      %3897 = vmatpush1.msra.mxu0 0.0
      %3898 = vmatprep.mubr.f32.mxu0 %v3832
      %3899 = vmatmul.mubr.f32.gmra.mrb[0].mxu0 %v3450
      %v3900 = vpop.f32.mrb[0].mxu0
      %v3901 = vadd.f32 %v3828, %v3900
      %v3902 = vpop.f32.mrb[0].mxu0
      %v3903 = vadd.f32 %v3828, %v3902
      %3904 = vdwg.mxu0
      %v3905 = vmax.f32 %v3901, 0.0
      %v3906 = vmax.f32 %v3903, 0.0
      %v3907 = vld [vmem:[%s39] sm:$0xff]
      %v3908 = vld [vmem:[%s41] sm:$0xff]
      %3909 = vst [vmem:[#allocation2] sm:$0xff] 0.0
      %3910 = vst [vmem:[#allocation2 + $0x8] sm:$0xff] 0.0
      %3911 = vst.msk [vmem:[#allocation2 + $0x10] sm:$0xff] %vm974, 0.0
      %3914 = vrot.lane.b32.xlu0 %v3905, 32
      %v3915 = vpop.permute.xlu0 %3914
      %3916 = vrot.lane.b32.xlu0 %v3906, 32
      %v3917 = vpop.permute.xlu0 %3916
      %v3918 = vsel %vm982, %v3915, %v3917
      %3922 = vst.msk [vmem:[#allocation2] sm:$0xff] %vm987, %v3915
      %3923 = vst [vmem:[#allocation2 + $0x8] sm:$0xff] %v3918
      %3924 = vst.msk [vmem:[#allocation2 + $0x10] sm:$0xff] %vm982, %v3917
      %v3925 = vld [vmem:[#allocation2] sm:$0xff]
      %v3926 = vld [vmem:[#allocation2 + $0x8] sm:$0xff]
      %v3927 = vld [vmem:[#allocation2 + $0x10] sm:$0xff]
      %3931 = vrot.lane.b32.xlu0 %v3925, 113
      %v3932 = vpop.permute.xlu0 %3931
      %3933 = vrot.lane.b32.xlu0 %v3926, 113
      %v3934 = vpop.permute.xlu0 %3933
      %3935 = vrot.lane.b32.xlu0 %v3927, 113
      %v3936 = vpop.permute.xlu0 %3935
      %v3937 = vsel %vm1014, %v3932, %v3934
      %v3938 = vsel %vm1014, %v3934, %v3936
      %v3941 = vsel %vm1003, 0.0, %v3937
      %v3942 = vsel %vm1004, 0.0, %v3938
      %3943 = vrot.lane.b32.xlu0 %v3925, 111
      %v3944 = vpop.permute.xlu0 %3943
      %3945 = vrot.lane.b32.xlu0 %v3926, 111
      %v3946 = vpop.permute.xlu0 %3945
      %3947 = vrot.lane.b32.xlu0 %v3927, 111
      %v3948 = vpop.permute.xlu0 %3947
      %v3949 = vsel %vm1033, %v3944, %v3946
      %v3950 = vsel %vm1033, %v3946, %v3948
      %v3953 = vsel %vm1025, 0.0, %v3949
      %v3954 = vsel %vm1026, 0.0, %v3950
      %3955 = vrot.lane.b32.xlu0 %v3925, 97
      %v3956 = vpop.permute.xlu0 %3955
      %3957 = vrot.lane.b32.xlu0 %v3926, 97
      %v3958 = vpop.permute.xlu0 %3957
      %3959 = vrot.lane.b32.xlu0 %v3927, 97
      %v3960 = vpop.permute.xlu0 %3959
      %v3961 = vsel %vm1046, %v3956, %v3958
      %v3962 = vsel %vm1046, %v3958, %v3960
      %v3965 = vsel %vm1003, 0.0, %v3961
      %v3966 = vsel %vm1004, 0.0, %v3962
      %3967 = vrot.lane.b32.xlu0 %v3925, 95
      %v3968 = vpop.permute.xlu0 %3967
      %3969 = vrot.lane.b32.xlu0 %v3926, 95
      %v3970 = vpop.permute.xlu0 %3969
      %3971 = vrot.lane.b32.xlu0 %v3927, 95
      %v3972 = vpop.permute.xlu0 %3971
      %v3973 = vsel %vm1059, %v3968, %v3970
      %v3974 = vsel %vm1059, %v3970, %v3972
      %v3977 = vsel %vm1025, 0.0, %v3973
      %v3978 = vsel %vm1026, 0.0, %v3974
      %3979 = vrot.lane.b32.xlu0 %v3925, 81
      %v3980 = vpop.permute.xlu0 %3979
      %3981 = vrot.lane.b32.xlu0 %v3926, 81
      %v3982 = vpop.permute.xlu0 %3981
      %3983 = vrot.lane.b32.xlu0 %v3927, 81
      %v3984 = vpop.permute.xlu0 %3983
      %v3985 = vsel %vm1072, %v3980, %v3982
      %v3986 = vsel %vm1072, %v3982, %v3984
      %v3989 = vsel %vm1003, 0.0, %v3985
      %v3990 = vsel %vm1004, 0.0, %v3986
      %3991 = vrot.lane.b32.xlu0 %v3925, 79
      %v3992 = vpop.permute.xlu0 %3991
      %3993 = vrot.lane.b32.xlu0 %v3926, 79
      %v3994 = vpop.permute.xlu0 %3993
      %3995 = vrot.lane.b32.xlu0 %v3927, 79
      %v3996 = vpop.permute.xlu0 %3995
      %v3997 = vsel %vm1085, %v3992, %v3994
      %v3998 = vsel %vm1085, %v3994, %v3996
      %v4001 = vsel %vm1025, 0.0, %v3997
      %v4002 = vsel %vm1026, 0.0, %v3998
      %4003 = vrot.lane.b32.xlu0 %v3925, 112
      %v4004 = vpop.permute.xlu0 %4003
      %4005 = vrot.lane.b32.xlu0 %v3926, 112
      %v4006 = vpop.permute.xlu0 %4005
      %4007 = vrot.lane.b32.xlu0 %v3927, 112
      %v4008 = vpop.permute.xlu0 %4007
      %v4009 = vsel %vm1098, %v4004, %v4006
      %v4010 = vsel %vm1098, %v4006, %v4008
      %4013 = vrot.lane.b32.xlu0 %v3925, 96
      %v4014 = vpop.permute.xlu0 %4013
      %4015 = vrot.lane.b32.xlu0 %v3926, 96
      %v4016 = vpop.permute.xlu0 %4015
      %4017 = vrot.lane.b32.xlu0 %v3927, 96
      %v4018 = vpop.permute.xlu0 %4017
      %v4019 = vsel %vm1109, %v4014, %v4016
      %v4020 = vsel %vm1109, %v4016, %v4018
      %4023 = vrot.lane.b32.xlu0 %v3925, 80
      %v4024 = vpop.permute.xlu0 %4023
      %4025 = vrot.lane.b32.xlu0 %v3926, 80
      %v4026 = vpop.permute.xlu0 %4025
      %4027 = vrot.lane.b32.xlu0 %v3927, 80
      %v4028 = vpop.permute.xlu0 %4027
      %v4029 = vsel %vm1120, %v4024, %v4026
      %v4030 = vsel %vm1120, %v4026, %v4028
      %4034 = vset.pattern.permute.xlu0 0
      %4035 = vperm.xlu0 %4034, %v3908
      %v4036 = vpop.permute.xlu0 %4035
      %v4039 = vsel %vm1130, %v3907, 0
      %4041 = vmatprep.subr.mxu0 %v3942
      %4042 = vmatpush1.msra.mxu0 %v3941
      %4043 = vmatprep.subr.mxu0 %v4010
      %4044 = vmatpush1.msra.mxu0 %v4009
      %4045 = vmatprep.subr.mxu0 %v3954
      %4046 = vmatpush1.msra.mxu0 %v3953
      %4047 = vmatprep.subr.mxu0 %v3966
      %4048 = vmatpush1.msra.mxu0 %v3965
      %4049 = vmatprep.subr.mxu0 %v4020
      %4050 = vmatpush1.msra.mxu0 %v4019
      %4051 = vmatprep.subr.mxu0 %v3978
      %4052 = vmatpush1.msra.mxu0 %v3977
      %4053 = vmatprep.subr.mxu0 %v3990
      %4054 = vmatpush1.msra.mxu0 %v3989
      %4055 = vmatprep.subr.mxu0 %v4030
      %4056 = vmatpush1.msra.mxu0 %v4029
      %4057 = vmatprep.subr.mxu0 %v4002
      %4058 = vmatpush1.msra.mxu0 %v4001
      %4059 = vmatprep.subr.mxu0 0.0
      %4060 = vmatpush1.msra.mxu0 0.0
      %4061 = vmatprep.subr.mxu0 0.0
      %4062 = vmatpush1.msra.mxu0 0.0
      %4063 = vmatprep.subr.mxu0 0.0
      %4064 = vmatpush1.msra.mxu0 0.0
      %4065 = vmatprep.subr.mxu0 0.0
      %4066 = vmatpush1.msra.mxu0 0.0
      %4067 = vmatprep.subr.mxu0 0.0
      %4068 = vmatpush1.msra.mxu0 0.0
      %4069 = vmatprep.subr.mxu0 0.0
      %4070 = vmatpush1.msra.mxu0 0.0
      %4071 = vmatprep.subr.mxu0 0.0
      %4072 = vmatpush1.msra.mxu0 0.0
      %4073 = vmatprep.subr.mxu0 0.0
      %4074 = vmatpush1.msra.mxu0 0.0
      %4075 = vmatprep.subr.mxu0 0.0
      %4076 = vmatpush1.msra.mxu0 0.0
      %4077 = vmatprep.subr.mxu0 0.0
      %4078 = vmatpush1.msra.mxu0 0.0
      %4079 = vmatprep.subr.mxu0 0.0
      %4080 = vmatpush1.msra.mxu0 0.0
      %4081 = vmatprep.subr.mxu0 0.0
      %4082 = vmatpush1.msra.mxu0 0.0
      %4083 = vmatprep.subr.mxu0 0.0
      %4084 = vmatpush1.msra.mxu0 0.0
      %4085 = vmatprep.subr.mxu0 0.0
      %4086 = vmatpush1.msra.mxu0 0.0
      %4087 = vmatprep.subr.mxu0 0.0
      %4088 = vmatpush1.msra.mxu0 0.0
      %4089 = vmatprep.subr.mxu0 0.0
      %4090 = vmatpush1.msra.mxu0 0.0
      %4091 = vmatprep.subr.mxu0 0.0
      %4092 = vmatpush1.msra.mxu0 0.0
      %4093 = vmatprep.subr.mxu0 0.0
      %4094 = vmatpush1.msra.mxu0 0.0
      %4095 = vmatprep.subr.mxu0 0.0
      %4096 = vmatpush1.msra.mxu0 0.0
      %4097 = vmatprep.subr.mxu0 0.0
      %4098 = vmatpush1.msra.mxu0 0.0
      %4099 = vmatprep.subr.mxu0 0.0
      %4100 = vmatpush1.msra.mxu0 0.0
      %4101 = vmatprep.subr.mxu0 0.0
      %4102 = vmatpush1.msra.mxu0 0.0
      %4103 = vmatprep.subr.mxu0 0.0
      %4104 = vmatpush1.msra.mxu0 0.0
      %4105 = vmatprep.mubr.f32.mxu0 0.0
      %4106 = vmatmul.mubr.f32.gmra.mrb[0].mxu0 %v4039
      %v4107 = vpop.f32.mrb[0].mxu0
      %v4108 = vadd.f32 %v4036, %v4107
      %v4109 = vpop.f32.mrb[0].mxu0
      %v4110 = vadd.f32 %v4036, %v4109
      %4111 = vdwg.mxu0
      %v4112 = vmax.f32 %v4108, 0.0
      %v4113 = vmax.f32 %v4110, 0.0
      %v4114 = vld [vmem:[%s43] sm:$0xf]
      %v4115 = vld [vmem:[%s45] sm:$0xf]
      %4117 = vset.pattern.permute.xlu0 0
      %4118 = vperm.xlu0 %4117, %v4115
      %v4119 = vpop.permute.xlu0 %4118
      %vm4121 = vcmask 64512
      %v4123 = vsel %vm4121, %v4114, 0
      %4125 = vmatprep.subr.mxu0 %v4113
      %4126 = vmatpush1.msra.mxu0 %v4112
      %4127 = vmatprep.subr.mxu0 0.0
      %4128 = vmatpush1.msra.mxu0 0.0
      %4129 = vmatprep.subr.mxu0 0.0
      %4130 = vmatpush1.msra.mxu0 0.0
      %4131 = vmatprep.subr.mxu0 0.0
      %4132 = vmatpush1.msra.mxu0 0.0
      %4133 = vmatprep.subr.mxu0 0.0
      %4134 = vmatpush1.msra.mxu0 0.0
      %4135 = vmatprep.subr.mxu0 0.0
      %4136 = vmatpush1.msra.mxu0 0.0
      %4137 = vmatprep.subr.mxu0 0.0
      %4138 = vmatpush1.msra.mxu0 0.0
      %4139 = vmatprep.subr.mxu0 0.0
      %4140 = vmatpush1.msra.mxu0 0.0
      %4141 = vmatprep.subr.mxu0 0.0
      %4142 = vmatpush1.msra.mxu0 0.0
      %4143 = vmatprep.subr.mxu0 0.0
      %4144 = vmatpush1.msra.mxu0 0.0
      %4145 = vmatprep.subr.mxu0 0.0
      %4146 = vmatpush1.msra.mxu0 0.0
      %4147 = vmatprep.subr.mxu0 0.0
      %4148 = vmatpush1.msra.mxu0 0.0
      %4149 = vmatprep.subr.mxu0 0.0
      %4150 = vmatpush1.msra.mxu0 0.0
      %4151 = vmatprep.subr.mxu0 0.0
      %4152 = vmatpush1.msra.mxu0 0.0
      %4153 = vmatprep.subr.mxu0 0.0
      %4154 = vmatpush1.msra.mxu0 0.0
      %4155 = vmatprep.subr.mxu0 0.0
      %4156 = vmatpush1.msra.mxu0 0.0
      %4157 = vmatprep.subr.mxu0 0.0
      %4158 = vmatpush1.msra.mxu0 0.0
      %4159 = vmatprep.subr.mxu0 0.0
      %4160 = vmatpush1.msra.mxu0 0.0
      %4161 = vmatprep.subr.mxu0 0.0
      %4162 = vmatpush1.msra.mxu0 0.0
      %4163 = vmatprep.subr.mxu0 0.0
      %4164 = vmatpush1.msra.mxu0 0.0
      %4165 = vmatprep.subr.mxu0 0.0
      %4166 = vmatpush1.msra.mxu0 0.0
      %4167 = vmatprep.subr.mxu0 0.0
      %4168 = vmatpush1.msra.mxu0 0.0
      %4169 = vmatprep.subr.mxu0 0.0
      %4170 = vmatpush1.msra.mxu0 0.0
      %4171 = vmatprep.subr.mxu0 0.0
      %4172 = vmatpush1.msra.mxu0 0.0
      %4173 = vmatprep.subr.mxu0 0.0
      %4174 = vmatpush1.msra.mxu0 0.0
      %4175 = vmatprep.subr.mxu0 0.0
      %4176 = vmatpush1.msra.mxu0 0.0
      %4177 = vmatprep.subr.mxu0 0.0
      %4178 = vmatpush1.msra.mxu0 0.0
      %4179 = vmatprep.subr.mxu0 0.0
      %4180 = vmatpush1.msra.mxu0 0.0
      %4181 = vmatprep.subr.mxu0 0.0
      %4182 = vmatpush1.msra.mxu0 0.0
      %4183 = vmatprep.subr.mxu0 0.0
      %4184 = vmatpush1.msra.mxu0 0.0
      %4185 = vmatprep.subr.mxu0 0.0
      %4186 = vmatpush1.msra.mxu0 0.0
      %4187 = vmatprep.subr.mxu0 0.0
      %4188 = vmatpush1.msra.mxu0 0.0
      %4189 = vmatprep.mubr.f32.mxu0 0.0
      %4190 = vmatmul.mubr.f32.gmra.mrb[0].mxu0 %v4123
      %v4191 = vpop.f32.mrb[0].mxu0
      %v4192 = vadd.f32 %v4119, %v4191
      %v4193 = vpop.f32.mrb[0].mxu0
      %v4194 = vadd.f32 %v4119, %v4193
      %4195 = vdwg.mxu0
      %v4198 = vcombine.low %v4192, %v4194
      %4200 = vst [vmem:[%s967] sm:$0xff] %v4198
      %p4201 = scmp.lt.s32.totalorder %s73, 1
      %s4202 = scalar_select %p4201, %s73, 1
      %s4203 = smul.addr %s4202, 2
      %s4204 = smul.addr %s4203, 8
      %s4205 = scalar_lea.vmem %s55, %s4204
      %p4206 = scmp.lt.s32.totalorder %s73, 1
      %s4207 = scalar_select %p4206, %s73, 1
      %s4208 = smul.addr %s4207, 2
      %s4209 = smul.addr %s4208, 8
      %s4210 = scalar_lea.vmem %s57, %s4209
      %p4211 = scmp.lt.s32.totalorder %s73, 1
      %s4212 = scalar_select %p4211, %s73, 1
      %s4213 = smul.addr %s4212, 4
      %s4214 = smul.addr %s4213, 8
      %s4215 = scalar_lea.vmem %s59, %s4214
      %p4216 = scmp.lt.s32.totalorder %s73, 1
      %s4217 = scalar_select %p4216, %s73, 1
      %s4218 = smul.addr %s4217, 2
      %s4219 = smul.addr %s4218, 4
      %s4220 = scalar_lea.vmem %s61, %s4219
      // Predicated region
      $region129: #{unet_forward.1} parent=127 // pred_check
        %p4221 = pneg %p663
      $region130: #{unet_forward.1} parent=127 // pred_check_branch
        %4223 = sbr.rel (%p4221) target = $region132
      $region131: #{unet_forward.1} parent=127 // pred_region
        _
      $region132: #{unet_forward.1} parent=127 // pred_fallthru
        _
      // Predicated region
      $region133: #{unet_forward.1} parent=127 // pred_check
        %p4224 = pneg %p689
      $region134: #{unet_forward.1} parent=127 // pred_check_branch
        %4226 = sbr.rel (%p4224) target = $region136
      $region135: #{unet_forward.1} parent=127 // pred_region
        _
      $region136: #{unet_forward.1} parent=127 // pred_fallthru
        _
      // Predicated region
      $region137: #{unet_forward.1} parent=127 // pred_check
        %p4227 = pneg %p715
      $region138: #{unet_forward.1} parent=127 // pred_check_branch
        %4229 = sbr.rel (%p4227) target = $region140
      $region139: #{unet_forward.1} parent=127 // pred_region
        _
      $region140: #{unet_forward.1} parent=127 // pred_fallthru
        _
      // Predicated region
      $region141: #{unet_forward.1} parent=127 // pred_check
        %p4230 = pneg %p741
      $region142: #{unet_forward.1} parent=127 // pred_check_branch
        %4232 = sbr.rel (%p4230) target = $region144
      $region143: #{unet_forward.1} parent=127 // pred_region
        _
      $region144: #{unet_forward.1} parent=127 // pred_fallthru
        _
    $region128: #{unet_forward.1} parent=5 // pred_fallthru
      _
    %p4233 = scmp.le.s32.totalorder 2, %s68
    // Predicated region
    $region145: #{unet_forward.1} parent=5 // pred_check
      %p4234 = pneg %p4233
    $region146: #{unet_forward.1} parent=5 // pred_check_branch
      %4236 = sbr.rel (%p4234) target = $region148
    $region147: #{unet_forward.1} parent=5 // pred_region
      %s4237 = ssub.s32 %s68, 2
      // Predicated region
      $region149: #{unet_forward.1} parent=147 // pred_check
        %p4238 = pneg %p669
      $region150: #{unet_forward.1} parent=147 // pred_check_branch
        %4240 = sbr.rel (%p4238) target = $region152
      $region151: #{unet_forward.1} parent=147 // pred_region
        %p4241 = scmp.lt.s32.totalorder %s74, 1
        %s4242 = scalar_select %p4241, %s74, 1
        %s4243 = smul.addr %s4242, 2
        %s4244 = smul.addr %s4243, 8
        %s4245 = scalar_lea.vmem %s55, %s4244
      $region152: #{unet_forward.1} parent=147 // pred_fallthru
        _
      // Predicated region
      $region153: #{unet_forward.1} parent=147 // pred_check
        %p4246 = pneg %p695
      $region154: #{unet_forward.1} parent=147 // pred_check_branch
        %4248 = sbr.rel (%p4246) target = $region156
      $region155: #{unet_forward.1} parent=147 // pred_region
        %p4249 = scmp.lt.s32.totalorder %s74, 1
        %s4250 = scalar_select %p4249, %s74, 1
        %s4251 = smul.addr %s4250, 2
        %s4252 = smul.addr %s4251, 8
        %s4253 = scalar_lea.vmem %s57, %s4252
      $region156: #{unet_forward.1} parent=147 // pred_fallthru
        _
      // Predicated region
      $region157: #{unet_forward.1} parent=147 // pred_check
        %p4254 = pneg %p721
      $region158: #{unet_forward.1} parent=147 // pred_check_branch
        %4256 = sbr.rel (%p4254) target = $region160
      $region159: #{unet_forward.1} parent=147 // pred_region
        %p4257 = scmp.lt.s32.totalorder %s74, 1
        %s4258 = scalar_select %p4257, %s74, 1
        %s4259 = smul.addr %s4258, 4
        %s4260 = smul.addr %s4259, 8
        %s4261 = scalar_lea.vmem %s59, %s4260
      $region160: #{unet_forward.1} parent=147 // pred_fallthru
        _
      // Predicated region
      $region161: #{unet_forward.1} parent=147 // pred_check
        %p4262 = pneg %p747
      $region162: #{unet_forward.1} parent=147 // pred_check_branch
        %4264 = sbr.rel (%p4262) target = $region164
      $region163: #{unet_forward.1} parent=147 // pred_region
        %p4265 = scmp.lt.s32.totalorder %s74, 1
        %s4266 = scalar_select %p4265, %s74, 1
        %s4267 = smul.addr %s4266, 2
        %s4268 = smul.addr %s4267, 4
        %s4269 = scalar_lea.vmem %s61, %s4268
      $region164: #{unet_forward.1} parent=147 // pred_fallthru
        _
    $region148: #{unet_forward.1} parent=5 // pred_fallthru
      _
  $region6: #{unet_forward.1} parent=0 // loop_footer
    %s72 = sadd.s32 1, %s68
  $region7: #{unet_forward.1} parent=0 // loop_footer_branch
    %67 = sbr.rel target = $region3
  $region8: #{unet_forward.1} parent=0 // loop_exit
    _

</llo_original>
